<compile_context>
chip_gen: v7x
topology: tpu7x:2x2x1
jax: 0.10.0
libtpu: 0.0.40
codegen_flags: <defaults>
</compile_context>

<pallas_src>
import jax
import jax.numpy as jnp
from jax.experimental import pallas as pl
from jax.experimental.pallas import tpu as pltpu

H1, H2, H3 = 256, 512, 1024
_LANE = 128


def _cdiv(a, b):
    return -(-a // b)


def _round_up(a, b):
    return _cdiv(a, b) * b


def _tpu_config():
    """(tensorcores_per_chip, vmem_bytes_per_core, eup_has_bf16)."""
    kind = ""
    try:
        kind = jax.devices()[0].device_kind.lower()
    except Exception:
        pass
    if "v7" in kind or "7x" in kind:
        return 2, 64 << 20, True          # v7x: 2 TCs, 64 MiB VMEM/TC, bf16 EUP
    if any(t in kind for t in ("v5", "v4", "v3", "v2")):
        return 1, 128 << 20, False        # v5e etc.: 1 TC, 128 MiB, no bf16 EUP
    return 1, 128 << 20, True             # v6e / default


def _choose_tile_m(batch, *, max_tile, num_cores):
    """Batch tile size (rows). Single step when it fits; split only on 2-TC chips."""
    b16 = _round_up(batch, 16)
    if num_cores >= 2 and b16 >= 512:
        # Split across both TensorCores: >=256-row tiles, prefer an even step count.
        tm = min(max_tile, max(256, _round_up(_cdiv(b16, 2), 16)))
        steps = _cdiv(b16, tm)
        if steps > 1 and steps % 2 == 1:
            steps += 1
            tm = min(max_tile, max(256, _round_up(_cdiv(b16, steps), 16)))
        return tm
    # Single-TC chip (v5e/v6e) or small batch: one grid step if it fits.
    return min(b16, max_tile)


def _vmem_limit_bytes(d, pdg_count_p, tile_m, vmem_cap):
    w = 2 * 2 * (d * H1 + H1 * H2 + H2 * H3 + H3 * pdg_count_p)  # bf16, 2 bufs
    b = 2 * 4 * (H1 + H2 + H3 + pdg_count_p)                     # f32 biases
    x_t = 2 * tile_m * d * 4                                     # f32 x tile, 2 bufs
    o_t = 2 * tile_m * pdg_count_p * 4                           # f32 out tile, 2 bufs
    act = 2 * tile_m * (H1 + H2 + 2 * H3) * 4                    # f32 intermediates
    need = w + b + x_t + o_t + act + (4 << 20)                   # compiler scratch slack
    cap = vmem_cap - (8 << 20)                                   # leave headroom
    return int(min(max(need, 16 << 20), cap))


def _make_mlp_kernel(bf16_tanh):
    act_dtype = jnp.bfloat16 if bf16_tanh else jnp.float32

    def kernel(x_ref, w1_ref, b1_ref, w2_ref, b2_ref, w3_ref, b3_ref,
               w4_ref, b4_ref, o_ref):
        def layer(h, w_ref, b_ref):
            acc = jnp.dot(h, w_ref[...],
                          preferred_element_type=jnp.float32) + b_ref[...]
            # tanh in bf16 on v6e/v7x (bf16 EUP); f32 on v5-class chips.
            return jnp.tanh(acc.astype(act_dtype)).astype(jnp.bfloat16)

        h = layer(x_ref[...].astype(jnp.bfloat16), w1_ref, b1_ref)
        h = layer(h, w2_ref, b2_ref)
        h = layer(h, w3_ref, b3_ref)
        acc = jnp.dot(h, w4_ref[...],
                      preferred_element_type=jnp.float32) + b4_ref[...]
        o_ref[...] = jnp.tanh(acc.astype(act_dtype)).astype(o_ref.dtype)

    return kernel


def prepare_params(params):
    """One-time parameter prep: bf16 weights, f32 biases, lane-padded layer 4.

    Returns (prepared_params_dict, pdg_count).
    """
    w4, b4 = params["w4"], params["b4"]
    pdg_count = w4.shape[1]
    pdg_count_p = _round_up(pdg_count, _LANE)
    if pdg_count_p != pdg_count:
        pad = pdg_count_p - pdg_count
        w4 = jnp.pad(w4, ((0, 0), (0, pad)))   # zero cols -> tanh(0)=0, sliced off
        b4 = jnp.pad(b4, ((0, 0), (0, pad)))
    prepared = {
        "w1": params["w1"].astype(jnp.bfloat16),
        "b1": params["b1"].astype(jnp.float32),
        "w2": params["w2"].astype(jnp.bfloat16),
        "b2": params["b2"].astype(jnp.float32),
        "w3": params["w3"].astype(jnp.bfloat16),
        "b3": params["b3"].astype(jnp.float32),
        "w4": w4.astype(jnp.bfloat16),
        "b4": b4.astype(jnp.float32),
    }
    return prepared, pdg_count


def pdg_deembedder_forward(x, prepared, pdg_count, *, tile_m=None):
    """Pallas implementation of PDGDeembedder.forward.

    x: [batch, pdg_embed_dim] float32
    prepared: output of prepare_params (bf16 weights [in,out], f32 biases [1,out])
    returns: [batch, pdg_count] float32
    """
    w1, b1 = prepared["w1"], prepared["b1"]
    w2, b2 = prepared["w2"], prepared["b2"]
    w3, b3 = prepared["w3"], prepared["b3"]
    w4, b4 = prepared["w4"], prepared["b4"]

    batch, d = x.shape
    pdg_count_p = w4.shape[1]

    num_cores, vmem_cap, eup_bf16 = _tpu_config()
    max_tile = 1024 if vmem_cap <= (64 << 20) else 2048
    if tile_m is None:
        tile_m = _choose_tile_m(batch, max_tile=max_tile, num_cores=num_cores)

    batch_p = _round_up(batch, tile_m)
    if batch_p != batch:
        x = jnp.pad(x, ((0, batch_p - batch), (0, 0)))

    grid = (batch_p // tile_m,)
    out_shape = jax.ShapeDtypeStruct((batch_p, pdg_count_p), jnp.float32)

    flops = 2 * batch_p * (d * H1 + H1 * H2 + H2 * H3 + H3 * pdg_count_p)
    transc = batch_p * (H1 + H2 + H3 + pdg_count_p)
    bytes_accessed = (
        2 * (d * H1 + H1 * H2 + H2 * H3 + H3 * pdg_count_p)   # bf16 weights
        + 4 * (H1 + H2 + H3 + pdg_count_p)                    # f32 biases
        + batch_p * d * 4 + batch_p * pdg_count_p * 4)        # x in, out
    cost = pl.CostEstimate(flops=flops, transcendentals=transc,
                           bytes_accessed=bytes_accessed)

    compiler_params = pltpu.CompilerParams(
        dimension_semantics=("parallel",),
        vmem_limit_bytes=_vmem_limit_bytes(d, pdg_count_p, tile_m, vmem_cap))

    def wspec(shape):
        # Constant index_map -> fetched once and kept resident across the grid.
        return pl.BlockSpec(shape, lambda i: (0, 0))

    out = pl.pallas_call(
        _make_mlp_kernel(eup_bf16),
        out_shape=out_shape,
        grid_spec=pltpu.PrefetchScalarGridSpec(
            num_scalar_prefetch=0,
            grid=grid,
            in_specs=[
                pl.BlockSpec((tile_m, d), lambda i: (i, 0)),   # x tile (f32, tiny K)
                wspec(w1.shape), wspec(b1.shape),
                wspec(w2.shape), wspec(b2.shape),
                wspec(w3.shape), wspec(b3.shape),
                wspec(w4.shape), wspec(b4.shape),
            ],
            out_specs=pl.BlockSpec((tile_m, pdg_count_p), lambda i: (i, 0)),
        ),
        compiler_params=compiler_params,
        cost_estimate=cost,
    )(x, w1, b1, w2, b2, w3, b3, w4, b4)

    if batch_p != batch or pdg_count_p != pdg_count:
        out = out[:batch, :pdg_count]
    return out


def init_params(key, pdg_embed_dim, pdg_count):
    """Deterministic synthetic parameters (same shapes as the nn.Linear stack)."""
    dims = [(pdg_embed_dim, H1), (H1, H2), (H2, H3), (H3, pdg_count)]
    params = {}
    for idx, (fan_in, fan_out) in enumerate(dims, start=1):
        key, kw, kb = jax.random.split(key, 3)
        bound = 1.0 / jnp.sqrt(fan_in)
        # Stored as [in, out] == PyTorch weight.T so the kernel does x @ W.
        params[f"w{idx}"] = jax.random.uniform(
            kw, (fan_in, fan_out), jnp.float32, -bound, bound)
        params[f"b{idx}"] = jax.random.uniform(
            kb, (1, fan_out), jnp.float32, -bound, bound)
    return params


def _reference_forward(x, p):
    h = jnp.tanh(x @ p["w1"] + p["b1"])
    h = jnp.tanh(h @ p["w2"] + p["b2"])
    h = jnp.tanh(h @ p["w3"] + p["b3"])
    return jnp.tanh(h @ p["w4"] + p["b4"])


if __name__ == "__main__":
    pdg_embed_dim = 16
    pdg_count = 130   # non-multiple-of-128: exercises lane padding / slice-off
    batch = 64        # small batch -> single grid step on every chip

    key = jax.random.PRNGKey(0)
    key, kx = jax.random.split(key)
    params = init_params(key, pdg_embed_dim, pdg_count)
    x = jax.random.normal(kx, (batch, pdg_embed_dim), jnp.float32)

    prepared, pc = prepare_params(params)        # one-time cast/pad, cacheable
    out = pdg_deembedder_forward(x, prepared, pc)
    out = jax.block_until_ready(out)

    ref = _reference_forward(x, params)
    assert out.shape == (batch, pdg_count), out.shape
    # Tolerance accounts for bf16 MXU operands and (on v6e/v7x) bf16 tanh.
    err = float(jnp.max(jnp.abs(out - ref)))
    assert err < 5e-2, f"mismatch vs reference (max abs err {err})"

    print("KERNEL_OK")
</pallas_src>

<mosaic_0001>
module attributes {stable_mosaic.version = 11 : i64} {
  func.func @kernel(%arg0: i32, %arg1: memref<64x16xf32, #tpu.memory_space<vmem>>, %arg2: memref<16x256xbf16, #tpu.memory_space<vmem>>, %arg3: memref<1x256xf32, #tpu.memory_space<vmem>>, %arg4: memref<256x512xbf16, #tpu.memory_space<vmem>>, %arg5: memref<1x512xf32, #tpu.memory_space<vmem>>, %arg6: memref<512x1024xbf16, #tpu.memory_space<vmem>>, %arg7: memref<1x1024xf32, #tpu.memory_space<vmem>>, %arg8: memref<1024x256xbf16, #tpu.memory_space<vmem>>, %arg9: memref<1x256xf32, #tpu.memory_space<vmem>>, %arg10: memref<64x256xf32, #tpu.memory_space<vmem>>) attributes {dimension_semantics = [#tpu.dimension_semantics<parallel>], iteration_bounds = array<i64: 1>, scalar_prefetch = 0 : i64, scratch_operands = 0 : i64, tpu.core_type = #tpu.core_type<tc>, window_params = [{transform_indices = @transform_0, window_bounds = array<i64: 64, 16>}, {pipeline_mode = #tpu.pipeline_mode<synchronous>, transform_indices = @transform_1, window_bounds = array<i64: 16, 256>}, {pipeline_mode = #tpu.pipeline_mode<synchronous>, transform_indices = @transform_2, window_bounds = array<i64: 1, 256>}, {pipeline_mode = #tpu.pipeline_mode<synchronous>, transform_indices = @transform_3, window_bounds = array<i64: 256, 512>}, {pipeline_mode = #tpu.pipeline_mode<synchronous>, transform_indices = @transform_4, window_bounds = array<i64: 1, 512>}, {pipeline_mode = #tpu.pipeline_mode<synchronous>, transform_indices = @transform_5, window_bounds = array<i64: 512, 1024>}, {pipeline_mode = #tpu.pipeline_mode<synchronous>, transform_indices = @transform_6, window_bounds = array<i64: 1, 1024>}, {pipeline_mode = #tpu.pipeline_mode<synchronous>, transform_indices = @transform_7, window_bounds = array<i64: 1024, 256>}, {pipeline_mode = #tpu.pipeline_mode<synchronous>, transform_indices = @transform_8, window_bounds = array<i64: 1, 256>}, {transform_indices = @transform_9, window_bounds = array<i64: 64, 256>}]} {
    %c0 = arith.constant 0 : index
    %c0_0 = arith.constant 0 : index
    %0 = vector.load %arg1[%c0, %c0_0] : memref<64x16xf32, #tpu.memory_space<vmem>>, vector<64x16xf32>
    %1 = arith.truncf %0 : vector<64x16xf32> to vector<64x16xbf16>
    %c0_1 = arith.constant 0 : index
    %c0_2 = arith.constant 0 : index
    %2 = vector.load %arg2[%c0_1, %c0_2] : memref<16x256xbf16, #tpu.memory_space<vmem>>, vector<16x256xbf16>
    %cst = arith.constant dense<0.000000e+00> : vector<64x256xf32>
    %3 = tpu.matmul %1, %2, %cst {dimension_numbers = #tpu.dot_dimension_numbers<[1], [0], [0], [1], [0, 0, 1, 1], [], []>} : vector<64x16xbf16>, vector<16x256xbf16>, vector<64x256xf32> -> vector<64x256xf32>
    %c0_3 = arith.constant 0 : index
    %c0_4 = arith.constant 0 : index
    %4 = vector.load %arg3[%c0_3, %c0_4] : memref<1x256xf32, #tpu.memory_space<vmem>>, vector<1x256xf32>
    %5 = vector.broadcast %4 : vector<1x256xf32> to vector<64x256xf32>
    %6 = arith.addf %3, %5 : vector<64x256xf32>
    %7 = arith.truncf %6 : vector<64x256xf32> to vector<64x256xbf16>
    %8 = math.tanh %7 : vector<64x256xbf16>
    %c0_5 = arith.constant 0 : index
    %c0_6 = arith.constant 0 : index
    %9 = vector.load %arg4[%c0_5, %c0_6] : memref<256x512xbf16, #tpu.memory_space<vmem>>, vector<256x512xbf16>
    %cst_7 = arith.constant dense<0.000000e+00> : vector<64x512xf32>
    %10 = tpu.matmul %8, %9, %cst_7 {dimension_numbers = #tpu.dot_dimension_numbers<[1], [0], [0], [1], [0, 0, 1, 1], [], []>} : vector<64x256xbf16>, vector<256x512xbf16>, vector<64x512xf32> -> vector<64x512xf32>
    %c0_8 = arith.constant 0 : index
    %c0_9 = arith.constant 0 : index
    %11 = vector.load %arg5[%c0_8, %c0_9] : memref<1x512xf32, #tpu.memory_space<vmem>>, vector<1x512xf32>
    %12 = vector.broadcast %11 : vector<1x512xf32> to vector<64x512xf32>
    %13 = arith.addf %10, %12 : vector<64x512xf32>
    %14 = arith.truncf %13 : vector<64x512xf32> to vector<64x512xbf16>
    %15 = math.tanh %14 : vector<64x512xbf16>
    %c0_10 = arith.constant 0 : index
    %c0_11 = arith.constant 0 : index
    %16 = vector.load %arg6[%c0_10, %c0_11] : memref<512x1024xbf16, #tpu.memory_space<vmem>>, vector<512x1024xbf16>
    %cst_12 = arith.constant dense<0.000000e+00> : vector<64x1024xf32>
    %17 = tpu.matmul %15, %16, %cst_12 {dimension_numbers = #tpu.dot_dimension_numbers<[1], [0], [0], [1], [0, 0, 1, 1], [], []>} : vector<64x512xbf16>, vector<512x1024xbf16>, vector<64x1024xf32> -> vector<64x1024xf32>
    %c0_13 = arith.constant 0 : index
    %c0_14 = arith.constant 0 : index
    %18 = vector.load %arg7[%c0_13, %c0_14] : memref<1x1024xf32, #tpu.memory_space<vmem>>, vector<1x1024xf32>
    %19 = vector.broadcast %18 : vector<1x1024xf32> to vector<64x1024xf32>
    %20 = arith.addf %17, %19 : vector<64x1024xf32>
    %21 = arith.truncf %20 : vector<64x1024xf32> to vector<64x1024xbf16>
    %22 = math.tanh %21 : vector<64x1024xbf16>
    %c0_15 = arith.constant 0 : index
    %c0_16 = arith.constant 0 : index
    %23 = vector.load %arg8[%c0_15, %c0_16] : memref<1024x256xbf16, #tpu.memory_space<vmem>>, vector<1024x256xbf16>
    %cst_17 = arith.constant dense<0.000000e+00> : vector<64x256xf32>
    %24 = tpu.matmul %22, %23, %cst_17 {dimension_numbers = #tpu.dot_dimension_numbers<[1], [0], [0], [1], [0, 0, 1, 1], [], []>} : vector<64x1024xbf16>, vector<1024x256xbf16>, vector<64x256xf32> -> vector<64x256xf32>
    %c0_18 = arith.constant 0 : index
    %c0_19 = arith.constant 0 : index
    %25 = vector.load %arg9[%c0_18, %c0_19] : memref<1x256xf32, #tpu.memory_space<vmem>>, vector<1x256xf32>
    %26 = vector.broadcast %25 : vector<1x256xf32> to vector<64x256xf32>
    %27 = arith.addf %24, %26 : vector<64x256xf32>
    %28 = arith.truncf %27 : vector<64x256xf32> to vector<64x256xbf16>
    %29 = math.tanh %28 : vector<64x256xbf16>
    %30 = arith.extf %29 : vector<64x256xbf16> to vector<64x256xf32>
    %c0_20 = arith.constant 0 : index
    %c0_21 = arith.constant 0 : index
    %31 = vector.load %arg10[%c0_20, %c0_21] : memref<64x256xf32, #tpu.memory_space<vmem>>, vector<64x256xf32>
    tpu.vector_store %arg10[%c0_20, %c0_21], %30 {strides = array<i32>} : memref<64x256xf32, #tpu.memory_space<vmem>>, vector<64x256xf32>,
    return
  }
  func.func @transform_0(%arg0: i32) -> (i32, i32) {
    %c0_i32 = arith.constant 0 : i32
    %c0_i32_0 = arith.constant 0 : i32
    return %arg0, %c0_i32 : i32, i32
  }
  func.func @transform_1(%arg0: i32) -> (i32, i32) {
    %c0_i32 = arith.constant 0 : i32
    %c0_i32_0 = arith.constant 0 : i32
    %c0_i32_1 = arith.constant 0 : i32
    return %c0_i32, %c0_i32_0 : i32, i32
  }
  func.func @transform_2(%arg0: i32) -> (i32, i32) {
    %c0_i32 = arith.constant 0 : i32
    %c0_i32_0 = arith.constant 0 : i32
    %c0_i32_1 = arith.constant 0 : i32
    return %c0_i32, %c0_i32_0 : i32, i32
  }
  func.func @transform_3(%arg0: i32) -> (i32, i32) {
    %c0_i32 = arith.constant 0 : i32
    %c0_i32_0 = arith.constant 0 : i32
    %c0_i32_1 = arith.constant 0 : i32
    return %c0_i32, %c0_i32_0 : i32, i32
  }
  func.func @transform_4(%arg0: i32) -> (i32, i32) {
    %c0_i32 = arith.constant 0 : i32
    %c0_i32_0 = arith.constant 0 : i32
    %c0_i32_1 = arith.constant 0 : i32
    return %c0_i32, %c0_i32_0 : i32, i32
  }
  func.func @transform_5(%arg0: i32) -> (i32, i32) {
    %c0_i32 = arith.constant 0 : i32
    %c0_i32_0 = arith.constant 0 : i32
    %c0_i32_1 = arith.constant 0 : i32
    return %c0_i32, %c0_i32_0 : i32, i32
  }
  func.func @transform_6(%arg0: i32) -> (i32, i32) {
    %c0_i32 = arith.constant 0 : i32
    %c0_i32_0 = arith.constant 0 : i32
    %c0_i32_1 = arith.constant 0 : i32
    return %c0_i32, %c0_i32_0 : i32, i32
  }
  func.func @transform_7(%arg0: i32) -> (i32, i32) {
    %c0_i32 = arith.constant 0 : i32
    %c0_i32_0 = arith.constant 0 : i32
    %c0_i32_1 = arith.constant 0 : i32
    return %c0_i32, %c0_i32_0 : i32, i32
  }
  func.func @transform_8(%arg0: i32) -> (i32, i32) {
    %c0_i32 = arith.constant 0 : i32
    %c0_i32_0 = arith.constant 0 : i32
    %c0_i32_1 = arith.constant 0 : i32
    return %c0_i32, %c0_i32_0 : i32, i32
  }
  func.func @transform_9(%arg0: i32) -> (i32, i32) {
    %c0_i32 = arith.constant 0 : i32
    %c0_i32_0 = arith.constant 0 : i32
    return %arg0, %c0_i32 : i32, i32
  }
}

</mosaic_0001>

<llo_original>
// kernel: tpu_custom_call.1
$region0: #{tpu_custom_call.1}
  #allocation0 [shape = 'u32[]', space=smem, size = 0x4, offset = 0x4, fixed_abs, tag = 'smem constant byte address 0x4 - core index']
  #allocation1 [shape = 'u32[144,128]{1,0:T(1,128)}', space=vmem, size = 0x12000, scoped, tag = 'internal scratch']
  %s0 = inlined_call_operand.vmem [shape: f32[64,16], index: 0, kind: input, shape index: {}]
  %s1 = inlined_call_operand.vmem [shape: bf16[16,256], index: 1, kind: input, shape index: {}]
  %s2 = inlined_call_operand.vmem [shape: f32[1,256], index: 2, kind: input, shape index: {}]
  %s3 = inlined_call_operand.hbm [shape: bf16[256,512], index: 3, kind: input, shape index: {}]
  %s4 = inlined_call_operand.vmem [shape: f32[1,512], index: 4, kind: input, shape index: {}]
  %s5 = inlined_call_operand.hbm [shape: bf16[512,1024], index: 5, kind: input, shape index: {}]
  %s6 = inlined_call_operand.vmem [shape: f32[1,1024], index: 6, kind: input, shape index: {}]
  %s7 = inlined_call_operand.hbm [shape: bf16[1024,256], index: 7, kind: input, shape index: {}]
  %s8 = inlined_call_operand.vmem [shape: f32[1,256], index: 8, kind: input, shape index: {}]
  %s9 = inlined_call_operand.hbm [shape: f32[64,256], index: 9, kind: output, shape index: {}]
  %s10 = sld [smem:[#allocation0]]
  $region58: #{tpu_custom_call.1} parent=0
    _
  %s12 = ssub.s32 1, %s10
  %s13 = scalar_select 0, %s12, %s10
  $region1: #{tpu_custom_call.1} parent=0
    #allocation2 [shape = 'u8[262144]{0}', space=vmem, size = 0x40000, scoped, tag = 'input window, operand 3, single buffered']
    #allocation3 [shape = 's32[1]{0}', space=sflag, size = 0x4, scoped, tag = 'scoped memory for tpu_custom_call.1']
    #allocation4 [shape = 's32[1]{0}', space=sflag, size = 0x4, scoped, tag = 'scoped memory for tpu_custom_call.1']
    #allocation5 [shape = 'u8[1048576]{0}', space=vmem, size = 0x100000, scoped, tag = 'input window, operand 5, single buffered']
    #allocation6 [shape = 's32[1]{0}', space=sflag, size = 0x4, scoped, tag = 'scoped memory for tpu_custom_call.1']
    #allocation7 [shape = 'u8[524288]{0}', space=vmem, size = 0x80000, scoped, tag = 'input window, operand 7, single buffered']
    #allocation8 [shape = 'u8[65536]{0}', space=vmem, size = 0x10000, scoped, tag = 'output window, operand 0, single buffered']
    %14 = vsyncpa [#allocation3], 0
    %15 = vsyncpa [#allocation6], 0
    %16 = vsyncpa [#allocation4], 0
    // Predicated region
    $region2: #{tpu_custom_call.1} parent=1 // pred_check
      _
    $region3: #{tpu_custom_call.1} parent=1 // pred_check_branch
      %18 = sbr.rel (0) target = $region5
    $region4: #{tpu_custom_call.1} parent=1 // pred_region
      _
    $region5: #{tpu_custom_call.1} parent=1 // pred_fallthru
      _
    // Predicated region
    $region6: #{tpu_custom_call.1} parent=1 // pred_check
      _
    $region7: #{tpu_custom_call.1} parent=1 // pred_check_branch
      %20 = sbr.rel (0) target = $region9
    $region8: #{tpu_custom_call.1} parent=1 // pred_region
      _
    $region9: #{tpu_custom_call.1} parent=1 // pred_fallthru
      _
    // Predicated region
    $region10: #{tpu_custom_call.1} parent=1 // pred_check
      _
    $region11: #{tpu_custom_call.1} parent=1 // pred_check_branch
      %22 = sbr.rel (0) target = $region13
    $region12: #{tpu_custom_call.1} parent=1 // pred_region
      _
    $region13: #{tpu_custom_call.1} parent=1 // pred_fallthru
      _
    // Predicated region
    $region14: #{tpu_custom_call.1} parent=1 // pred_check
      _
    $region15: #{tpu_custom_call.1} parent=1 // pred_check_branch
      %24 = sbr.rel (0) target = $region17
    $region16: #{tpu_custom_call.1} parent=1 // pred_region
      %s26 = ssub.s32 8192, 8192
      %27 = vsyncadd [#allocation3], %s26
      %s28 = sshll.u32 [#allocation2], 4
      %s29 = int_to_ptr.vmem [resolvable:$true] %s28
      %34 = dma.hbm_to_vmem [thread:$0]  %s3, 8192, %s29, [#allocation3], 256, 256, 16
    $region17: #{tpu_custom_call.1} parent=1 // pred_fallthru
      _
    // Predicated region
    $region18: #{tpu_custom_call.1} parent=1 // pred_check
      _
    $region19: #{tpu_custom_call.1} parent=1 // pred_check_branch
      %36 = sbr.rel (0) target = $region21
    $region20: #{tpu_custom_call.1} parent=1 // pred_region
      _
    $region21: #{tpu_custom_call.1} parent=1 // pred_fallthru
      _
    // Predicated region
    $region22: #{tpu_custom_call.1} parent=1 // pred_check
      _
    $region23: #{tpu_custom_call.1} parent=1 // pred_check_branch
      %38 = sbr.rel (0) target = $region25
    $region24: #{tpu_custom_call.1} parent=1 // pred_region
      %s40 = ssub.s32 32768, 32768
      %41 = vsyncadd [#allocation6], %s40
      %s42 = sshll.u32 [#allocation5], 4
      %s43 = int_to_ptr.vmem [resolvable:$true] %s42
      %48 = dma.hbm_to_vmem [thread:$0]  %s5, 32768, %s43, [#allocation6], 512, 512, 32
    $region25: #{tpu_custom_call.1} parent=1 // pred_fallthru
      _
    // Predicated region
    $region26: #{tpu_custom_call.1} parent=1 // pred_check
      _
    $region27: #{tpu_custom_call.1} parent=1 // pred_check_branch
      %50 = sbr.rel (0) target = $region29
    $region28: #{tpu_custom_call.1} parent=1 // pred_region
      _
    $region29: #{tpu_custom_call.1} parent=1 // pred_fallthru
      _
    // Predicated region
    $region30: #{tpu_custom_call.1} parent=1 // pred_check
      _
    $region31: #{tpu_custom_call.1} parent=1 // pred_check_branch
      %52 = sbr.rel (0) target = $region33
    $region32: #{tpu_custom_call.1} parent=1 // pred_region
      %s54 = ssub.s32 16384, 16384
      %55 = vsyncadd [#allocation6], %s54
      %s56 = sshll.u32 [#allocation7], 4
      %s57 = int_to_ptr.vmem [resolvable:$true] %s56
      %62 = dma.hbm_to_vmem [thread:$0]  %s7, 16384, %s57, [#allocation6], 128, 128, 8
    $region33: #{tpu_custom_call.1} parent=1 // pred_fallthru
      _
    // Predicated region
    $region34: #{tpu_custom_call.1} parent=1 // pred_check
      _
    $region35: #{tpu_custom_call.1} parent=1 // pred_check_branch
      %64 = sbr.rel (0) target = $region37
    $region36: #{tpu_custom_call.1} parent=1 // pred_region
      _
    $region37: #{tpu_custom_call.1} parent=1 // pred_fallthru
      _
    // Predicated region
    $region38: #{tpu_custom_call.1} parent=1 // pred_check
      _
    $region39: #{tpu_custom_call.1} parent=1 // pred_check_branch
      %66 = sbr.rel (0) target = $region41
    $region40: #{tpu_custom_call.1} parent=1 // pred_region
      %67 = dma.done [#allocation3], 8192
    $region41: #{tpu_custom_call.1} parent=1 // pred_fallthru
      _
    // Predicated region
    $region42: #{tpu_custom_call.1} parent=1 // pred_check
      _
    $region43: #{tpu_custom_call.1} parent=1 // pred_check_branch
      %69 = sbr.rel (0) target = $region45
    $region44: #{tpu_custom_call.1} parent=1 // pred_region
      %70 = dma.done [#allocation6], 32768
    $region45: #{tpu_custom_call.1} parent=1 // pred_fallthru
      _
    // Predicated region
    $region46: #{tpu_custom_call.1} parent=1 // pred_check
      _
    $region47: #{tpu_custom_call.1} parent=1 // pred_check_branch
      %72 = sbr.rel (0) target = $region49
    $region48: #{tpu_custom_call.1} parent=1 // pred_region
      %73 = dma.done [#allocation6], 16384
    $region49: #{tpu_custom_call.1} parent=1 // pred_fallthru
      _
    %v75 = vld [vmem:[%s0] sm:$0xff]
    %v76 = vld [vmem:[%s0 + $0x8] sm:$0xff]
    %v77 = vld [vmem:[%s0 + $0x10] sm:$0xff]
    %v78 = vld [vmem:[%s0 + $0x18] sm:$0xff]
    %v79 = vld [vmem:[%s0 + $0x20] sm:$0xff]
    %v80 = vld [vmem:[%s0 + $0x28] sm:$0xff]
    %v81 = vld [vmem:[%s0 + $0x30] sm:$0xff]
    %v82 = vld [vmem:[%s0 + $0x38] sm:$0xff]
    %v83 = vpack.c.bf16 %v76, %v75
    %v84 = vpack.c.bf16 %v78, %v77
    %v85 = vpack.c.bf16 %v80, %v79
    %v86 = vpack.c.bf16 %v82, %v81
    %v87 = vld [vmem:[%s1] sm:$0xff]
    %v88 = vld [vmem:[%s1 + $0x8] sm:$0xff]
    %v89 = vld [vmem:[%s2] sm:$0x3]
    %v91 = vlaneseq
    %v92 = vshrl.u32 %v91, 7
    %v93 = vsub.s32 0, %v92
    %v94 = vrot.slane %v89, %v93
    %v95 = vlaneseq
    %v96 = vshrl.u32 %v95, 7
    %v97 = vsub.s32 1, %v96
    %v98 = vrot.slane %v89, %v97
    %v103 = vunpack.c.l.b16 %v87
    %v104 = vunpack.c.h.b16 %v87
    %v105 = vunpack.c.l.b16 %v88
    %v106 = vunpack.c.h.b16 %v88
    %v107 = vpack.c.b16 %v105, %v103
    %v108 = vpack.c.b16 %v106, %v104
    %vm111 = vcmask 130048
    %v113 = vsel %vm111, %v83, 0
    %v116 = vsel %vm111, %v84, 0
    %v119 = vsel %vm111, %v85, 0
    %v122 = vsel %vm111, %v86, 0
    %124 = vmatprep.subr.bf16.mxu0 %v108
    %125 = vmatpush1.bf16.msra.mxu0 %v107
    %126 = vmatprep.subr.bf16.mxu0 0
    %127 = vmatpush1.bf16.msra.mxu0 0
    %128 = vmatprep.subr.bf16.mxu0 0
    %129 = vmatpush1.bf16.msra.mxu0 0
    %130 = vmatprep.subr.bf16.mxu0 0
    %131 = vmatpush1.bf16.msra.mxu0 0
    %132 = vmatprep.subr.bf16.mxu0 0
    %133 = vmatpush1.bf16.msra.mxu0 0
    %134 = vmatprep.subr.bf16.mxu0 0
    %135 = vmatpush1.bf16.msra.mxu0 0
    %136 = vmatprep.subr.bf16.mxu0 0
    %137 = vmatpush1.bf16.msra.mxu0 0
    %138 = vmatprep.subr.bf16.mxu0 0
    %139 = vmatpush1.bf16.msra.mxu0 0
    %140 = vmatprep.subr.bf16.mxu0 0
    %141 = vmatpush1.bf16.msra.mxu0 0
    %142 = vmatprep.subr.bf16.mxu0 0
    %143 = vmatpush1.bf16.msra.mxu0 0
    %144 = vmatprep.subr.bf16.mxu0 0
    %145 = vmatpush1.bf16.msra.mxu0 0
    %146 = vmatprep.subr.bf16.mxu0 0
    %147 = vmatpush1.bf16.msra.mxu0 0
    %148 = vmatprep.subr.bf16.mxu0 0
    %149 = vmatpush1.bf16.msra.mxu0 0
    %150 = vmatprep.subr.bf16.mxu0 0
    %151 = vmatpush1.bf16.msra.mxu0 0
    %152 = vmatprep.subr.bf16.mxu0 0
    %153 = vmatpush1.bf16.msra.mxu0 0
    %154 = vmatprep.subr.bf16.mxu0 0
    %155 = vmatpush1.bf16.msra.mxu0 0
    %156 = vmatprep.mubr.bf16.mxu0 0
    %157 = vmatmul.mubr.bf16.gmra.mrb[0].mxu0 %v113
    %v158 = vpop.f32.mrb[0].mxu0
    %v159 = vadd.f32 %v94, %v158
    %v160 = vpop.f32.mrb[0].mxu0
    %v161 = vadd.f32 %v98, %v160
    %v162 = vpop.f32.mrb[0].mxu0
    %v163 = vadd.f32 %v94, %v162
    %v164 = vpop.f32.mrb[0].mxu0
    %v165 = vadd.f32 %v98, %v164
    %166 = vmatprep.mubr.bf16.mxu0 0
    %167 = vmatmul.mubr.bf16.gmra.mrb[0].mxu0 %v116
    %v168 = vpop.f32.mrb[0].mxu0
    %v169 = vadd.f32 %v94, %v168
    %v170 = vpop.f32.mrb[0].mxu0
    %v171 = vadd.f32 %v98, %v170
    %v172 = vpop.f32.mrb[0].mxu0
    %v173 = vadd.f32 %v94, %v172
    %v174 = vpop.f32.mrb[0].mxu0
    %v175 = vadd.f32 %v98, %v174
    %176 = vmatprep.mubr.bf16.mxu0 0
    %177 = vmatmul.mubr.bf16.gmra.mrb[0].mxu0 %v119
    %v178 = vpop.f32.mrb[0].mxu0
    %v179 = vadd.f32 %v94, %v178
    %v180 = vpop.f32.mrb[0].mxu0
    %v181 = vadd.f32 %v98, %v180
    %v182 = vpop.f32.mrb[0].mxu0
    %v183 = vadd.f32 %v94, %v182
    %v184 = vpop.f32.mrb[0].mxu0
    %v185 = vadd.f32 %v98, %v184
    %186 = vmatprep.mubr.bf16.mxu0 0
    %187 = vmatmul.mubr.bf16.gmra.mrb[0].mxu0 %v122
    %v188 = vpop.f32.mrb[0].mxu0
    %v189 = vadd.f32 %v94, %v188
    %v190 = vpop.f32.mrb[0].mxu0
    %v191 = vadd.f32 %v98, %v190
    %v192 = vpop.f32.mrb[0].mxu0
    %v193 = vadd.f32 %v94, %v192
    %v194 = vpop.f32.mrb[0].mxu0
    %v195 = vadd.f32 %v98, %v194
    %196 = vdwg.mxu0
    %v197 = vpack.c.bf16 %v163, %v159
    %v198 = vpack.c.bf16 %v165, %v161
    %v199 = vpack.c.bf16 %v173, %v169
    %v200 = vpack.c.bf16 %v175, %v171
    %v201 = vpack.c.bf16 %v183, %v179
    %v202 = vpack.c.bf16 %v185, %v181
    %v203 = vpack.c.bf16 %v193, %v189
    %v204 = vpack.c.bf16 %v195, %v191
    %v205 = vtanh.bf16.pop %v197
    %v206 = vtanh.bf16.pop %v198
    %v207 = vtanh.bf16.pop %v199
    %v208 = vtanh.bf16.pop %v200
    %v209 = vtanh.bf16.pop %v201
    %v210 = vtanh.bf16.pop %v202
    %v211 = vtanh.bf16.pop %v203
    %v212 = vtanh.bf16.pop %v204
    %v213 = vld [vmem:[#allocation2] sm:$0xff]
    %v214 = vld [vmem:[#allocation2 + $0x8] sm:$0xff]
    %v215 = vld [vmem:[#allocation2 + $0x10] sm:$0xff]
    %v216 = vld [vmem:[#allocation2 + $0x18] sm:$0xff]
    %v217 = vld [vmem:[#allocation2 + $0x20] sm:$0xff]
    %v218 = vld [vmem:[#allocation2 + $0x28] sm:$0xff]
    %v219 = vld [vmem:[#allocation2 + $0x30] sm:$0xff]
    %v220 = vld [vmem:[#allocation2 + $0x38] sm:$0xff]
    %v221 = vld [vmem:[#allocation2 + $0x40] sm:$0xff]
    %v222 = vld [vmem:[#allocation2 + $0x48] sm:$0xff]
    %v223 = vld [vmem:[#allocation2 + $0x50] sm:$0xff]
    %v224 = vld [vmem:[#allocation2 + $0x58] sm:$0xff]
    %v225 = vld [vmem:[#allocation2 + $0x60] sm:$0xff]
    %v226 = vld [vmem:[#allocation2 + $0x68] sm:$0xff]
    %v227 = vld [vmem:[#allocation2 + $0x70] sm:$0xff]
    %v228 = vld [vmem:[#allocation2 + $0x78] sm:$0xff]
    %v229 = vld [vmem:[#allocation2 + $0x80] sm:$0xff]
    %v230 = vld [vmem:[#allocation2 + $0x88] sm:$0xff]
    %v231 = vld [vmem:[#allocation2 + $0x90] sm:$0xff]
    %v232 = vld [vmem:[#allocation2 + $0x98] sm:$0xff]
    %v233 = vld [vmem:[#allocation2 + $0xa0] sm:$0xff]
    %v234 = vld [vmem:[#allocation2 + $0xa8] sm:$0xff]
    %v235 = vld [vmem:[#allocation2 + $0xb0] sm:$0xff]
    %v236 = vld [vmem:[#allocation2 + $0xb8] sm:$0xff]
    %v237 = vld [vmem:[#allocation2 + $0xc0] sm:$0xff]
    %v238 = vld [vmem:[#allocation2 + $0xc8] sm:$0xff]
    %v239 = vld [vmem:[#allocation2 + $0xd0] sm:$0xff]
    %v240 = vld [vmem:[#allocation2 + $0xd8] sm:$0xff]
    %v241 = vld [vmem:[#allocation2 + $0xe0] sm:$0xff]
    %v242 = vld [vmem:[#allocation2 + $0xe8] sm:$0xff]
    %v243 = vld [vmem:[#allocation2 + $0xf0] sm:$0xff]
    %v244 = vld [vmem:[#allocation2 + $0xf8] sm:$0xff]
    %v245 = vld [vmem:[#allocation2 + $0x100] sm:$0xff]
    %v246 = vld [vmem:[#allocation2 + $0x108] sm:$0xff]
    %v247 = vld [vmem:[#allocation2 + $0x110] sm:$0xff]
    %v248 = vld [vmem:[#allocation2 + $0x118] sm:$0xff]
    %v249 = vld [vmem:[#allocation2 + $0x120] sm:$0xff]
    %v250 = vld [vmem:[#allocation2 + $0x128] sm:$0xff]
    %v251 = vld [vmem:[#allocation2 + $0x130] sm:$0xff]
    %v252 = vld [vmem:[#allocation2 + $0x138] sm:$0xff]
    %v253 = vld [vmem:[#allocation2 + $0x140] sm:$0xff]
    %v254 = vld [vmem:[#allocation2 + $0x148] sm:$0xff]
    %v255 = vld [vmem:[#allocation2 + $0x150] sm:$0xff]
    %v256 = vld [vmem:[#allocation2 + $0x158] sm:$0xff]
    %v257 = vld [vmem:[#allocation2 + $0x160] sm:$0xff]
    %v258 = vld [vmem:[#allocation2 + $0x168] sm:$0xff]
    %v259 = vld [vmem:[#allocation2 + $0x170] sm:$0xff]
    %v260 = vld [vmem:[#allocation2 + $0x178] sm:$0xff]
    %v261 = vld [vmem:[#allocation2 + $0x180] sm:$0xff]
    %v262 = vld [vmem:[#allocation2 + $0x188] sm:$0xff]
    %v263 = vld [vmem:[#allocation2 + $0x190] sm:$0xff]
    %v264 = vld [vmem:[#allocation2 + $0x198] sm:$0xff]
    %v265 = vld [vmem:[#allocation2 + $0x1a0] sm:$0xff]
    %v266 = vld [vmem:[#allocation2 + $0x1a8] sm:$0xff]
    %v267 = vld [vmem:[#allocation2 + $0x1b0] sm:$0xff]
    %v268 = vld [vmem:[#allocation2 + $0x1b8] sm:$0xff]
    %v269 = vld [vmem:[#allocation2 + $0x1c0] sm:$0xff]
    %v270 = vld [vmem:[#allocation2 + $0x1c8] sm:$0xff]
    %v271 = vld [vmem:[#allocation2 + $0x1d0] sm:$0xff]
    %v272 = vld [vmem:[#allocation2 + $0x1d8] sm:$0xff]
    %v273 = vld [vmem:[#allocation2 + $0x1e0] sm:$0xff]
    %v274 = vld [vmem:[#allocation2 + $0x1e8] sm:$0xff]
    %v275 = vld [vmem:[#allocation2 + $0x1f0] sm:$0xff]
    %v276 = vld [vmem:[#allocation2 + $0x1f8] sm:$0xff]
    %v277 = vld [vmem:[%s4] sm:$0xf]
    %v279 = vlaneseq
    %v280 = vshrl.u32 %v279, 7
    %v281 = vsub.s32 0, %v280
    %v282 = vrot.slane %v277, %v281
    %v283 = vlaneseq
    %v284 = vshrl.u32 %v283, 7
    %v285 = vsub.s32 1, %v284
    %v286 = vrot.slane %v277, %v285
    %v287 = vlaneseq
    %v288 = vshrl.u32 %v287, 7
    %v289 = vsub.s32 2, %v288
    %v290 = vrot.slane %v277, %v289
    %v291 = vlaneseq
    %v292 = vshrl.u32 %v291, 7
    %v293 = vsub.s32 3, %v292
    %v294 = vrot.slane %v277, %v293
    %v363 = vunpack.c.l.b16 %v213
    %v364 = vunpack.c.h.b16 %v213
    %v365 = vunpack.c.l.b16 %v214
    %v366 = vunpack.c.h.b16 %v214
    %v367 = vunpack.c.l.b16 %v215
    %v368 = vunpack.c.h.b16 %v215
    %v369 = vunpack.c.l.b16 %v216
    %v370 = vunpack.c.h.b16 %v216
    %v371 = vunpack.c.l.b16 %v217
    %v372 = vunpack.c.h.b16 %v217
    %v373 = vunpack.c.l.b16 %v218
    %v374 = vunpack.c.h.b16 %v218
    %v375 = vunpack.c.l.b16 %v219
    %v376 = vunpack.c.h.b16 %v219
    %v377 = vunpack.c.l.b16 %v220
    %v378 = vunpack.c.h.b16 %v220
    %v379 = vunpack.c.l.b16 %v221
    %v380 = vunpack.c.h.b16 %v221
    %v381 = vunpack.c.l.b16 %v222
    %v382 = vunpack.c.h.b16 %v222
    %v383 = vunpack.c.l.b16 %v223
    %v384 = vunpack.c.h.b16 %v223
    %v385 = vunpack.c.l.b16 %v224
    %v386 = vunpack.c.h.b16 %v224
    %v387 = vunpack.c.l.b16 %v225
    %v388 = vunpack.c.h.b16 %v225
    %v389 = vunpack.c.l.b16 %v226
    %v390 = vunpack.c.h.b16 %v226
    %v391 = vunpack.c.l.b16 %v227
    %v392 = vunpack.c.h.b16 %v227
    %v393 = vunpack.c.l.b16 %v228
    %v394 = vunpack.c.h.b16 %v228
    %v395 = vunpack.c.l.b16 %v229
    %v396 = vunpack.c.h.b16 %v229
    %v397 = vunpack.c.l.b16 %v230
    %v398 = vunpack.c.h.b16 %v230
    %v399 = vunpack.c.l.b16 %v231
    %v400 = vunpack.c.h.b16 %v231
    %v401 = vunpack.c.l.b16 %v232
    %v402 = vunpack.c.h.b16 %v232
    %v403 = vunpack.c.l.b16 %v233
    %v404 = vunpack.c.h.b16 %v233
    %v405 = vunpack.c.l.b16 %v234
    %v406 = vunpack.c.h.b16 %v234
    %v407 = vunpack.c.l.b16 %v235
    %v408 = vunpack.c.h.b16 %v235
    %v409 = vunpack.c.l.b16 %v236
    %v410 = vunpack.c.h.b16 %v236
    %v411 = vunpack.c.l.b16 %v237
    %v412 = vunpack.c.h.b16 %v237
    %v413 = vunpack.c.l.b16 %v238
    %v414 = vunpack.c.h.b16 %v238
    %v415 = vunpack.c.l.b16 %v239
    %v416 = vunpack.c.h.b16 %v239
    %v417 = vunpack.c.l.b16 %v240
    %v418 = vunpack.c.h.b16 %v240
    %v419 = vunpack.c.l.b16 %v241
    %v420 = vunpack.c.h.b16 %v241
    %v421 = vunpack.c.l.b16 %v242
    %v422 = vunpack.c.h.b16 %v242
    %v423 = vunpack.c.l.b16 %v243
    %v424 = vunpack.c.h.b16 %v243
    %v425 = vunpack.c.l.b16 %v244
    %v426 = vunpack.c.h.b16 %v244
    %v427 = vunpack.c.l.b16 %v245
    %v428 = vunpack.c.h.b16 %v245
    %v429 = vunpack.c.l.b16 %v246
    %v430 = vunpack.c.h.b16 %v246
    %v431 = vunpack.c.l.b16 %v247
    %v432 = vunpack.c.h.b16 %v247
    %v433 = vunpack.c.l.b16 %v248
    %v434 = vunpack.c.h.b16 %v248
    %v435 = vunpack.c.l.b16 %v249
    %v436 = vunpack.c.h.b16 %v249
    %v437 = vunpack.c.l.b16 %v250
    %v438 = vunpack.c.h.b16 %v250
    %v439 = vunpack.c.l.b16 %v251
    %v440 = vunpack.c.h.b16 %v251
    %v441 = vunpack.c.l.b16 %v252
    %v442 = vunpack.c.h.b16 %v252
    %v443 = vunpack.c.l.b16 %v253
    %v444 = vunpack.c.h.b16 %v253
    %v445 = vunpack.c.l.b16 %v254
    %v446 = vunpack.c.h.b16 %v254
    %v447 = vunpack.c.l.b16 %v255
    %v448 = vunpack.c.h.b16 %v255
    %v449 = vunpack.c.l.b16 %v256
    %v450 = vunpack.c.h.b16 %v256
    %v451 = vunpack.c.l.b16 %v257
    %v452 = vunpack.c.h.b16 %v257
    %v453 = vunpack.c.l.b16 %v258
    %v454 = vunpack.c.h.b16 %v258
    %v455 = vunpack.c.l.b16 %v259
    %v456 = vunpack.c.h.b16 %v259
    %v457 = vunpack.c.l.b16 %v260
    %v458 = vunpack.c.h.b16 %v260
    %v459 = vunpack.c.l.b16 %v261
    %v460 = vunpack.c.h.b16 %v261
    %v461 = vunpack.c.l.b16 %v262
    %v462 = vunpack.c.h.b16 %v262
    %v463 = vunpack.c.l.b16 %v263
    %v464 = vunpack.c.h.b16 %v263
    %v465 = vunpack.c.l.b16 %v264
    %v466 = vunpack.c.h.b16 %v264
    %v467 = vunpack.c.l.b16 %v265
    %v468 = vunpack.c.h.b16 %v265
    %v469 = vunpack.c.l.b16 %v266
    %v470 = vunpack.c.h.b16 %v266
    %v471 = vunpack.c.l.b16 %v267
    %v472 = vunpack.c.h.b16 %v267
    %v473 = vunpack.c.l.b16 %v268
    %v474 = vunpack.c.h.b16 %v268
    %v475 = vunpack.c.l.b16 %v269
    %v476 = vunpack.c.h.b16 %v269
    %v477 = vunpack.c.l.b16 %v270
    %v478 = vunpack.c.h.b16 %v270
    %v479 = vunpack.c.l.b16 %v271
    %v480 = vunpack.c.h.b16 %v271
    %v481 = vunpack.c.l.b16 %v272
    %v482 = vunpack.c.h.b16 %v272
    %v483 = vunpack.c.l.b16 %v273
    %v484 = vunpack.c.h.b16 %v273
    %v485 = vunpack.c.l.b16 %v274
    %v486 = vunpack.c.h.b16 %v274
    %v487 = vunpack.c.l.b16 %v275
    %v488 = vunpack.c.h.b16 %v275
    %v489 = vunpack.c.l.b16 %v276
    %v490 = vunpack.c.h.b16 %v276
    %v491 = vpack.c.b16 %v367, %v363
    %v492 = vpack.c.b16 %v368, %v364
    %v493 = vpack.c.b16 %v369, %v365
    %v494 = vpack.c.b16 %v370, %v366
    %v495 = vpack.c.b16 %v375, %v371
    %v496 = vpack.c.b16 %v376, %v372
    %v497 = vpack.c.b16 %v377, %v373
    %v498 = vpack.c.b16 %v378, %v374
    %v499 = vpack.c.b16 %v383, %v379
    %v500 = vpack.c.b16 %v384, %v380
    %v501 = vpack.c.b16 %v385, %v381
    %v502 = vpack.c.b16 %v386, %v382
    %v503 = vpack.c.b16 %v391, %v387
    %v504 = vpack.c.b16 %v392, %v388
    %v505 = vpack.c.b16 %v393, %v389
    %v506 = vpack.c.b16 %v394, %v390
    %v507 = vpack.c.b16 %v399, %v395
    %v508 = vpack.c.b16 %v400, %v396
    %v509 = vpack.c.b16 %v401, %v397
    %v510 = vpack.c.b16 %v402, %v398
    %v511 = vpack.c.b16 %v407, %v403
    %v512 = vpack.c.b16 %v408, %v404
    %v513 = vpack.c.b16 %v409, %v405
    %v514 = vpack.c.b16 %v410, %v406
    %v515 = vpack.c.b16 %v415, %v411
    %v516 = vpack.c.b16 %v416, %v412
    %v517 = vpack.c.b16 %v417, %v413
    %v518 = vpack.c.b16 %v418, %v414
    %v519 = vpack.c.b16 %v423, %v419
    %v520 = vpack.c.b16 %v424, %v420
    %v521 = vpack.c.b16 %v425, %v421
    %v522 = vpack.c.b16 %v426, %v422
    %v523 = vpack.c.b16 %v431, %v427
    %v524 = vpack.c.b16 %v432, %v428
    %v525 = vpack.c.b16 %v433, %v429
    %v526 = vpack.c.b16 %v434, %v430
    %v527 = vpack.c.b16 %v439, %v435
    %v528 = vpack.c.b16 %v440, %v436
    %v529 = vpack.c.b16 %v441, %v437
    %v530 = vpack.c.b16 %v442, %v438
    %v531 = vpack.c.b16 %v447, %v443
    %v532 = vpack.c.b16 %v448, %v444
    %v533 = vpack.c.b16 %v449, %v445
    %v534 = vpack.c.b16 %v450, %v446
    %v535 = vpack.c.b16 %v455, %v451
    %v536 = vpack.c.b16 %v456, %v452
    %v537 = vpack.c.b16 %v457, %v453
    %v538 = vpack.c.b16 %v458, %v454
    %v539 = vpack.c.b16 %v463, %v459
    %v540 = vpack.c.b16 %v464, %v460
    %v541 = vpack.c.b16 %v465, %v461
    %v542 = vpack.c.b16 %v466, %v462
    %v543 = vpack.c.b16 %v471, %v467
    %v544 = vpack.c.b16 %v472, %v468
    %v545 = vpack.c.b16 %v473, %v469
    %v546 = vpack.c.b16 %v474, %v470
    %v547 = vpack.c.b16 %v479, %v475
    %v548 = vpack.c.b16 %v480, %v476
    %v549 = vpack.c.b16 %v481, %v477
    %v550 = vpack.c.b16 %v482, %v478
    %v551 = vpack.c.b16 %v487, %v483
    %v552 = vpack.c.b16 %v488, %v484
    %v553 = vpack.c.b16 %v489, %v485
    %v554 = vpack.c.b16 %v490, %v486
    %619 = vmatprep.subr.bf16.mxu0 %v492
    %620 = vmatpush1.bf16.msra.mxu0 %v491
    %621 = vmatprep.subr.bf16.mxu0 %v496
    %622 = vmatpush1.bf16.msra.mxu0 %v495
    %623 = vmatprep.subr.bf16.mxu0 %v500
    %624 = vmatpush1.bf16.msra.mxu0 %v499
    %625 = vmatprep.subr.bf16.mxu0 %v504
    %626 = vmatpush1.bf16.msra.mxu0 %v503
    %627 = vmatprep.subr.bf16.mxu0 %v508
    %628 = vmatpush1.bf16.msra.mxu0 %v507
    %629 = vmatprep.subr.bf16.mxu0 %v512
    %630 = vmatpush1.bf16.msra.mxu0 %v511
    %631 = vmatprep.subr.bf16.mxu0 %v516
    %632 = vmatpush1.bf16.msra.mxu0 %v515
    %633 = vmatprep.subr.bf16.mxu0 %v520
    %634 = vmatpush1.bf16.msra.mxu0 %v519
    %635 = vmatprep.subr.bf16.mxu0 %v524
    %636 = vmatpush1.bf16.msra.mxu0 %v523
    %637 = vmatprep.subr.bf16.mxu0 %v528
    %638 = vmatpush1.bf16.msra.mxu0 %v527
    %639 = vmatprep.subr.bf16.mxu0 %v532
    %640 = vmatpush1.bf16.msra.mxu0 %v531
    %641 = vmatprep.subr.bf16.mxu0 %v536
    %642 = vmatpush1.bf16.msra.mxu0 %v535
    %643 = vmatprep.subr.bf16.mxu0 %v540
    %644 = vmatpush1.bf16.msra.mxu0 %v539
    %645 = vmatprep.subr.bf16.mxu0 %v544
    %646 = vmatpush1.bf16.msra.mxu0 %v543
    %647 = vmatprep.subr.bf16.mxu0 %v548
    %648 = vmatpush1.bf16.msra.mxu0 %v547
    %649 = vmatprep.subr.bf16.mxu0 %v552
    %650 = vmatpush1.bf16.msra.mxu0 %v551
    %651 = vmatprep.mubr.bf16.mxu0 %v206
    %652 = vmatmul.mubr.bf16.gmra.mrb[0].mxu0 %v205
    %v653 = vpop.f32.mrb[0].mxu0
    %v654 = vadd.f32 %v282, %v653
    %v655 = vpop.f32.mrb[0].mxu0
    %v656 = vadd.f32 %v286, %v655
    %v657 = vpop.f32.mrb[0].mxu0
    %v658 = vadd.f32 %v282, %v657
    %v659 = vpop.f32.mrb[0].mxu0
    %v660 = vadd.f32 %v286, %v659
    %661 = vmatprep.mubr.bf16.mxu0 %v208
    %662 = vmatmul.mubr.bf16.gmra.mrb[0].mxu0 %v207
    %v663 = vpop.f32.mrb[0].mxu0
    %v664 = vadd.f32 %v282, %v663
    %v665 = vpop.f32.mrb[0].mxu0
    %v666 = vadd.f32 %v286, %v665
    %v667 = vpop.f32.mrb[0].mxu0
    %v668 = vadd.f32 %v282, %v667
    %v669 = vpop.f32.mrb[0].mxu0
    %v670 = vadd.f32 %v286, %v669
    %671 = vmatprep.mubr.bf16.mxu0 %v210
    %672 = vmatmul.mubr.bf16.gmra.mrb[0].mxu0 %v209
    %v673 = vpop.f32.mrb[0].mxu0
    %v674 = vadd.f32 %v282, %v673
    %v675 = vpop.f32.mrb[0].mxu0
    %v676 = vadd.f32 %v286, %v675
    %v677 = vpop.f32.mrb[0].mxu0
    %v678 = vadd.f32 %v282, %v677
    %v679 = vpop.f32.mrb[0].mxu0
    %v680 = vadd.f32 %v286, %v679
    %681 = vmatprep.mubr.bf16.mxu0 %v212
    %682 = vmatmul.mubr.bf16.gmra.mrb[0].mxu0 %v211
    %v683 = vpop.f32.mrb[0].mxu0
    %v684 = vadd.f32 %v282, %v683
    %v685 = vpop.f32.mrb[0].mxu0
    %v686 = vadd.f32 %v286, %v685
    %v687 = vpop.f32.mrb[0].mxu0
    %v688 = vadd.f32 %v282, %v687
    %v689 = vpop.f32.mrb[0].mxu0
    %v690 = vadd.f32 %v286, %v689
    %691 = vdwg.mxu0
    %692 = vmatprep.subr.bf16.mxu0 %v494
    %693 = vmatpush1.bf16.msra.mxu0 %v493
    %694 = vmatprep.subr.bf16.mxu0 %v498
    %695 = vmatpush1.bf16.msra.mxu0 %v497
    %696 = vmatprep.subr.bf16.mxu0 %v502
    %697 = vmatpush1.bf16.msra.mxu0 %v501
    %698 = vmatprep.subr.bf16.mxu0 %v506
    %699 = vmatpush1.bf16.msra.mxu0 %v505
    %700 = vmatprep.subr.bf16.mxu0 %v510
    %701 = vmatpush1.bf16.msra.mxu0 %v509
    %702 = vmatprep.subr.bf16.mxu0 %v514
    %703 = vmatpush1.bf16.msra.mxu0 %v513
    %704 = vmatprep.subr.bf16.mxu0 %v518
    %705 = vmatpush1.bf16.msra.mxu0 %v517
    %706 = vmatprep.subr.bf16.mxu0 %v522
    %707 = vmatpush1.bf16.msra.mxu0 %v521
    %708 = vmatprep.subr.bf16.mxu0 %v526
    %709 = vmatpush1.bf16.msra.mxu0 %v525
    %710 = vmatprep.subr.bf16.mxu0 %v530
    %711 = vmatpush1.bf16.msra.mxu0 %v529
    %712 = vmatprep.subr.bf16.mxu0 %v534
    %713 = vmatpush1.bf16.msra.mxu0 %v533
    %714 = vmatprep.subr.bf16.mxu0 %v538
    %715 = vmatpush1.bf16.msra.mxu0 %v537
    %716 = vmatprep.subr.bf16.mxu0 %v542
    %717 = vmatpush1.bf16.msra.mxu0 %v541
    %718 = vmatprep.subr.bf16.mxu0 %v546
    %719 = vmatpush1.bf16.msra.mxu0 %v545
    %720 = vmatprep.subr.bf16.mxu0 %v550
    %721 = vmatpush1.bf16.msra.mxu0 %v549
    %722 = vmatprep.subr.bf16.mxu0 %v554
    %723 = vmatpush1.bf16.msra.mxu0 %v553
    %724 = vmatprep.mubr.bf16.mxu0 %v206
    %725 = vmatmul.mubr.bf16.gmra.mrb[0].mxu0 %v205
    %v726 = vpop.f32.mrb[0].mxu0
    %v727 = vadd.f32 %v290, %v726
    %v728 = vpop.f32.mrb[0].mxu0
    %v729 = vadd.f32 %v294, %v728
    %v730 = vpop.f32.mrb[0].mxu0
    %v731 = vadd.f32 %v290, %v730
    %v732 = vpop.f32.mrb[0].mxu0
    %v733 = vadd.f32 %v294, %v732
    %734 = vmatprep.mubr.bf16.mxu0 %v208
    %735 = vmatmul.mubr.bf16.gmra.mrb[0].mxu0 %v207
    %v736 = vpop.f32.mrb[0].mxu0
    %v737 = vadd.f32 %v290, %v736
    %v738 = vpop.f32.mrb[0].mxu0
    %v739 = vadd.f32 %v294, %v738
    %v740 = vpop.f32.mrb[0].mxu0
    %v741 = vadd.f32 %v290, %v740
    %v742 = vpop.f32.mrb[0].mxu0
    %v743 = vadd.f32 %v294, %v742
    %744 = vmatprep.mubr.bf16.mxu0 %v210
    %745 = vmatmul.mubr.bf16.gmra.mrb[0].mxu0 %v209
    %v746 = vpop.f32.mrb[0].mxu0
    %v747 = vadd.f32 %v290, %v746
    %v748 = vpop.f32.mrb[0].mxu0
    %v749 = vadd.f32 %v294, %v748
    %v750 = vpop.f32.mrb[0].mxu0
    %v751 = vadd.f32 %v290, %v750
    %v752 = vpop.f32.mrb[0].mxu0
    %v753 = vadd.f32 %v294, %v752
    %754 = vmatprep.mubr.bf16.mxu0 %v212
    %755 = vmatmul.mubr.bf16.gmra.mrb[0].mxu0 %v211
    %v756 = vpop.f32.mrb[0].mxu0
    %v757 = vadd.f32 %v290, %v756
    %v758 = vpop.f32.mrb[0].mxu0
    %v759 = vadd.f32 %v294, %v758
    %v760 = vpop.f32.mrb[0].mxu0
    %v761 = vadd.f32 %v290, %v760
    %v762 = vpop.f32.mrb[0].mxu0
    %v763 = vadd.f32 %v294, %v762
    %764 = vdwg.mxu0
    %v765 = vpack.c.bf16 %v658, %v654
    %v766 = vpack.c.bf16 %v660, %v656
    %v767 = vpack.c.bf16 %v731, %v727
    %v768 = vpack.c.bf16 %v733, %v729
    %v769 = vpack.c.bf16 %v668, %v664
    %v770 = vpack.c.bf16 %v670, %v666
    %v771 = vpack.c.bf16 %v741, %v737
    %v772 = vpack.c.bf16 %v743, %v739
    %v773 = vpack.c.bf16 %v678, %v674
    %v774 = vpack.c.bf16 %v680, %v676
    %v775 = vpack.c.bf16 %v751, %v747
    %v776 = vpack.c.bf16 %v753, %v749
    %v777 = vpack.c.bf16 %v688, %v684
    %v778 = vpack.c.bf16 %v690, %v686
    %v779 = vpack.c.bf16 %v761, %v757
    %v780 = vpack.c.bf16 %v763, %v759
    %v781 = vtanh.bf16.pop %v765
    %v782 = vtanh.bf16.pop %v766
    %v783 = vtanh.bf16.pop %v767
    %v784 = vtanh.bf16.pop %v768
    %v785 = vtanh.bf16.pop %v769
    %v786 = vtanh.bf16.pop %v770
    %v787 = vtanh.bf16.pop %v771
    %v788 = vtanh.bf16.pop %v772
    %v789 = vtanh.bf16.pop %v773
    %v790 = vtanh.bf16.pop %v774
    %v791 = vtanh.bf16.pop %v775
    %v792 = vtanh.bf16.pop %v776
    %v793 = vtanh.bf16.pop %v777
    %v794 = vtanh.bf16.pop %v778
    %v795 = vtanh.bf16.pop %v779
    %v796 = vtanh.bf16.pop %v780
    %v797 = vld [vmem:[#allocation5] sm:$0xff]
    %v798 = vld [vmem:[#allocation5 + $0x8] sm:$0xff]
    %v799 = vld [vmem:[#allocation5 + $0x10] sm:$0xff]
    %v800 = vld [vmem:[#allocation5 + $0x18] sm:$0xff]
    %v801 = vld [vmem:[#allocation5 + $0x20] sm:$0xff]
    %v802 = vld [vmem:[#allocation5 + $0x28] sm:$0xff]
    %v803 = vld [vmem:[#allocation5 + $0x30] sm:$0xff]
    %v804 = vld [vmem:[#allocation5 + $0x38] sm:$0xff]
    %v805 = vld [vmem:[#allocation5 + $0x40] sm:$0xff]
    %v806 = vld [vmem:[#allocation5 + $0x48] sm:$0xff]
    %v807 = vld [vmem:[#allocation5 + $0x50] sm:$0xff]
    %v808 = vld [vmem:[#allocation5 + $0x58] sm:$0xff]
    %v809 = vld [vmem:[#allocation5 + $0x60] sm:$0xff]
    %v810 = vld [vmem:[#allocation5 + $0x68] sm:$0xff]
    %v811 = vld [vmem:[#allocation5 + $0x70] sm:$0xff]
    %v812 = vld [vmem:[#allocation5 + $0x78] sm:$0xff]
    %v813 = vld [vmem:[#allocation5 + $0x80] sm:$0xff]
    %v814 = vld [vmem:[#allocation5 + $0x88] sm:$0xff]
    %v815 = vld [vmem:[#allocation5 + $0x90] sm:$0xff]
    %v816 = vld [vmem:[#allocation5 + $0x98] sm:$0xff]
    %v817 = vld [vmem:[#allocation5 + $0xa0] sm:$0xff]
    %v818 = vld [vmem:[#allocation5 + $0xa8] sm:$0xff]
    %v819 = vld [vmem:[#allocation5 + $0xb0] sm:$0xff]
    %v820 = vld [vmem:[#allocation5 + $0xb8] sm:$0xff]
    %v821 = vld [vmem:[#allocation5 + $0xc0] sm:$0xff]
    %v822 = vld [vmem:[#allocation5 + $0xc8] sm:$0xff]
    %v823 = vld [vmem:[#allocation5 + $0xd0] sm:$0xff]
    %v824 = vld [vmem:[#allocation5 + $0xd8] sm:$0xff]
    %v825 = vld [vmem:[#allocation5 + $0xe0] sm:$0xff]
    %v826 = vld [vmem:[#allocation5 + $0xe8] sm:$0xff]
    %v827 = vld [vmem:[#allocation5 + $0xf0] sm:$0xff]
    %v828 = vld [vmem:[#allocation5 + $0xf8] sm:$0xff]
    %v829 = vld [vmem:[#allocation5 + $0x100] sm:$0xff]
    %v830 = vld [vmem:[#allocation5 + $0x108] sm:$0xff]
    %v831 = vld [vmem:[#allocation5 + $0x110] sm:$0xff]
    %v832 = vld [vmem:[#allocation5 + $0x118] sm:$0xff]
    %v833 = vld [vmem:[#allocation5 + $0x120] sm:$0xff]
    %v834 = vld [vmem:[#allocation5 + $0x128] sm:$0xff]
    %v835 = vld [vmem:[#allocation5 + $0x130] sm:$0xff]
    %v836 = vld [vmem:[#allocation5 + $0x138] sm:$0xff]
    %v837 = vld [vmem:[#allocation5 + $0x140] sm:$0xff]
    %v838 = vld [vmem:[#allocation5 + $0x148] sm:$0xff]
    %v839 = vld [vmem:[#allocation5 + $0x150] sm:$0xff]
    %v840 = vld [vmem:[#allocation5 + $0x158] sm:$0xff]
    %v841 = vld [vmem:[#allocation5 + $0x160] sm:$0xff]
    %v842 = vld [vmem:[#allocation5 + $0x168] sm:$0xff]
    %v843 = vld [vmem:[#allocation5 + $0x170] sm:$0xff]
    %v844 = vld [vmem:[#allocation5 + $0x178] sm:$0xff]
    %v845 = vld [vmem:[#allocation5 + $0x180] sm:$0xff]
    %v846 = vld [vmem:[#allocation5 + $0x188] sm:$0xff]
    %v847 = vld [vmem:[#allocation5 + $0x190] sm:$0xff]
    %v848 = vld [vmem:[#allocation5 + $0x198] sm:$0xff]
    %v849 = vld [vmem:[#allocation5 + $0x1a0] sm:$0xff]
    %v850 = vld [vmem:[#allocation5 + $0x1a8] sm:$0xff]
    %v851 = vld [vmem:[#allocation5 + $0x1b0] sm:$0xff]
    %v852 = vld [vmem:[#allocation5 + $0x1b8] sm:$0xff]
    %v853 = vld [vmem:[#allocation5 + $0x1c0] sm:$0xff]
    %v854 = vld [vmem:[#allocation5 + $0x1c8] sm:$0xff]
    %v855 = vld [vmem:[#allocation5 + $0x1d0] sm:$0xff]
    %v856 = vld [vmem:[#allocation5 + $0x1d8] sm:$0xff]
    %v857 = vld [vmem:[#allocation5 + $0x1e0] sm:$0xff]
    %v858 = vld [vmem:[#allocation5 + $0x1e8] sm:$0xff]
    %v859 = vld [vmem:[#allocation5 + $0x1f0] sm:$0xff]
    %v860 = vld [vmem:[#allocation5 + $0x1f8] sm:$0xff]
    %v861 = vld [vmem:[#allocation5 + $0x200] sm:$0xff]
    %v862 = vld [vmem:[#allocation5 + $0x208] sm:$0xff]
    %v863 = vld [vmem:[#allocation5 + $0x210] sm:$0xff]
    %v864 = vld [vmem:[#allocation5 + $0x218] sm:$0xff]
    %v865 = vld [vmem:[#allocation5 + $0x220] sm:$0xff]
    %v866 = vld [vmem:[#allocation5 + $0x228] sm:$0xff]
    %v867 = vld [vmem:[#allocation5 + $0x230] sm:$0xff]
    %v868 = vld [vmem:[#allocation5 + $0x238] sm:$0xff]
    %v869 = vld [vmem:[#allocation5 + $0x240] sm:$0xff]
    %v870 = vld [vmem:[#allocation5 + $0x248] sm:$0xff]
    %v871 = vld [vmem:[#allocation5 + $0x250] sm:$0xff]
    %v872 = vld [vmem:[#allocation5 + $0x258] sm:$0xff]
    %v873 = vld [vmem:[#allocation5 + $0x260] sm:$0xff]
    %v874 = vld [vmem:[#allocation5 + $0x268] sm:$0xff]
    %v875 = vld [vmem:[#allocation5 + $0x270] sm:$0xff]
    %v876 = vld [vmem:[#allocation5 + $0x278] sm:$0xff]
    %v877 = vld [vmem:[#allocation5 + $0x280] sm:$0xff]
    %v878 = vld [vmem:[#allocation5 + $0x288] sm:$0xff]
    %v879 = vld [vmem:[#allocation5 + $0x290] sm:$0xff]
    %v880 = vld [vmem:[#allocation5 + $0x298] sm:$0xff]
    %v881 = vld [vmem:[#allocation5 + $0x2a0] sm:$0xff]
    %v882 = vld [vmem:[#allocation5 + $0x2a8] sm:$0xff]
    %v883 = vld [vmem:[#allocation5 + $0x2b0] sm:$0xff]
    %v884 = vld [vmem:[#allocation5 + $0x2b8] sm:$0xff]
    %v885 = vld [vmem:[#allocation5 + $0x2c0] sm:$0xff]
    %v886 = vld [vmem:[#allocation5 + $0x2c8] sm:$0xff]
    %v887 = vld [vmem:[#allocation5 + $0x2d0] sm:$0xff]
    %v888 = vld [vmem:[#allocation5 + $0x2d8] sm:$0xff]
    %v889 = vld [vmem:[#allocation5 + $0x2e0] sm:$0xff]
    %v890 = vld [vmem:[#allocation5 + $0x2e8] sm:$0xff]
    %v891 = vld [vmem:[#allocation5 + $0x2f0] sm:$0xff]
    %v892 = vld [vmem:[#allocation5 + $0x2f8] sm:$0xff]
    %v893 = vld [vmem:[#allocation5 + $0x300] sm:$0xff]
    %v894 = vld [vmem:[#allocation5 + $0x308] sm:$0xff]
    %v895 = vld [vmem:[#allocation5 + $0x310] sm:$0xff]
    %v896 = vld [vmem:[#allocation5 + $0x318] sm:$0xff]
    %v897 = vld [vmem:[#allocation5 + $0x320] sm:$0xff]
    %v898 = vld [vmem:[#allocation5 + $0x328] sm:$0xff]
    %v899 = vld [vmem:[#allocation5 + $0x330] sm:$0xff]
    %v900 = vld [vmem:[#allocation5 + $0x338] sm:$0xff]
    %v901 = vld [vmem:[#allocation5 + $0x340] sm:$0xff]
    %v902 = vld [vmem:[#allocation5 + $0x348] sm:$0xff]
    %v903 = vld [vmem:[#allocation5 + $0x350] sm:$0xff]
    %v904 = vld [vmem:[#allocation5 + $0x358] sm:$0xff]
    %v905 = vld [vmem:[#allocation5 + $0x360] sm:$0xff]
    %v906 = vld [vmem:[#allocation5 + $0x368] sm:$0xff]
    %v907 = vld [vmem:[#allocation5 + $0x370] sm:$0xff]
    %v908 = vld [vmem:[#allocation5 + $0x378] sm:$0xff]
    %v909 = vld [vmem:[#allocation5 + $0x380] sm:$0xff]
    %v910 = vld [vmem:[#allocation5 + $0x388] sm:$0xff]
    %v911 = vld [vmem:[#allocation5 + $0x390] sm:$0xff]
    %v912 = vld [vmem:[#allocation5 + $0x398] sm:$0xff]
    %v913 = vld [vmem:[#allocation5 + $0x3a0] sm:$0xff]
    %v914 = vld [vmem:[#allocation5 + $0x3a8] sm:$0xff]
    %v915 = vld [vmem:[#allocation5 + $0x3b0] sm:$0xff]
    %v916 = vld [vmem:[#allocation5 + $0x3b8] sm:$0xff]
    %v917 = vld [vmem:[#allocation5 + $0x3c0] sm:$0xff]
    %v918 = vld [vmem:[#allocation5 + $0x3c8] sm:$0xff]
    %v919 = vld [vmem:[#allocation5 + $0x3d0] sm:$0xff]
    %v920 = vld [vmem:[#allocation5 + $0x3d8] sm:$0xff]
    %v921 = vld [vmem:[#allocation5 + $0x3e0] sm:$0xff]
    %v922 = vld [vmem:[#allocation5 + $0x3e8] sm:$0xff]
    %v923 = vld [vmem:[#allocation5 + $0x3f0] sm:$0xff]
    %v924 = vld [vmem:[#allocation5 + $0x3f8] sm:$0xff]
    %v925 = vld [vmem:[#allocation5 + $0x400] sm:$0xff]
    %v926 = vld [vmem:[#allocation5 + $0x408] sm:$0xff]
    %v927 = vld [vmem:[#allocation5 + $0x410] sm:$0xff]
    %v928 = vld [vmem:[#allocation5 + $0x418] sm:$0xff]
    %v929 = vld [vmem:[#allocation5 + $0x420] sm:$0xff]
    %v930 = vld [vmem:[#allocation5 + $0x428] sm:$0xff]
    %v931 = vld [vmem:[#allocation5 + $0x430] sm:$0xff]
    %v932 = vld [vmem:[#allocation5 + $0x438] sm:$0xff]
    %v933 = vld [vmem:[#allocation5 + $0x440] sm:$0xff]
    %v934 = vld [vmem:[#allocation5 + $0x448] sm:$0xff]
    %v935 = vld [vmem:[#allocation5 + $0x450] sm:$0xff]
    %v936 = vld [vmem:[#allocation5 + $0x458] sm:$0xff]
    %v937 = vld [vmem:[#allocation5 + $0x460] sm:$0xff]
    %v938 = vld [vmem:[#allocation5 + $0x468] sm:$0xff]
    %v939 = vld [vmem:[#allocation5 + $0x470] sm:$0xff]
    %v940 = vld [vmem:[#allocation5 + $0x478] sm:$0xff]
    %v941 = vld [vmem:[#allocation5 + $0x480] sm:$0xff]
    %v942 = vld [vmem:[#allocation5 + $0x488] sm:$0xff]
    %v943 = vld [vmem:[#allocation5 + $0x490] sm:$0xff]
    %v944 = vld [vmem:[#allocation5 + $0x498] sm:$0xff]
    %v945 = vld [vmem:[#allocation5 + $0x4a0] sm:$0xff]
    %v946 = vld [vmem:[#allocation5 + $0x4a8] sm:$0xff]
    %v947 = vld [vmem:[#allocation5 + $0x4b0] sm:$0xff]
    %v948 = vld [vmem:[#allocation5 + $0x4b8] sm:$0xff]
    %v949 = vld [vmem:[#allocation5 + $0x4c0] sm:$0xff]
    %v950 = vld [vmem:[#allocation5 + $0x4c8] sm:$0xff]
    %v951 = vld [vmem:[#allocation5 + $0x4d0] sm:$0xff]
    %v952 = vld [vmem:[#allocation5 + $0x4d8] sm:$0xff]
    %v953 = vld [vmem:[#allocation5 + $0x4e0] sm:$0xff]
    %v954 = vld [vmem:[#allocation5 + $0x4e8] sm:$0xff]
    %v955 = vld [vmem:[#allocation5 + $0x4f0] sm:$0xff]
    %v956 = vld [vmem:[#allocation5 + $0x4f8] sm:$0xff]
    %v957 = vld [vmem:[#allocation5 + $0x500] sm:$0xff]
    %v958 = vld [vmem:[#allocation5 + $0x508] sm:$0xff]
    %v959 = vld [vmem:[#allocation5 + $0x510] sm:$0xff]
    %v960 = vld [vmem:[#allocation5 + $0x518] sm:$0xff]
    %v961 = vld [vmem:[#allocation5 + $0x520] sm:$0xff]
    %v962 = vld [vmem:[#allocation5 + $0x528] sm:$0xff]
    %v963 = vld [vmem:[#allocation5 + $0x530] sm:$0xff]
    %v964 = vld [vmem:[#allocation5 + $0x538] sm:$0xff]
    %v965 = vld [vmem:[#allocation5 + $0x540] sm:$0xff]
    %v966 = vld [vmem:[#allocation5 + $0x548] sm:$0xff]
    %v967 = vld [vmem:[#allocation5 + $0x550] sm:$0xff]
    %v968 = vld [vmem:[#allocation5 + $0x558] sm:$0xff]
    %v969 = vld [vmem:[#allocation5 + $0x560] sm:$0xff]
    %v970 = vld [vmem:[#allocation5 + $0x568] sm:$0xff]
    %v971 = vld [vmem:[#allocation5 + $0x570] sm:$0xff]
    %v972 = vld [vmem:[#allocation5 + $0x578] sm:$0xff]
    %v973 = vld [vmem:[#allocation5 + $0x580] sm:$0xff]
    %v974 = vld [vmem:[#allocation5 + $0x588] sm:$0xff]
    %v975 = vld [vmem:[#allocation5 + $0x590] sm:$0xff]
    %v976 = vld [vmem:[#allocation5 + $0x598] sm:$0xff]
    %v977 = vld [vmem:[#allocation5 + $0x5a0] sm:$0xff]
    %v978 = vld [vmem:[#allocation5 + $0x5a8] sm:$0xff]
    %v979 = vld [vmem:[#allocation5 + $0x5b0] sm:$0xff]
    %v980 = vld [vmem:[#allocation5 + $0x5b8] sm:$0xff]
    %v981 = vld [vmem:[#allocation5 + $0x5c0] sm:$0xff]
    %v982 = vld [vmem:[#allocation5 + $0x5c8] sm:$0xff]
    %v983 = vld [vmem:[#allocation5 + $0x5d0] sm:$0xff]
    %v984 = vld [vmem:[#allocation5 + $0x5d8] sm:$0xff]
    %v985 = vld [vmem:[#allocation5 + $0x5e0] sm:$0xff]
    %v986 = vld [vmem:[#allocation5 + $0x5e8] sm:$0xff]
    %v987 = vld [vmem:[#allocation5 + $0x5f0] sm:$0xff]
    %v988 = vld [vmem:[#allocation5 + $0x5f8] sm:$0xff]
    %v989 = vld [vmem:[#allocation5 + $0x600] sm:$0xff]
    %v990 = vld [vmem:[#allocation5 + $0x608] sm:$0xff]
    %v991 = vld [vmem:[#allocation5 + $0x610] sm:$0xff]
    %v992 = vld [vmem:[#allocation5 + $0x618] sm:$0xff]
    %v993 = vld [vmem:[#allocation5 + $0x620] sm:$0xff]
    %v994 = vld [vmem:[#allocation5 + $0x628] sm:$0xff]
    %v995 = vld [vmem:[#allocation5 + $0x630] sm:$0xff]
    %v996 = vld [vmem:[#allocation5 + $0x638] sm:$0xff]
    %v997 = vld [vmem:[#allocation5 + $0x640] sm:$0xff]
    %v998 = vld [vmem:[#allocation5 + $0x648] sm:$0xff]
    %v999 = vld [vmem:[#allocation5 + $0x650] sm:$0xff]
    %v1000 = vld [vmem:[#allocation5 + $0x658] sm:$0xff]
    %v1001 = vld [vmem:[#allocation5 + $0x660] sm:$0xff]
    %v1002 = vld [vmem:[#allocation5 + $0x668] sm:$0xff]
    %v1003 = vld [vmem:[#allocation5 + $0x670] sm:$0xff]
    %v1004 = vld [vmem:[#allocation5 + $0x678] sm:$0xff]
    %v1005 = vld [vmem:[#allocation5 + $0x680] sm:$0xff]
    %v1006 = vld [vmem:[#allocation5 + $0x688] sm:$0xff]
    %v1007 = vld [vmem:[#allocation5 + $0x690] sm:$0xff]
    %v1008 = vld [vmem:[#allocation5 + $0x698] sm:$0xff]
    %v1009 = vld [vmem:[#allocation5 + $0x6a0] sm:$0xff]
    %v1010 = vld [vmem:[#allocation5 + $0x6a8] sm:$0xff]
    %v1011 = vld [vmem:[#allocation5 + $0x6b0] sm:$0xff]
    %v1012 = vld [vmem:[#allocation5 + $0x6b8] sm:$0xff]
    %v1013 = vld [vmem:[#allocation5 + $0x6c0] sm:$0xff]
    %v1014 = vld [vmem:[#allocation5 + $0x6c8] sm:$0xff]
    %v1015 = vld [vmem:[#allocation5 + $0x6d0] sm:$0xff]
    %v1016 = vld [vmem:[#allocation5 + $0x6d8] sm:$0xff]
    %v1017 = vld [vmem:[#allocation5 + $0x6e0] sm:$0xff]
    %v1018 = vld [vmem:[#allocation5 + $0x6e8] sm:$0xff]
    %v1019 = vld [vmem:[#allocation5 + $0x6f0] sm:$0xff]
    %v1020 = vld [vmem:[#allocation5 + $0x6f8] sm:$0xff]
    %v1021 = vld [vmem:[#allocation5 + $0x700] sm:$0xff]
    %v1022 = vld [vmem:[#allocation5 + $0x708] sm:$0xff]
    %v1023 = vld [vmem:[#allocation5 + $0x710] sm:$0xff]
    %v1024 = vld [vmem:[#allocation5 + $0x718] sm:$0xff]
    %v1025 = vld [vmem:[#allocation5 + $0x720] sm:$0xff]
    %v1026 = vld [vmem:[#allocation5 + $0x728] sm:$0xff]
    %v1027 = vld [vmem:[#allocation5 + $0x730] sm:$0xff]
    %v1028 = vld [vmem:[#allocation5 + $0x738] sm:$0xff]
    %v1029 = vld [vmem:[#allocation5 + $0x740] sm:$0xff]
    %v1030 = vld [vmem:[#allocation5 + $0x748] sm:$0xff]
    %v1031 = vld [vmem:[#allocation5 + $0x750] sm:$0xff]
    %v1032 = vld [vmem:[#allocation5 + $0x758] sm:$0xff]
    %v1033 = vld [vmem:[#allocation5 + $0x760] sm:$0xff]
    %v1034 = vld [vmem:[#allocation5 + $0x768] sm:$0xff]
    %v1035 = vld [vmem:[#allocation5 + $0x770] sm:$0xff]
    %v1036 = vld [vmem:[#allocation5 + $0x778] sm:$0xff]
    %v1037 = vld [vmem:[#allocation5 + $0x780] sm:$0xff]
    %v1038 = vld [vmem:[#allocation5 + $0x788] sm:$0xff]
    %v1039 = vld [vmem:[#allocation5 + $0x790] sm:$0xff]
    %v1040 = vld [vmem:[#allocation5 + $0x798] sm:$0xff]
    %v1041 = vld [vmem:[#allocation5 + $0x7a0] sm:$0xff]
    %v1042 = vld [vmem:[#allocation5 + $0x7a8] sm:$0xff]
    %v1043 = vld [vmem:[#allocation5 + $0x7b0] sm:$0xff]
    %v1044 = vld [vmem:[#allocation5 + $0x7b8] sm:$0xff]
    %v1045 = vld [vmem:[#allocation5 + $0x7c0] sm:$0xff]
    %v1046 = vld [vmem:[#allocation5 + $0x7c8] sm:$0xff]
    %v1047 = vld [vmem:[#allocation5 + $0x7d0] sm:$0xff]
    %v1048 = vld [vmem:[#allocation5 + $0x7d8] sm:$0xff]
    %v1049 = vld [vmem:[#allocation5 + $0x7e0] sm:$0xff]
    %v1050 = vld [vmem:[#allocation5 + $0x7e8] sm:$0xff]
    %v1051 = vld [vmem:[#allocation5 + $0x7f0] sm:$0xff]
    %v1052 = vld [vmem:[#allocation5 + $0x7f8] sm:$0xff]
    %v1053 = vld [vmem:[%s6] sm:$0xff]
    %v1055 = vlaneseq
    %v1056 = vshrl.u32 %v1055, 7
    %v1057 = vsub.s32 0, %v1056
    %v1058 = vrot.slane %v1053, %v1057
    %v1059 = vlaneseq
    %v1060 = vshrl.u32 %v1059, 7
    %v1061 = vsub.s32 1, %v1060
    %v1062 = vrot.slane %v1053, %v1061
    %v1063 = vlaneseq
    %v1064 = vshrl.u32 %v1063, 7
    %v1065 = vsub.s32 2, %v1064
    %v1066 = vrot.slane %v1053, %v1065
    %v1067 = vlaneseq
    %v1068 = vshrl.u32 %v1067, 7
    %v1069 = vsub.s32 3, %v1068
    %v1070 = vrot.slane %v1053, %v1069
    %v1071 = vlaneseq
    %v1072 = vshrl.u32 %v1071, 7
    %v1073 = vsub.s32 4, %v1072
    %v1074 = vrot.slane %v1053, %v1073
    %v1075 = vlaneseq
    %v1076 = vshrl.u32 %v1075, 7
    %v1077 = vsub.s32 5, %v1076
    %v1078 = vrot.slane %v1053, %v1077
    %v1079 = vlaneseq
    %v1080 = vshrl.u32 %v1079, 7
    %v1081 = vsub.s32 6, %v1080
    %v1082 = vrot.slane %v1053, %v1081
    %v1083 = vlaneseq
    %v1084 = vshrl.u32 %v1083, 7
    %v1085 = vsub.s32 7, %v1084
    %v1086 = vrot.slane %v1053, %v1085
    %v1351 = vunpack.c.l.b16 %v797
    %v1352 = vunpack.c.h.b16 %v797
    %v1353 = vunpack.c.l.b16 %v798
    %v1354 = vunpack.c.h.b16 %v798
    %v1355 = vunpack.c.l.b16 %v799
    %v1356 = vunpack.c.h.b16 %v799
    %v1357 = vunpack.c.l.b16 %v800
    %v1358 = vunpack.c.h.b16 %v800
    %v1359 = vunpack.c.l.b16 %v801
    %v1360 = vunpack.c.h.b16 %v801
    %v1361 = vunpack.c.l.b16 %v802
    %v1362 = vunpack.c.h.b16 %v802
    %v1363 = vunpack.c.l.b16 %v803
    %v1364 = vunpack.c.h.b16 %v803
    %v1365 = vunpack.c.l.b16 %v804
    %v1366 = vunpack.c.h.b16 %v804
    %v1367 = vunpack.c.l.b16 %v805
    %v1368 = vunpack.c.h.b16 %v805
    %v1369 = vunpack.c.l.b16 %v806
    %v1370 = vunpack.c.h.b16 %v806
    %v1371 = vunpack.c.l.b16 %v807
    %v1372 = vunpack.c.h.b16 %v807
    %v1373 = vunpack.c.l.b16 %v808
    %v1374 = vunpack.c.h.b16 %v808
    %v1375 = vunpack.c.l.b16 %v809
    %v1376 = vunpack.c.h.b16 %v809
    %v1377 = vunpack.c.l.b16 %v810
    %v1378 = vunpack.c.h.b16 %v810
    %v1379 = vunpack.c.l.b16 %v811
    %v1380 = vunpack.c.h.b16 %v811
    %v1381 = vunpack.c.l.b16 %v812
    %v1382 = vunpack.c.h.b16 %v812
    %v1383 = vunpack.c.l.b16 %v813
    %v1384 = vunpack.c.h.b16 %v813
    %v1385 = vunpack.c.l.b16 %v814
    %v1386 = vunpack.c.h.b16 %v814
    %v1387 = vunpack.c.l.b16 %v815
    %v1388 = vunpack.c.h.b16 %v815
    %v1389 = vunpack.c.l.b16 %v816
    %v1390 = vunpack.c.h.b16 %v816
    %v1391 = vunpack.c.l.b16 %v817
    %v1392 = vunpack.c.h.b16 %v817
    %v1393 = vunpack.c.l.b16 %v818
    %v1394 = vunpack.c.h.b16 %v818
    %v1395 = vunpack.c.l.b16 %v819
    %v1396 = vunpack.c.h.b16 %v819
    %v1397 = vunpack.c.l.b16 %v820
    %v1398 = vunpack.c.h.b16 %v820
    %v1399 = vunpack.c.l.b16 %v821
    %v1400 = vunpack.c.h.b16 %v821
    %v1401 = vunpack.c.l.b16 %v822
    %v1402 = vunpack.c.h.b16 %v822
    %v1403 = vunpack.c.l.b16 %v823
    %v1404 = vunpack.c.h.b16 %v823
    %v1405 = vunpack.c.l.b16 %v824
    %v1406 = vunpack.c.h.b16 %v824
    %v1407 = vunpack.c.l.b16 %v825
    %v1408 = vunpack.c.h.b16 %v825
    %v1409 = vunpack.c.l.b16 %v826
    %v1410 = vunpack.c.h.b16 %v826
    %v1411 = vunpack.c.l.b16 %v827
    %v1412 = vunpack.c.h.b16 %v827
    %v1413 = vunpack.c.l.b16 %v828
    %v1414 = vunpack.c.h.b16 %v828
    %v1415 = vunpack.c.l.b16 %v829
    %v1416 = vunpack.c.h.b16 %v829
    %v1417 = vunpack.c.l.b16 %v830
    %v1418 = vunpack.c.h.b16 %v830
    %v1419 = vunpack.c.l.b16 %v831
    %v1420 = vunpack.c.h.b16 %v831
    %v1421 = vunpack.c.l.b16 %v832
    %v1422 = vunpack.c.h.b16 %v832
    %v1423 = vunpack.c.l.b16 %v833
    %v1424 = vunpack.c.h.b16 %v833
    %v1425 = vunpack.c.l.b16 %v834
    %v1426 = vunpack.c.h.b16 %v834
    %v1427 = vunpack.c.l.b16 %v835
    %v1428 = vunpack.c.h.b16 %v835
    %v1429 = vunpack.c.l.b16 %v836
    %v1430 = vunpack.c.h.b16 %v836
    %v1431 = vunpack.c.l.b16 %v837
    %v1432 = vunpack.c.h.b16 %v837
    %v1433 = vunpack.c.l.b16 %v838
    %v1434 = vunpack.c.h.b16 %v838
    %v1435 = vunpack.c.l.b16 %v839
    %v1436 = vunpack.c.h.b16 %v839
    %v1437 = vunpack.c.l.b16 %v840
    %v1438 = vunpack.c.h.b16 %v840
    %v1439 = vunpack.c.l.b16 %v841
    %v1440 = vunpack.c.h.b16 %v841
    %v1441 = vunpack.c.l.b16 %v842
    %v1442 = vunpack.c.h.b16 %v842
    %v1443 = vunpack.c.l.b16 %v843
    %v1444 = vunpack.c.h.b16 %v843
    %v1445 = vunpack.c.l.b16 %v844
    %v1446 = vunpack.c.h.b16 %v844
    %v1447 = vunpack.c.l.b16 %v845
    %v1448 = vunpack.c.h.b16 %v845
    %v1449 = vunpack.c.l.b16 %v846
    %v1450 = vunpack.c.h.b16 %v846
    %v1451 = vunpack.c.l.b16 %v847
    %v1452 = vunpack.c.h.b16 %v847
    %v1453 = vunpack.c.l.b16 %v848
    %v1454 = vunpack.c.h.b16 %v848
    %v1455 = vunpack.c.l.b16 %v849
    %v1456 = vunpack.c.h.b16 %v849
    %v1457 = vunpack.c.l.b16 %v850
    %v1458 = vunpack.c.h.b16 %v850
    %v1459 = vunpack.c.l.b16 %v851
    %v1460 = vunpack.c.h.b16 %v851
    %v1461 = vunpack.c.l.b16 %v852
    %v1462 = vunpack.c.h.b16 %v852
    %v1463 = vunpack.c.l.b16 %v853
    %v1464 = vunpack.c.h.b16 %v853
    %v1465 = vunpack.c.l.b16 %v854
    %v1466 = vunpack.c.h.b16 %v854
    %v1467 = vunpack.c.l.b16 %v855
    %v1468 = vunpack.c.h.b16 %v855
    %v1469 = vunpack.c.l.b16 %v856
    %v1470 = vunpack.c.h.b16 %v856
    %v1471 = vunpack.c.l.b16 %v857
    %v1472 = vunpack.c.h.b16 %v857
    %v1473 = vunpack.c.l.b16 %v858
    %v1474 = vunpack.c.h.b16 %v858
    %v1475 = vunpack.c.l.b16 %v859
    %v1476 = vunpack.c.h.b16 %v859
    %v1477 = vunpack.c.l.b16 %v860
    %v1478 = vunpack.c.h.b16 %v860
    %v1479 = vunpack.c.l.b16 %v861
    %v1480 = vunpack.c.h.b16 %v861
    %v1481 = vunpack.c.l.b16 %v862
    %v1482 = vunpack.c.h.b16 %v862
    %v1483 = vunpack.c.l.b16 %v863
    %v1484 = vunpack.c.h.b16 %v863
    %v1485 = vunpack.c.l.b16 %v864
    %v1486 = vunpack.c.h.b16 %v864
    %v1487 = vunpack.c.l.b16 %v865
    %v1488 = vunpack.c.h.b16 %v865
    %v1489 = vunpack.c.l.b16 %v866
    %v1490 = vunpack.c.h.b16 %v866
    %v1491 = vunpack.c.l.b16 %v867
    %v1492 = vunpack.c.h.b16 %v867
    %v1493 = vunpack.c.l.b16 %v868
    %v1494 = vunpack.c.h.b16 %v868
    %v1495 = vunpack.c.l.b16 %v869
    %v1496 = vunpack.c.h.b16 %v869
    %v1497 = vunpack.c.l.b16 %v870
    %v1498 = vunpack.c.h.b16 %v870
    %v1499 = vunpack.c.l.b16 %v871
    %v1500 = vunpack.c.h.b16 %v871
    %v1501 = vunpack.c.l.b16 %v872
    %v1502 = vunpack.c.h.b16 %v872
    %v1503 = vunpack.c.l.b16 %v873
    %v1504 = vunpack.c.h.b16 %v873
    %v1505 = vunpack.c.l.b16 %v874
    %v1506 = vunpack.c.h.b16 %v874
    %v1507 = vunpack.c.l.b16 %v875
    %v1508 = vunpack.c.h.b16 %v875
    %v1509 = vunpack.c.l.b16 %v876
    %v1510 = vunpack.c.h.b16 %v876
    %v1511 = vunpack.c.l.b16 %v877
    %v1512 = vunpack.c.h.b16 %v877
    %v1513 = vunpack.c.l.b16 %v878
    %v1514 = vunpack.c.h.b16 %v878
    %v1515 = vunpack.c.l.b16 %v879
    %v1516 = vunpack.c.h.b16 %v879
    %v1517 = vunpack.c.l.b16 %v880
    %v1518 = vunpack.c.h.b16 %v880
    %v1519 = vunpack.c.l.b16 %v881
    %v1520 = vunpack.c.h.b16 %v881
    %v1521 = vunpack.c.l.b16 %v882
    %v1522 = vunpack.c.h.b16 %v882
    %v1523 = vunpack.c.l.b16 %v883
    %v1524 = vunpack.c.h.b16 %v883
    %v1525 = vunpack.c.l.b16 %v884
    %v1526 = vunpack.c.h.b16 %v884
    %v1527 = vunpack.c.l.b16 %v885
    %v1528 = vunpack.c.h.b16 %v885
    %v1529 = vunpack.c.l.b16 %v886
    %v1530 = vunpack.c.h.b16 %v886
    %v1531 = vunpack.c.l.b16 %v887
    %v1532 = vunpack.c.h.b16 %v887
    %v1533 = vunpack.c.l.b16 %v888
    %v1534 = vunpack.c.h.b16 %v888
    %v1535 = vunpack.c.l.b16 %v889
    %v1536 = vunpack.c.h.b16 %v889
    %v1537 = vunpack.c.l.b16 %v890
    %v1538 = vunpack.c.h.b16 %v890
    %v1539 = vunpack.c.l.b16 %v891
    %v1540 = vunpack.c.h.b16 %v891
    %v1541 = vunpack.c.l.b16 %v892
    %v1542 = vunpack.c.h.b16 %v892
    %v1543 = vunpack.c.l.b16 %v893
    %v1544 = vunpack.c.h.b16 %v893
    %v1545 = vunpack.c.l.b16 %v894
    %v1546 = vunpack.c.h.b16 %v894
    %v1547 = vunpack.c.l.b16 %v895
    %v1548 = vunpack.c.h.b16 %v895
    %v1549 = vunpack.c.l.b16 %v896
    %v1550 = vunpack.c.h.b16 %v896
    %v1551 = vunpack.c.l.b16 %v897
    %v1552 = vunpack.c.h.b16 %v897
    %v1553 = vunpack.c.l.b16 %v898
    %v1554 = vunpack.c.h.b16 %v898
    %v1555 = vunpack.c.l.b16 %v899
    %v1556 = vunpack.c.h.b16 %v899
    %v1557 = vunpack.c.l.b16 %v900
    %v1558 = vunpack.c.h.b16 %v900
    %v1559 = vunpack.c.l.b16 %v901
    %v1560 = vunpack.c.h.b16 %v901
    %v1561 = vunpack.c.l.b16 %v902
    %v1562 = vunpack.c.h.b16 %v902
    %v1563 = vunpack.c.l.b16 %v903
    %v1564 = vunpack.c.h.b16 %v903
    %v1565 = vunpack.c.l.b16 %v904
    %v1566 = vunpack.c.h.b16 %v904
    %v1567 = vunpack.c.l.b16 %v905
    %v1568 = vunpack.c.h.b16 %v905
    %v1569 = vunpack.c.l.b16 %v906
    %v1570 = vunpack.c.h.b16 %v906
    %v1571 = vunpack.c.l.b16 %v907
    %v1572 = vunpack.c.h.b16 %v907
    %v1573 = vunpack.c.l.b16 %v908
    %v1574 = vunpack.c.h.b16 %v908
    %v1575 = vunpack.c.l.b16 %v909
    %v1576 = vunpack.c.h.b16 %v909
    %v1577 = vunpack.c.l.b16 %v910
    %v1578 = vunpack.c.h.b16 %v910
    %v1579 = vunpack.c.l.b16 %v911
    %v1580 = vunpack.c.h.b16 %v911
    %v1581 = vunpack.c.l.b16 %v912
    %v1582 = vunpack.c.h.b16 %v912
    %v1583 = vunpack.c.l.b16 %v913
    %v1584 = vunpack.c.h.b16 %v913
    %v1585 = vunpack.c.l.b16 %v914
    %v1586 = vunpack.c.h.b16 %v914
    %v1587 = vunpack.c.l.b16 %v915
    %v1588 = vunpack.c.h.b16 %v915
    %v1589 = vunpack.c.l.b16 %v916
    %v1590 = vunpack.c.h.b16 %v916
    %v1591 = vunpack.c.l.b16 %v917
    %v1592 = vunpack.c.h.b16 %v917
    %v1593 = vunpack.c.l.b16 %v918
    %v1594 = vunpack.c.h.b16 %v918
    %v1595 = vunpack.c.l.b16 %v919
    %v1596 = vunpack.c.h.b16 %v919
    %v1597 = vunpack.c.l.b16 %v920
    %v1598 = vunpack.c.h.b16 %v920
    %v1599 = vunpack.c.l.b16 %v921
    %v1600 = vunpack.c.h.b16 %v921
    %v1601 = vunpack.c.l.b16 %v922
    %v1602 = vunpack.c.h.b16 %v922
    %v1603 = vunpack.c.l.b16 %v923
    %v1604 = vunpack.c.h.b16 %v923
    %v1605 = vunpack.c.l.b16 %v924
    %v1606 = vunpack.c.h.b16 %v924
    %v1607 = vunpack.c.l.b16 %v925
    %v1608 = vunpack.c.h.b16 %v925
    %v1609 = vunpack.c.l.b16 %v926
    %v1610 = vunpack.c.h.b16 %v926
    %v1611 = vunpack.c.l.b16 %v927
    %v1612 = vunpack.c.h.b16 %v927
    %v1613 = vunpack.c.l.b16 %v928
    %v1614 = vunpack.c.h.b16 %v928
    %v1615 = vunpack.c.l.b16 %v929
    %v1616 = vunpack.c.h.b16 %v929
    %v1617 = vunpack.c.l.b16 %v930
    %v1618 = vunpack.c.h.b16 %v930
    %v1619 = vunpack.c.l.b16 %v931
    %v1620 = vunpack.c.h.b16 %v931
    %v1621 = vunpack.c.l.b16 %v932
    %v1622 = vunpack.c.h.b16 %v932
    %v1623 = vunpack.c.l.b16 %v933
    %v1624 = vunpack.c.h.b16 %v933
    %v1625 = vunpack.c.l.b16 %v934
    %v1626 = vunpack.c.h.b16 %v934
    %v1627 = vunpack.c.l.b16 %v935
    %v1628 = vunpack.c.h.b16 %v935
    %v1629 = vunpack.c.l.b16 %v936
    %v1630 = vunpack.c.h.b16 %v936
    %v1631 = vunpack.c.l.b16 %v937
    %v1632 = vunpack.c.h.b16 %v937
    %v1633 = vunpack.c.l.b16 %v938
    %v1634 = vunpack.c.h.b16 %v938
    %v1635 = vunpack.c.l.b16 %v939
    %v1636 = vunpack.c.h.b16 %v939
    %v1637 = vunpack.c.l.b16 %v940
    %v1638 = vunpack.c.h.b16 %v940
    %v1639 = vunpack.c.l.b16 %v941
    %v1640 = vunpack.c.h.b16 %v941
    %v1641 = vunpack.c.l.b16 %v942
    %v1642 = vunpack.c.h.b16 %v942
    %v1643 = vunpack.c.l.b16 %v943
    %v1644 = vunpack.c.h.b16 %v943
    %v1645 = vunpack.c.l.b16 %v944
    %v1646 = vunpack.c.h.b16 %v944
    %v1647 = vunpack.c.l.b16 %v945
    %v1648 = vunpack.c.h.b16 %v945
    %v1649 = vunpack.c.l.b16 %v946
    %v1650 = vunpack.c.h.b16 %v946
    %v1651 = vunpack.c.l.b16 %v947
    %v1652 = vunpack.c.h.b16 %v947
    %v1653 = vunpack.c.l.b16 %v948
    %v1654 = vunpack.c.h.b16 %v948
    %v1655 = vunpack.c.l.b16 %v949
    %v1656 = vunpack.c.h.b16 %v949
    %v1657 = vunpack.c.l.b16 %v950
    %v1658 = vunpack.c.h.b16 %v950
    %v1659 = vunpack.c.l.b16 %v951
    %v1660 = vunpack.c.h.b16 %v951
    %v1661 = vunpack.c.l.b16 %v952
    %v1662 = vunpack.c.h.b16 %v952
    %v1663 = vunpack.c.l.b16 %v953
    %v1664 = vunpack.c.h.b16 %v953
    %v1665 = vunpack.c.l.b16 %v954
    %v1666 = vunpack.c.h.b16 %v954
    %v1667 = vunpack.c.l.b16 %v955
    %v1668 = vunpack.c.h.b16 %v955
    %v1669 = vunpack.c.l.b16 %v956
    %v1670 = vunpack.c.h.b16 %v956
    %v1671 = vunpack.c.l.b16 %v957
    %v1672 = vunpack.c.h.b16 %v957
    %v1673 = vunpack.c.l.b16 %v958
    %v1674 = vunpack.c.h.b16 %v958
    %v1675 = vunpack.c.l.b16 %v959
    %v1676 = vunpack.c.h.b16 %v959
    %v1677 = vunpack.c.l.b16 %v960
    %v1678 = vunpack.c.h.b16 %v960
    %v1679 = vunpack.c.l.b16 %v961
    %v1680 = vunpack.c.h.b16 %v961
    %v1681 = vunpack.c.l.b16 %v962
    %v1682 = vunpack.c.h.b16 %v962
    %v1683 = vunpack.c.l.b16 %v963
    %v1684 = vunpack.c.h.b16 %v963
    %v1685 = vunpack.c.l.b16 %v964
    %v1686 = vunpack.c.h.b16 %v964
    %v1687 = vunpack.c.l.b16 %v965
    %v1688 = vunpack.c.h.b16 %v965
    %v1689 = vunpack.c.l.b16 %v966
    %v1690 = vunpack.c.h.b16 %v966
    %v1691 = vunpack.c.l.b16 %v967
    %v1692 = vunpack.c.h.b16 %v967
    %v1693 = vunpack.c.l.b16 %v968
    %v1694 = vunpack.c.h.b16 %v968
    %v1695 = vunpack.c.l.b16 %v969
    %v1696 = vunpack.c.h.b16 %v969
    %v1697 = vunpack.c.l.b16 %v970
    %v1698 = vunpack.c.h.b16 %v970
    %v1699 = vunpack.c.l.b16 %v971
    %v1700 = vunpack.c.h.b16 %v971
    %v1701 = vunpack.c.l.b16 %v972
    %v1702 = vunpack.c.h.b16 %v972
    %v1703 = vunpack.c.l.b16 %v973
    %v1704 = vunpack.c.h.b16 %v973
    %v1705 = vunpack.c.l.b16 %v974
    %v1706 = vunpack.c.h.b16 %v974
    %v1707 = vunpack.c.l.b16 %v975
    %v1708 = vunpack.c.h.b16 %v975
    %v1709 = vunpack.c.l.b16 %v976
    %v1710 = vunpack.c.h.b16 %v976
    %v1711 = vunpack.c.l.b16 %v977
    %v1712 = vunpack.c.h.b16 %v977
    %v1713 = vunpack.c.l.b16 %v978
    %v1714 = vunpack.c.h.b16 %v978
    %v1715 = vunpack.c.l.b16 %v979
    %v1716 = vunpack.c.h.b16 %v979
    %v1717 = vunpack.c.l.b16 %v980
    %v1718 = vunpack.c.h.b16 %v980
    %v1719 = vunpack.c.l.b16 %v981
    %v1720 = vunpack.c.h.b16 %v981
    %v1721 = vunpack.c.l.b16 %v982
    %v1722 = vunpack.c.h.b16 %v982
    %v1723 = vunpack.c.l.b16 %v983
    %v1724 = vunpack.c.h.b16 %v983
    %v1725 = vunpack.c.l.b16 %v984
    %v1726 = vunpack.c.h.b16 %v984
    %v1727 = vunpack.c.l.b16 %v985
    %v1728 = vunpack.c.h.b16 %v985
    %v1729 = vunpack.c.l.b16 %v986
    %v1730 = vunpack.c.h.b16 %v986
    %v1731 = vunpack.c.l.b16 %v987
    %v1732 = vunpack.c.h.b16 %v987
    %v1733 = vunpack.c.l.b16 %v988
    %v1734 = vunpack.c.h.b16 %v988
    %v1735 = vunpack.c.l.b16 %v989
    %v1736 = vunpack.c.h.b16 %v989
    %v1737 = vunpack.c.l.b16 %v990
    %v1738 = vunpack.c.h.b16 %v990
    %v1739 = vunpack.c.l.b16 %v991
    %v1740 = vunpack.c.h.b16 %v991
    %v1741 = vunpack.c.l.b16 %v992
    %v1742 = vunpack.c.h.b16 %v992
    %v1743 = vunpack.c.l.b16 %v993
    %v1744 = vunpack.c.h.b16 %v993
    %v1745 = vunpack.c.l.b16 %v994
    %v1746 = vunpack.c.h.b16 %v994
    %v1747 = vunpack.c.l.b16 %v995
    %v1748 = vunpack.c.h.b16 %v995
    %v1749 = vunpack.c.l.b16 %v996
    %v1750 = vunpack.c.h.b16 %v996
    %v1751 = vunpack.c.l.b16 %v997
    %v1752 = vunpack.c.h.b16 %v997
    %v1753 = vunpack.c.l.b16 %v998
    %v1754 = vunpack.c.h.b16 %v998
    %v1755 = vunpack.c.l.b16 %v999
    %v1756 = vunpack.c.h.b16 %v999
    %v1757 = vunpack.c.l.b16 %v1000
    %v1758 = vunpack.c.h.b16 %v1000
    %v1759 = vunpack.c.l.b16 %v1001
    %v1760 = vunpack.c.h.b16 %v1001
    %v1761 = vunpack.c.l.b16 %v1002
    %v1762 = vunpack.c.h.b16 %v1002
    %v1763 = vunpack.c.l.b16 %v1003
    %v1764 = vunpack.c.h.b16 %v1003
    %v1765 = vunpack.c.l.b16 %v1004
    %v1766 = vunpack.c.h.b16 %v1004
    %v1767 = vunpack.c.l.b16 %v1005
    %v1768 = vunpack.c.h.b16 %v1005
    %v1769 = vunpack.c.l.b16 %v1006
    %v1770 = vunpack.c.h.b16 %v1006
    %v1771 = vunpack.c.l.b16 %v1007
    %v1772 = vunpack.c.h.b16 %v1007
    %v1773 = vunpack.c.l.b16 %v1008
    %v1774 = vunpack.c.h.b16 %v1008
    %v1775 = vunpack.c.l.b16 %v1009
    %v1776 = vunpack.c.h.b16 %v1009
    %v1777 = vunpack.c.l.b16 %v1010
    %v1778 = vunpack.c.h.b16 %v1010
    %v1779 = vunpack.c.l.b16 %v1011
    %v1780 = vunpack.c.h.b16 %v1011
    %v1781 = vunpack.c.l.b16 %v1012
    %v1782 = vunpack.c.h.b16 %v1012
    %v1783 = vunpack.c.l.b16 %v1013
    %v1784 = vunpack.c.h.b16 %v1013
    %v1785 = vunpack.c.l.b16 %v1014
    %v1786 = vunpack.c.h.b16 %v1014
    %v1787 = vunpack.c.l.b16 %v1015
    %v1788 = vunpack.c.h.b16 %v1015
    %v1789 = vunpack.c.l.b16 %v1016
    %v1790 = vunpack.c.h.b16 %v1016
    %v1791 = vunpack.c.l.b16 %v1017
    %v1792 = vunpack.c.h.b16 %v1017
    %v1793 = vunpack.c.l.b16 %v1018
    %v1794 = vunpack.c.h.b16 %v1018
    %v1795 = vunpack.c.l.b16 %v1019
    %v1796 = vunpack.c.h.b16 %v1019
    %v1797 = vunpack.c.l.b16 %v1020
    %v1798 = vunpack.c.h.b16 %v1020
    %v1799 = vunpack.c.l.b16 %v1021
    %v1800 = vunpack.c.h.b16 %v1021
    %v1801 = vunpack.c.l.b16 %v1022
    %v1802 = vunpack.c.h.b16 %v1022
    %v1803 = vunpack.c.l.b16 %v1023
    %v1804 = vunpack.c.h.b16 %v1023
    %v1805 = vunpack.c.l.b16 %v1024
    %v1806 = vunpack.c.h.b16 %v1024
    %v1807 = vunpack.c.l.b16 %v1025
    %v1808 = vunpack.c.h.b16 %v1025
    %v1809 = vunpack.c.l.b16 %v1026
    %v1810 = vunpack.c.h.b16 %v1026
    %v1811 = vunpack.c.l.b16 %v1027
    %v1812 = vunpack.c.h.b16 %v1027
    %v1813 = vunpack.c.l.b16 %v1028
    %v1814 = vunpack.c.h.b16 %v1028
    %v1815 = vunpack.c.l.b16 %v1029
    %v1816 = vunpack.c.h.b16 %v1029
    %v1817 = vunpack.c.l.b16 %v1030
    %v1818 = vunpack.c.h.b16 %v1030
    %v1819 = vunpack.c.l.b16 %v1031
    %v1820 = vunpack.c.h.b16 %v1031
    %v1821 = vunpack.c.l.b16 %v1032
    %v1822 = vunpack.c.h.b16 %v1032
    %v1823 = vunpack.c.l.b16 %v1033
    %v1824 = vunpack.c.h.b16 %v1033
    %v1825 = vunpack.c.l.b16 %v1034
    %v1826 = vunpack.c.h.b16 %v1034
    %v1827 = vunpack.c.l.b16 %v1035
    %v1828 = vunpack.c.h.b16 %v1035
    %v1829 = vunpack.c.l.b16 %v1036
    %v1830 = vunpack.c.h.b16 %v1036
    %v1831 = vunpack.c.l.b16 %v1037
    %v1832 = vunpack.c.h.b16 %v1037
    %v1833 = vunpack.c.l.b16 %v1038
    %v1834 = vunpack.c.h.b16 %v1038
    %v1835 = vunpack.c.l.b16 %v1039
    %v1836 = vunpack.c.h.b16 %v1039
    %v1837 = vunpack.c.l.b16 %v1040
    %v1838 = vunpack.c.h.b16 %v1040
    %v1839 = vunpack.c.l.b16 %v1041
    %v1840 = vunpack.c.h.b16 %v1041
    %v1841 = vunpack.c.l.b16 %v1042
    %v1842 = vunpack.c.h.b16 %v1042
    %v1843 = vunpack.c.l.b16 %v1043
    %v1844 = vunpack.c.h.b16 %v1043
    %v1845 = vunpack.c.l.b16 %v1044
    %v1846 = vunpack.c.h.b16 %v1044
    %v1847 = vunpack.c.l.b16 %v1045
    %v1848 = vunpack.c.h.b16 %v1045
    %v1849 = vunpack.c.l.b16 %v1046
    %v1850 = vunpack.c.h.b16 %v1046
    %v1851 = vunpack.c.l.b16 %v1047
    %v1852 = vunpack.c.h.b16 %v1047
    %v1853 = vunpack.c.l.b16 %v1048
    %v1854 = vunpack.c.h.b16 %v1048
    %v1855 = vunpack.c.l.b16 %v1049
    %v1856 = vunpack.c.h.b16 %v1049
    %v1857 = vunpack.c.l.b16 %v1050
    %v1858 = vunpack.c.h.b16 %v1050
    %v1859 = vunpack.c.l.b16 %v1051
    %v1860 = vunpack.c.h.b16 %v1051
    %v1861 = vunpack.c.l.b16 %v1052
    %v1862 = vunpack.c.h.b16 %v1052
    %v1863 = vpack.c.b16 %v1359, %v1351
    %v1864 = vpack.c.b16 %v1360, %v1352
    %v1865 = vpack.c.b16 %v1361, %v1353
    %v1866 = vpack.c.b16 %v1362, %v1354
    %v1867 = vpack.c.b16 %v1363, %v1355
    %v1868 = vpack.c.b16 %v1364, %v1356
    %v1869 = vpack.c.b16 %v1365, %v1357
    %v1870 = vpack.c.b16 %v1366, %v1358
    %v1871 = vpack.c.b16 %v1375, %v1367
    %v1872 = vpack.c.b16 %v1376, %v1368
    %v1873 = vpack.c.b16 %v1377, %v1369
    %v1874 = vpack.c.b16 %v1378, %v1370
    %v1875 = vpack.c.b16 %v1379, %v1371
    %v1876 = vpack.c.b16 %v1380, %v1372
    %v1877 = vpack.c.b16 %v1381, %v1373
    %v1878 = vpack.c.b16 %v1382, %v1374
    %v1879 = vpack.c.b16 %v1391, %v1383
    %v1880 = vpack.c.b16 %v1392, %v1384
    %v1881 = vpack.c.b16 %v1393, %v1385
    %v1882 = vpack.c.b16 %v1394, %v1386
    %v1883 = vpack.c.b16 %v1395, %v1387
    %v1884 = vpack.c.b16 %v1396, %v1388
    %v1885 = vpack.c.b16 %v1397, %v1389
    %v1886 = vpack.c.b16 %v1398, %v1390
    %v1887 = vpack.c.b16 %v1407, %v1399
    %v1888 = vpack.c.b16 %v1408, %v1400
    %v1889 = vpack.c.b16 %v1409, %v1401
    %v1890 = vpack.c.b16 %v1410, %v1402
    %v1891 = vpack.c.b16 %v1411, %v1403
    %v1892 = vpack.c.b16 %v1412, %v1404
    %v1893 = vpack.c.b16 %v1413, %v1405
    %v1894 = vpack.c.b16 %v1414, %v1406
    %v1895 = vpack.c.b16 %v1423, %v1415
    %v1896 = vpack.c.b16 %v1424, %v1416
    %v1897 = vpack.c.b16 %v1425, %v1417
    %v1898 = vpack.c.b16 %v1426, %v1418
    %v1899 = vpack.c.b16 %v1427, %v1419
    %v1900 = vpack.c.b16 %v1428, %v1420
    %v1901 = vpack.c.b16 %v1429, %v1421
    %v1902 = vpack.c.b16 %v1430, %v1422
    %v1903 = vpack.c.b16 %v1439, %v1431
    %v1904 = vpack.c.b16 %v1440, %v1432
    %v1905 = vpack.c.b16 %v1441, %v1433
    %v1906 = vpack.c.b16 %v1442, %v1434
    %v1907 = vpack.c.b16 %v1443, %v1435
    %v1908 = vpack.c.b16 %v1444, %v1436
    %v1909 = vpack.c.b16 %v1445, %v1437
    %v1910 = vpack.c.b16 %v1446, %v1438
    %v1911 = vpack.c.b16 %v1455, %v1447
    %v1912 = vpack.c.b16 %v1456, %v1448
    %v1913 = vpack.c.b16 %v1457, %v1449
    %v1914 = vpack.c.b16 %v1458, %v1450
    %v1915 = vpack.c.b16 %v1459, %v1451
    %v1916 = vpack.c.b16 %v1460, %v1452
    %v1917 = vpack.c.b16 %v1461, %v1453
    %v1918 = vpack.c.b16 %v1462, %v1454
    %v1919 = vpack.c.b16 %v1471, %v1463
    %v1920 = vpack.c.b16 %v1472, %v1464
    %v1921 = vpack.c.b16 %v1473, %v1465
    %v1922 = vpack.c.b16 %v1474, %v1466
    %v1923 = vpack.c.b16 %v1475, %v1467
    %v1924 = vpack.c.b16 %v1476, %v1468
    %v1925 = vpack.c.b16 %v1477, %v1469
    %v1926 = vpack.c.b16 %v1478, %v1470
    %v1927 = vpack.c.b16 %v1487, %v1479
    %v1928 = vpack.c.b16 %v1488, %v1480
    %v1929 = vpack.c.b16 %v1489, %v1481
    %v1930 = vpack.c.b16 %v1490, %v1482
    %v1931 = vpack.c.b16 %v1491, %v1483
    %v1932 = vpack.c.b16 %v1492, %v1484
    %v1933 = vpack.c.b16 %v1493, %v1485
    %v1934 = vpack.c.b16 %v1494, %v1486
    %v1935 = vpack.c.b16 %v1503, %v1495
    %v1936 = vpack.c.b16 %v1504, %v1496
    %v1937 = vpack.c.b16 %v1505, %v1497
    %v1938 = vpack.c.b16 %v1506, %v1498
    %v1939 = vpack.c.b16 %v1507, %v1499
    %v1940 = vpack.c.b16 %v1508, %v1500
    %v1941 = vpack.c.b16 %v1509, %v1501
    %v1942 = vpack.c.b16 %v1510, %v1502
    %v1943 = vpack.c.b16 %v1519, %v1511
    %v1944 = vpack.c.b16 %v1520, %v1512
    %v1945 = vpack.c.b16 %v1521, %v1513
    %v1946 = vpack.c.b16 %v1522, %v1514
    %v1947 = vpack.c.b16 %v1523, %v1515
    %v1948 = vpack.c.b16 %v1524, %v1516
    %v1949 = vpack.c.b16 %v1525, %v1517
    %v1950 = vpack.c.b16 %v1526, %v1518
    %v1951 = vpack.c.b16 %v1535, %v1527
    %v1952 = vpack.c.b16 %v1536, %v1528
    %v1953 = vpack.c.b16 %v1537, %v1529
    %v1954 = vpack.c.b16 %v1538, %v1530
    %v1955 = vpack.c.b16 %v1539, %v1531
    %v1956 = vpack.c.b16 %v1540, %v1532
    %v1957 = vpack.c.b16 %v1541, %v1533
    %v1958 = vpack.c.b16 %v1542, %v1534
    %v1959 = vpack.c.b16 %v1551, %v1543
    %v1960 = vpack.c.b16 %v1552, %v1544
    %v1961 = vpack.c.b16 %v1553, %v1545
    %v1962 = vpack.c.b16 %v1554, %v1546
    %v1963 = vpack.c.b16 %v1555, %v1547
    %v1964 = vpack.c.b16 %v1556, %v1548
    %v1965 = vpack.c.b16 %v1557, %v1549
    %v1966 = vpack.c.b16 %v1558, %v1550
    %v1967 = vpack.c.b16 %v1567, %v1559
    %v1968 = vpack.c.b16 %v1568, %v1560
    %v1969 = vpack.c.b16 %v1569, %v1561
    %v1970 = vpack.c.b16 %v1570, %v1562
    %v1971 = vpack.c.b16 %v1571, %v1563
    %v1972 = vpack.c.b16 %v1572, %v1564
    %v1973 = vpack.c.b16 %v1573, %v1565
    %v1974 = vpack.c.b16 %v1574, %v1566
    %v1975 = vpack.c.b16 %v1583, %v1575
    %v1976 = vpack.c.b16 %v1584, %v1576
    %v1977 = vpack.c.b16 %v1585, %v1577
    %v1978 = vpack.c.b16 %v1586, %v1578
    %v1979 = vpack.c.b16 %v1587, %v1579
    %v1980 = vpack.c.b16 %v1588, %v1580
    %v1981 = vpack.c.b16 %v1589, %v1581
    %v1982 = vpack.c.b16 %v1590, %v1582
    %v1983 = vpack.c.b16 %v1599, %v1591
    %v1984 = vpack.c.b16 %v1600, %v1592
    %v1985 = vpack.c.b16 %v1601, %v1593
    %v1986 = vpack.c.b16 %v1602, %v1594
    %v1987 = vpack.c.b16 %v1603, %v1595
    %v1988 = vpack.c.b16 %v1604, %v1596
    %v1989 = vpack.c.b16 %v1605, %v1597
    %v1990 = vpack.c.b16 %v1606, %v1598
    %v1991 = vpack.c.b16 %v1615, %v1607
    %v1992 = vpack.c.b16 %v1616, %v1608
    %v1993 = vpack.c.b16 %v1617, %v1609
    %v1994 = vpack.c.b16 %v1618, %v1610
    %v1995 = vpack.c.b16 %v1619, %v1611
    %v1996 = vpack.c.b16 %v1620, %v1612
    %v1997 = vpack.c.b16 %v1621, %v1613
    %v1998 = vpack.c.b16 %v1622, %v1614
    %v1999 = vpack.c.b16 %v1631, %v1623
    %v2000 = vpack.c.b16 %v1632, %v1624
    %v2001 = vpack.c.b16 %v1633, %v1625
    %v2002 = vpack.c.b16 %v1634, %v1626
    %v2003 = vpack.c.b16 %v1635, %v1627
    %v2004 = vpack.c.b16 %v1636, %v1628
    %v2005 = vpack.c.b16 %v1637, %v1629
    %v2006 = vpack.c.b16 %v1638, %v1630
    %v2007 = vpack.c.b16 %v1647, %v1639
    %v2008 = vpack.c.b16 %v1648, %v1640
    %v2009 = vpack.c.b16 %v1649, %v1641
    %v2010 = vpack.c.b16 %v1650, %v1642
    %v2011 = vpack.c.b16 %v1651, %v1643
    %v2012 = vpack.c.b16 %v1652, %v1644
    %v2013 = vpack.c.b16 %v1653, %v1645
    %v2014 = vpack.c.b16 %v1654, %v1646
    %v2015 = vpack.c.b16 %v1663, %v1655
    %v2016 = vpack.c.b16 %v1664, %v1656
    %v2017 = vpack.c.b16 %v1665, %v1657
    %v2018 = vpack.c.b16 %v1666, %v1658
    %v2019 = vpack.c.b16 %v1667, %v1659
    %v2020 = vpack.c.b16 %v1668, %v1660
    %v2021 = vpack.c.b16 %v1669, %v1661
    %v2022 = vpack.c.b16 %v1670, %v1662
    %v2023 = vpack.c.b16 %v1679, %v1671
    %v2024 = vpack.c.b16 %v1680, %v1672
    %v2025 = vpack.c.b16 %v1681, %v1673
    %v2026 = vpack.c.b16 %v1682, %v1674
    %v2027 = vpack.c.b16 %v1683, %v1675
    %v2028 = vpack.c.b16 %v1684, %v1676
    %v2029 = vpack.c.b16 %v1685, %v1677
    %v2030 = vpack.c.b16 %v1686, %v1678
    %v2031 = vpack.c.b16 %v1695, %v1687
    %v2032 = vpack.c.b16 %v1696, %v1688
    %v2033 = vpack.c.b16 %v1697, %v1689
    %v2034 = vpack.c.b16 %v1698, %v1690
    %v2035 = vpack.c.b16 %v1699, %v1691
    %v2036 = vpack.c.b16 %v1700, %v1692
    %v2037 = vpack.c.b16 %v1701, %v1693
    %v2038 = vpack.c.b16 %v1702, %v1694
    %v2039 = vpack.c.b16 %v1711, %v1703
    %v2040 = vpack.c.b16 %v1712, %v1704
    %v2041 = vpack.c.b16 %v1713, %v1705
    %v2042 = vpack.c.b16 %v1714, %v1706
    %v2043 = vpack.c.b16 %v1715, %v1707
    %v2044 = vpack.c.b16 %v1716, %v1708
    %v2045 = vpack.c.b16 %v1717, %v1709
    %v2046 = vpack.c.b16 %v1718, %v1710
    %v2047 = vpack.c.b16 %v1727, %v1719
    %v2048 = vpack.c.b16 %v1728, %v1720
    %v2049 = vpack.c.b16 %v1729, %v1721
    %v2050 = vpack.c.b16 %v1730, %v1722
    %v2051 = vpack.c.b16 %v1731, %v1723
    %v2052 = vpack.c.b16 %v1732, %v1724
    %v2053 = vpack.c.b16 %v1733, %v1725
    %v2054 = vpack.c.b16 %v1734, %v1726
    %v2055 = vpack.c.b16 %v1743, %v1735
    %v2056 = vpack.c.b16 %v1744, %v1736
    %v2057 = vpack.c.b16 %v1745, %v1737
    %v2058 = vpack.c.b16 %v1746, %v1738
    %v2059 = vpack.c.b16 %v1747, %v1739
    %v2060 = vpack.c.b16 %v1748, %v1740
    %v2061 = vpack.c.b16 %v1749, %v1741
    %v2062 = vpack.c.b16 %v1750, %v1742
    %v2063 = vpack.c.b16 %v1759, %v1751
    %v2064 = vpack.c.b16 %v1760, %v1752
    %v2065 = vpack.c.b16 %v1761, %v1753
    %v2066 = vpack.c.b16 %v1762, %v1754
    %v2067 = vpack.c.b16 %v1763, %v1755
    %v2068 = vpack.c.b16 %v1764, %v1756
    %v2069 = vpack.c.b16 %v1765, %v1757
    %v2070 = vpack.c.b16 %v1766, %v1758
    %v2071 = vpack.c.b16 %v1775, %v1767
    %v2072 = vpack.c.b16 %v1776, %v1768
    %v2073 = vpack.c.b16 %v1777, %v1769
    %v2074 = vpack.c.b16 %v1778, %v1770
    %v2075 = vpack.c.b16 %v1779, %v1771
    %v2076 = vpack.c.b16 %v1780, %v1772
    %v2077 = vpack.c.b16 %v1781, %v1773
    %v2078 = vpack.c.b16 %v1782, %v1774
    %v2079 = vpack.c.b16 %v1791, %v1783
    %v2080 = vpack.c.b16 %v1792, %v1784
    %v2081 = vpack.c.b16 %v1793, %v1785
    %v2082 = vpack.c.b16 %v1794, %v1786
    %v2083 = vpack.c.b16 %v1795, %v1787
    %v2084 = vpack.c.b16 %v1796, %v1788
    %v2085 = vpack.c.b16 %v1797, %v1789
    %v2086 = vpack.c.b16 %v1798, %v1790
    %v2087 = vpack.c.b16 %v1807, %v1799
    %v2088 = vpack.c.b16 %v1808, %v1800
    %v2089 = vpack.c.b16 %v1809, %v1801
    %v2090 = vpack.c.b16 %v1810, %v1802
    %v2091 = vpack.c.b16 %v1811, %v1803
    %v2092 = vpack.c.b16 %v1812, %v1804
    %v2093 = vpack.c.b16 %v1813, %v1805
    %v2094 = vpack.c.b16 %v1814, %v1806
    %v2095 = vpack.c.b16 %v1823, %v1815
    %v2096 = vpack.c.b16 %v1824, %v1816
    %v2097 = vpack.c.b16 %v1825, %v1817
    %v2098 = vpack.c.b16 %v1826, %v1818
    %v2099 = vpack.c.b16 %v1827, %v1819
    %v2100 = vpack.c.b16 %v1828, %v1820
    %v2101 = vpack.c.b16 %v1829, %v1821
    %v2102 = vpack.c.b16 %v1830, %v1822
    %v2103 = vpack.c.b16 %v1839, %v1831
    %v2104 = vpack.c.b16 %v1840, %v1832
    %v2105 = vpack.c.b16 %v1841, %v1833
    %v2106 = vpack.c.b16 %v1842, %v1834
    %v2107 = vpack.c.b16 %v1843, %v1835
    %v2108 = vpack.c.b16 %v1844, %v1836
    %v2109 = vpack.c.b16 %v1845, %v1837
    %v2110 = vpack.c.b16 %v1846, %v1838
    %v2111 = vpack.c.b16 %v1855, %v1847
    %v2112 = vpack.c.b16 %v1856, %v1848
    %v2113 = vpack.c.b16 %v1857, %v1849
    %v2114 = vpack.c.b16 %v1858, %v1850
    %v2115 = vpack.c.b16 %v1859, %v1851
    %v2116 = vpack.c.b16 %v1860, %v1852
    %v2117 = vpack.c.b16 %v1861, %v1853
    %v2118 = vpack.c.b16 %v1862, %v1854
    %2375 = vmatprep.subr.bf16.mxu0 %v1864
    %2376 = vmatpush1.bf16.msra.mxu0 %v1863
    %2377 = vmatprep.subr.bf16.mxu0 %v1872
    %2378 = vmatpush1.bf16.msra.mxu0 %v1871
    %2379 = vmatprep.subr.bf16.mxu0 %v1880
    %2380 = vmatpush1.bf16.msra.mxu0 %v1879
    %2381 = vmatprep.subr.bf16.mxu0 %v1888
    %2382 = vmatpush1.bf16.msra.mxu0 %v1887
    %2383 = vmatprep.subr.bf16.mxu0 %v1896
    %2384 = vmatpush1.bf16.msra.mxu0 %v1895
    %2385 = vmatprep.subr.bf16.mxu0 %v1904
    %2386 = vmatpush1.bf16.msra.mxu0 %v1903
    %2387 = vmatprep.subr.bf16.mxu0 %v1912
    %2388 = vmatpush1.bf16.msra.mxu0 %v1911
    %2389 = vmatprep.subr.bf16.mxu0 %v1920
    %2390 = vmatpush1.bf16.msra.mxu0 %v1919
    %2391 = vmatprep.subr.bf16.mxu0 %v1928
    %2392 = vmatpush1.bf16.msra.mxu0 %v1927
    %2393 = vmatprep.subr.bf16.mxu0 %v1936
    %2394 = vmatpush1.bf16.msra.mxu0 %v1935
    %2395 = vmatprep.subr.bf16.mxu0 %v1944
    %2396 = vmatpush1.bf16.msra.mxu0 %v1943
    %2397 = vmatprep.subr.bf16.mxu0 %v1952
    %2398 = vmatpush1.bf16.msra.mxu0 %v1951
    %2399 = vmatprep.subr.bf16.mxu0 %v1960
    %2400 = vmatpush1.bf16.msra.mxu0 %v1959
    %2401 = vmatprep.subr.bf16.mxu0 %v1968
    %2402 = vmatpush1.bf16.msra.mxu0 %v1967
    %2403 = vmatprep.subr.bf16.mxu0 %v1976
    %2404 = vmatpush1.bf16.msra.mxu0 %v1975
    %2405 = vmatprep.subr.bf16.mxu0 %v1984
    %2406 = vmatpush1.bf16.msra.mxu0 %v1983
    %2407 = vmatprep.mubr.bf16.mxu0 %v782
    %2408 = vmatmul.mubr.bf16.gmra.mrb[0].mxu0 %v781
    %v2409 = vpop.f32.mrb[0].mxu0
    %v2410 = vadd.f32 %v1058, %v2409
    %v2411 = vpop.f32.mrb[0].mxu0
    %v2412 = vadd.f32 %v1062, %v2411
    %v2413 = vpop.f32.mrb[0].mxu0
    %v2414 = vadd.f32 %v1058, %v2413
    %v2415 = vpop.f32.mrb[0].mxu0
    %v2416 = vadd.f32 %v1062, %v2415
    %2417 = vmatprep.mubr.bf16.mxu0 %v786
    %2418 = vmatmul.mubr.bf16.gmra.mrb[0].mxu0 %v785
    %v2419 = vpop.f32.mrb[0].mxu0
    %v2420 = vadd.f32 %v1058, %v2419
    %v2421 = vpop.f32.mrb[0].mxu0
    %v2422 = vadd.f32 %v1062, %v2421
    %v2423 = vpop.f32.mrb[0].mxu0
    %v2424 = vadd.f32 %v1058, %v2423
    %v2425 = vpop.f32.mrb[0].mxu0
    %v2426 = vadd.f32 %v1062, %v2425
    %2427 = vmatprep.mubr.bf16.mxu0 %v790
    %2428 = vmatmul.mubr.bf16.gmra.mrb[0].mxu0 %v789
    %v2429 = vpop.f32.mrb[0].mxu0
    %v2430 = vadd.f32 %v1058, %v2429
    %v2431 = vpop.f32.mrb[0].mxu0
    %v2432 = vadd.f32 %v1062, %v2431
    %v2433 = vpop.f32.mrb[0].mxu0
    %v2434 = vadd.f32 %v1058, %v2433
    %v2435 = vpop.f32.mrb[0].mxu0
    %v2436 = vadd.f32 %v1062, %v2435
    %2437 = vmatprep.mubr.bf16.mxu0 %v794
    %2438 = vmatmul.mubr.bf16.gmra.mrb[0].mxu0 %v793
    %v2439 = vpop.f32.mrb[0].mxu0
    %v2440 = vadd.f32 %v1058, %v2439
    %v2441 = vpop.f32.mrb[0].mxu0
    %v2442 = vadd.f32 %v1062, %v2441
    %v2443 = vpop.f32.mrb[0].mxu0
    %v2444 = vadd.f32 %v1058, %v2443
    %v2445 = vpop.f32.mrb[0].mxu0
    %v2446 = vadd.f32 %v1062, %v2445
    %2447 = vdwg.mxu0
    %2448 = vmatprep.subr.bf16.mxu0 %v1992
    %2449 = vmatpush1.bf16.msra.mxu0 %v1991
    %2450 = vmatprep.subr.bf16.mxu0 %v2000
    %2451 = vmatpush1.bf16.msra.mxu0 %v1999
    %2452 = vmatprep.subr.bf16.mxu0 %v2008
    %2453 = vmatpush1.bf16.msra.mxu0 %v2007
    %2454 = vmatprep.subr.bf16.mxu0 %v2016
    %2455 = vmatpush1.bf16.msra.mxu0 %v2015
    %2456 = vmatprep.subr.bf16.mxu0 %v2024
    %2457 = vmatpush1.bf16.msra.mxu0 %v2023
    %2458 = vmatprep.subr.bf16.mxu0 %v2032
    %2459 = vmatpush1.bf16.msra.mxu0 %v2031
    %2460 = vmatprep.subr.bf16.mxu0 %v2040
    %2461 = vmatpush1.bf16.msra.mxu0 %v2039
    %2462 = vmatprep.subr.bf16.mxu0 %v2048
    %2463 = vmatpush1.bf16.msra.mxu0 %v2047
    %2464 = vmatprep.subr.bf16.mxu0 %v2056
    %2465 = vmatpush1.bf16.msra.mxu0 %v2055
    %2466 = vmatprep.subr.bf16.mxu0 %v2064
    %2467 = vmatpush1.bf16.msra.mxu0 %v2063
    %2468 = vmatprep.subr.bf16.mxu0 %v2072
    %2469 = vmatpush1.bf16.msra.mxu0 %v2071
    %2470 = vmatprep.subr.bf16.mxu0 %v2080
    %2471 = vmatpush1.bf16.msra.mxu0 %v2079
    %2472 = vmatprep.subr.bf16.mxu0 %v2088
    %2473 = vmatpush1.bf16.msra.mxu0 %v2087
    %2474 = vmatprep.subr.bf16.mxu0 %v2096
    %2475 = vmatpush1.bf16.msra.mxu0 %v2095
    %2476 = vmatprep.subr.bf16.mxu0 %v2104
    %2477 = vmatpush1.bf16.msra.mxu0 %v2103
    %2478 = vmatprep.subr.bf16.mxu0 %v2112
    %2479 = vmatpush1.bf16.msra.mxu0 %v2111
    %2480 = vmatprep.mubr.bf16.mxu0 %v784
    %2481 = vmatmul.mubr.bf16.gmra.mrb[0].mxu0 %v783
    %v2482 = vpop.f32.mrb[0].mxu0
    %v2483 = vadd.f32 %v2410, %v2482
    %v2484 = vpop.f32.mrb[0].mxu0
    %v2485 = vadd.f32 %v2412, %v2484
    %v2486 = vpop.f32.mrb[0].mxu0
    %v2487 = vadd.f32 %v2414, %v2486
    %v2488 = vpop.f32.mrb[0].mxu0
    %v2489 = vadd.f32 %v2416, %v2488
    %2490 = vmatprep.mubr.bf16.mxu0 %v788
    %2491 = vmatmul.mubr.bf16.gmra.mrb[0].mxu0 %v787
    %v2492 = vpop.f32.mrb[0].mxu0
    %v2493 = vadd.f32 %v2420, %v2492
    %v2494 = vpop.f32.mrb[0].mxu0
    %v2495 = vadd.f32 %v2422, %v2494
    %v2496 = vpop.f32.mrb[0].mxu0
    %v2497 = vadd.f32 %v2424, %v2496
    %v2498 = vpop.f32.mrb[0].mxu0
    %v2499 = vadd.f32 %v2426, %v2498
    %2500 = vmatprep.mubr.bf16.mxu0 %v792
    %2501 = vmatmul.mubr.bf16.gmra.mrb[0].mxu0 %v791
    %v2502 = vpop.f32.mrb[0].mxu0
    %v2503 = vadd.f32 %v2430, %v2502
    %v2504 = vpop.f32.mrb[0].mxu0
    %v2505 = vadd.f32 %v2432, %v2504
    %v2506 = vpop.f32.mrb[0].mxu0
    %v2507 = vadd.f32 %v2434, %v2506
    %v2508 = vpop.f32.mrb[0].mxu0
    %v2509 = vadd.f32 %v2436, %v2508
    %2510 = vmatprep.mubr.bf16.mxu0 %v796
    %2511 = vmatmul.mubr.bf16.gmra.mrb[0].mxu0 %v795
    %v2512 = vpop.f32.mrb[0].mxu0
    %v2513 = vadd.f32 %v2440, %v2512
    %v2514 = vpop.f32.mrb[0].mxu0
    %v2515 = vadd.f32 %v2442, %v2514
    %v2516 = vpop.f32.mrb[0].mxu0
    %v2517 = vadd.f32 %v2444, %v2516
    %v2518 = vpop.f32.mrb[0].mxu0
    %v2519 = vadd.f32 %v2446, %v2518
    %2520 = vdwg.mxu0
    %2521 = vmatprep.subr.bf16.mxu0 %v1866
    %2522 = vmatpush1.bf16.msra.mxu0 %v1865
    %2523 = vmatprep.subr.bf16.mxu0 %v1874
    %2524 = vmatpush1.bf16.msra.mxu0 %v1873
    %2525 = vmatprep.subr.bf16.mxu0 %v1882
    %2526 = vmatpush1.bf16.msra.mxu0 %v1881
    %2527 = vmatprep.subr.bf16.mxu0 %v1890
    %2528 = vmatpush1.bf16.msra.mxu0 %v1889
    %2529 = vmatprep.subr.bf16.mxu0 %v1898
    %2530 = vmatpush1.bf16.msra.mxu0 %v1897
    %2531 = vmatprep.subr.bf16.mxu0 %v1906
    %2532 = vmatpush1.bf16.msra.mxu0 %v1905
    %2533 = vmatprep.subr.bf16.mxu0 %v1914
    %2534 = vmatpush1.bf16.msra.mxu0 %v1913
    %2535 = vmatprep.subr.bf16.mxu0 %v1922
    %2536 = vmatpush1.bf16.msra.mxu0 %v1921
    %2537 = vmatprep.subr.bf16.mxu0 %v1930
    %2538 = vmatpush1.bf16.msra.mxu0 %v1929
    %2539 = vmatprep.subr.bf16.mxu0 %v1938
    %2540 = vmatpush1.bf16.msra.mxu0 %v1937
    %2541 = vmatprep.subr.bf16.mxu0 %v1946
    %2542 = vmatpush1.bf16.msra.mxu0 %v1945
    %2543 = vmatprep.subr.bf16.mxu0 %v1954
    %2544 = vmatpush1.bf16.msra.mxu0 %v1953
    %2545 = vmatprep.subr.bf16.mxu0 %v1962
    %2546 = vmatpush1.bf16.msra.mxu0 %v1961
    %2547 = vmatprep.subr.bf16.mxu0 %v1970
    %2548 = vmatpush1.bf16.msra.mxu0 %v1969
    %2549 = vmatprep.subr.bf16.mxu0 %v1978
    %2550 = vmatpush1.bf16.msra.mxu0 %v1977
    %2551 = vmatprep.subr.bf16.mxu0 %v1986
    %2552 = vmatpush1.bf16.msra.mxu0 %v1985
    %2553 = vmatprep.mubr.bf16.mxu0 %v782
    %2554 = vmatmul.mubr.bf16.gmra.mrb[0].mxu0 %v781
    %v2555 = vpop.f32.mrb[0].mxu0
    %v2556 = vadd.f32 %v1066, %v2555
    %v2557 = vpop.f32.mrb[0].mxu0
    %v2558 = vadd.f32 %v1070, %v2557
    %v2559 = vpop.f32.mrb[0].mxu0
    %v2560 = vadd.f32 %v1066, %v2559
    %v2561 = vpop.f32.mrb[0].mxu0
    %v2562 = vadd.f32 %v1070, %v2561
    %2563 = vmatprep.mubr.bf16.mxu0 %v786
    %2564 = vmatmul.mubr.bf16.gmra.mrb[0].mxu0 %v785
    %v2565 = vpop.f32.mrb[0].mxu0
    %v2566 = vadd.f32 %v1066, %v2565
    %v2567 = vpop.f32.mrb[0].mxu0
    %v2568 = vadd.f32 %v1070, %v2567
    %v2569 = vpop.f32.mrb[0].mxu0
    %v2570 = vadd.f32 %v1066, %v2569
    %v2571 = vpop.f32.mrb[0].mxu0
    %v2572 = vadd.f32 %v1070, %v2571
    %2573 = vmatprep.mubr.bf16.mxu0 %v790
    %2574 = vmatmul.mubr.bf16.gmra.mrb[0].mxu0 %v789
    %v2575 = vpop.f32.mrb[0].mxu0
    %v2576 = vadd.f32 %v1066, %v2575
    %v2577 = vpop.f32.mrb[0].mxu0
    %v2578 = vadd.f32 %v1070, %v2577
    %v2579 = vpop.f32.mrb[0].mxu0
    %v2580 = vadd.f32 %v1066, %v2579
    %v2581 = vpop.f32.mrb[0].mxu0
    %v2582 = vadd.f32 %v1070, %v2581
    %2583 = vmatprep.mubr.bf16.mxu0 %v794
    %2584 = vmatmul.mubr.bf16.gmra.mrb[0].mxu0 %v793
    %v2585 = vpop.f32.mrb[0].mxu0
    %v2586 = vadd.f32 %v1066, %v2585
    %v2587 = vpop.f32.mrb[0].mxu0
    %v2588 = vadd.f32 %v1070, %v2587
    %v2589 = vpop.f32.mrb[0].mxu0
    %v2590 = vadd.f32 %v1066, %v2589
    %v2591 = vpop.f32.mrb[0].mxu0
    %v2592 = vadd.f32 %v1070, %v2591
    %2593 = vdwg.mxu0
    %2594 = vmatprep.subr.bf16.mxu0 %v1994
    %2595 = vmatpush1.bf16.msra.mxu0 %v1993
    %2596 = vmatprep.subr.bf16.mxu0 %v2002
    %2597 = vmatpush1.bf16.msra.mxu0 %v2001
    %2598 = vmatprep.subr.bf16.mxu0 %v2010
    %2599 = vmatpush1.bf16.msra.mxu0 %v2009
    %2600 = vmatprep.subr.bf16.mxu0 %v2018
    %2601 = vmatpush1.bf16.msra.mxu0 %v2017
    %2602 = vmatprep.subr.bf16.mxu0 %v2026
    %2603 = vmatpush1.bf16.msra.mxu0 %v2025
    %2604 = vmatprep.subr.bf16.mxu0 %v2034
    %2605 = vmatpush1.bf16.msra.mxu0 %v2033
    %2606 = vmatprep.subr.bf16.mxu0 %v2042
    %2607 = vmatpush1.bf16.msra.mxu0 %v2041
    %2608 = vmatprep.subr.bf16.mxu0 %v2050
    %2609 = vmatpush1.bf16.msra.mxu0 %v2049
    %2610 = vmatprep.subr.bf16.mxu0 %v2058
    %2611 = vmatpush1.bf16.msra.mxu0 %v2057
    %2612 = vmatprep.subr.bf16.mxu0 %v2066
    %2613 = vmatpush1.bf16.msra.mxu0 %v2065
    %2614 = vmatprep.subr.bf16.mxu0 %v2074
    %2615 = vmatpush1.bf16.msra.mxu0 %v2073
    %2616 = vmatprep.subr.bf16.mxu0 %v2082
    %2617 = vmatpush1.bf16.msra.mxu0 %v2081
    %2618 = vmatprep.subr.bf16.mxu0 %v2090
    %2619 = vmatpush1.bf16.msra.mxu0 %v2089
    %2620 = vmatprep.subr.bf16.mxu0 %v2098
    %2621 = vmatpush1.bf16.msra.mxu0 %v2097
    %2622 = vmatprep.subr.bf16.mxu0 %v2106
    %2623 = vmatpush1.bf16.msra.mxu0 %v2105
    %2624 = vmatprep.subr.bf16.mxu0 %v2114
    %2625 = vmatpush1.bf16.msra.mxu0 %v2113
    %2626 = vmatprep.mubr.bf16.mxu0 %v784
    %2627 = vmatmul.mubr.bf16.gmra.mrb[0].mxu0 %v783
    %v2628 = vpop.f32.mrb[0].mxu0
    %v2629 = vadd.f32 %v2556, %v2628
    %v2630 = vpop.f32.mrb[0].mxu0
    %v2631 = vadd.f32 %v2558, %v2630
    %v2632 = vpop.f32.mrb[0].mxu0
    %v2633 = vadd.f32 %v2560, %v2632
    %v2634 = vpop.f32.mrb[0].mxu0
    %v2635 = vadd.f32 %v2562, %v2634
    %2636 = vmatprep.mubr.bf16.mxu0 %v788
    %2637 = vmatmul.mubr.bf16.gmra.mrb[0].mxu0 %v787
    %v2638 = vpop.f32.mrb[0].mxu0
    %v2639 = vadd.f32 %v2566, %v2638
    %v2640 = vpop.f32.mrb[0].mxu0
    %v2641 = vadd.f32 %v2568, %v2640
    %v2642 = vpop.f32.mrb[0].mxu0
    %v2643 = vadd.f32 %v2570, %v2642
    %v2644 = vpop.f32.mrb[0].mxu0
    %v2645 = vadd.f32 %v2572, %v2644
    %2646 = vmatprep.mubr.bf16.mxu0 %v792
    %2647 = vmatmul.mubr.bf16.gmra.mrb[0].mxu0 %v791
    %v2648 = vpop.f32.mrb[0].mxu0
    %v2649 = vadd.f32 %v2576, %v2648
    %v2650 = vpop.f32.mrb[0].mxu0
    %v2651 = vadd.f32 %v2578, %v2650
    %v2652 = vpop.f32.mrb[0].mxu0
    %v2653 = vadd.f32 %v2580, %v2652
    %v2654 = vpop.f32.mrb[0].mxu0
    %v2655 = vadd.f32 %v2582, %v2654
    %2656 = vmatprep.mubr.bf16.mxu0 %v796
    %2657 = vmatmul.mubr.bf16.gmra.mrb[0].mxu0 %v795
    %v2658 = vpop.f32.mrb[0].mxu0
    %v2659 = vadd.f32 %v2586, %v2658
    %v2660 = vpop.f32.mrb[0].mxu0
    %v2661 = vadd.f32 %v2588, %v2660
    %v2662 = vpop.f32.mrb[0].mxu0
    %v2663 = vadd.f32 %v2590, %v2662
    %v2664 = vpop.f32.mrb[0].mxu0
    %v2665 = vadd.f32 %v2592, %v2664
    %2666 = vdwg.mxu0
    %2667 = vmatprep.subr.bf16.mxu0 %v1868
    %2668 = vmatpush1.bf16.msra.mxu0 %v1867
    %2669 = vmatprep.subr.bf16.mxu0 %v1876
    %2670 = vmatpush1.bf16.msra.mxu0 %v1875
    %2671 = vmatprep.subr.bf16.mxu0 %v1884
    %2672 = vmatpush1.bf16.msra.mxu0 %v1883
    %2673 = vmatprep.subr.bf16.mxu0 %v1892
    %2674 = vmatpush1.bf16.msra.mxu0 %v1891
    %2675 = vmatprep.subr.bf16.mxu0 %v1900
    %2676 = vmatpush1.bf16.msra.mxu0 %v1899
    %2677 = vmatprep.subr.bf16.mxu0 %v1908
    %2678 = vmatpush1.bf16.msra.mxu0 %v1907
    %2679 = vmatprep.subr.bf16.mxu0 %v1916
    %2680 = vmatpush1.bf16.msra.mxu0 %v1915
    %2681 = vmatprep.subr.bf16.mxu0 %v1924
    %2682 = vmatpush1.bf16.msra.mxu0 %v1923
    %2683 = vmatprep.subr.bf16.mxu0 %v1932
    %2684 = vmatpush1.bf16.msra.mxu0 %v1931
    %2685 = vmatprep.subr.bf16.mxu0 %v1940
    %2686 = vmatpush1.bf16.msra.mxu0 %v1939
    %2687 = vmatprep.subr.bf16.mxu0 %v1948
    %2688 = vmatpush1.bf16.msra.mxu0 %v1947
    %2689 = vmatprep.subr.bf16.mxu0 %v1956
    %2690 = vmatpush1.bf16.msra.mxu0 %v1955
    %2691 = vmatprep.subr.bf16.mxu0 %v1964
    %2692 = vmatpush1.bf16.msra.mxu0 %v1963
    %2693 = vmatprep.subr.bf16.mxu0 %v1972
    %2694 = vmatpush1.bf16.msra.mxu0 %v1971
    %2695 = vmatprep.subr.bf16.mxu0 %v1980
    %2696 = vmatpush1.bf16.msra.mxu0 %v1979
    %2697 = vmatprep.subr.bf16.mxu0 %v1988
    %2698 = vmatpush1.bf16.msra.mxu0 %v1987
    %2699 = vmatprep.mubr.bf16.mxu0 %v782
    %2700 = vmatmul.mubr.bf16.gmra.mrb[0].mxu0 %v781
    %v2701 = vpop.f32.mrb[0].mxu0
    %v2702 = vadd.f32 %v1074, %v2701
    %v2703 = vpop.f32.mrb[0].mxu0
    %v2704 = vadd.f32 %v1078, %v2703
    %v2705 = vpop.f32.mrb[0].mxu0
    %v2706 = vadd.f32 %v1074, %v2705
    %v2707 = vpop.f32.mrb[0].mxu0
    %v2708 = vadd.f32 %v1078, %v2707
    %2709 = vmatprep.mubr.bf16.mxu0 %v786
    %2710 = vmatmul.mubr.bf16.gmra.mrb[0].mxu0 %v785
    %v2711 = vpop.f32.mrb[0].mxu0
    %v2712 = vadd.f32 %v1074, %v2711
    %v2713 = vpop.f32.mrb[0].mxu0
    %v2714 = vadd.f32 %v1078, %v2713
    %v2715 = vpop.f32.mrb[0].mxu0
    %v2716 = vadd.f32 %v1074, %v2715
    %v2717 = vpop.f32.mrb[0].mxu0
    %v2718 = vadd.f32 %v1078, %v2717
    %2719 = vmatprep.mubr.bf16.mxu0 %v790
    %2720 = vmatmul.mubr.bf16.gmra.mrb[0].mxu0 %v789
    %v2721 = vpop.f32.mrb[0].mxu0
    %v2722 = vadd.f32 %v1074, %v2721
    %v2723 = vpop.f32.mrb[0].mxu0
    %v2724 = vadd.f32 %v1078, %v2723
    %v2725 = vpop.f32.mrb[0].mxu0
    %v2726 = vadd.f32 %v1074, %v2725
    %v2727 = vpop.f32.mrb[0].mxu0
    %v2728 = vadd.f32 %v1078, %v2727
    %2729 = vmatprep.mubr.bf16.mxu0 %v794
    %2730 = vmatmul.mubr.bf16.gmra.mrb[0].mxu0 %v793
    %v2731 = vpop.f32.mrb[0].mxu0
    %v2732 = vadd.f32 %v1074, %v2731
    %v2733 = vpop.f32.mrb[0].mxu0
    %v2734 = vadd.f32 %v1078, %v2733
    %v2735 = vpop.f32.mrb[0].mxu0
    %v2736 = vadd.f32 %v1074, %v2735
    %v2737 = vpop.f32.mrb[0].mxu0
    %v2738 = vadd.f32 %v1078, %v2737
    %2739 = vdwg.mxu0
    %2740 = vmatprep.subr.bf16.mxu0 %v1996
    %2741 = vmatpush1.bf16.msra.mxu0 %v1995
    %2742 = vmatprep.subr.bf16.mxu0 %v2004
    %2743 = vmatpush1.bf16.msra.mxu0 %v2003
    %2744 = vmatprep.subr.bf16.mxu0 %v2012
    %2745 = vmatpush1.bf16.msra.mxu0 %v2011
    %2746 = vmatprep.subr.bf16.mxu0 %v2020
    %2747 = vmatpush1.bf16.msra.mxu0 %v2019
    %2748 = vmatprep.subr.bf16.mxu0 %v2028
    %2749 = vmatpush1.bf16.msra.mxu0 %v2027
    %2750 = vmatprep.subr.bf16.mxu0 %v2036
    %2751 = vmatpush1.bf16.msra.mxu0 %v2035
    %2752 = vmatprep.subr.bf16.mxu0 %v2044
    %2753 = vmatpush1.bf16.msra.mxu0 %v2043
    %2754 = vmatprep.subr.bf16.mxu0 %v2052
    %2755 = vmatpush1.bf16.msra.mxu0 %v2051
    %2756 = vmatprep.subr.bf16.mxu0 %v2060
    %2757 = vmatpush1.bf16.msra.mxu0 %v2059
    %2758 = vmatprep.subr.bf16.mxu0 %v2068
    %2759 = vmatpush1.bf16.msra.mxu0 %v2067
    %2760 = vmatprep.subr.bf16.mxu0 %v2076
    %2761 = vmatpush1.bf16.msra.mxu0 %v2075
    %2762 = vmatprep.subr.bf16.mxu0 %v2084
    %2763 = vmatpush1.bf16.msra.mxu0 %v2083
    %2764 = vmatprep.subr.bf16.mxu0 %v2092
    %2765 = vmatpush1.bf16.msra.mxu0 %v2091
    %2766 = vmatprep.subr.bf16.mxu0 %v2100
    %2767 = vmatpush1.bf16.msra.mxu0 %v2099
    %2768 = vmatprep.subr.bf16.mxu0 %v2108
    %2769 = vmatpush1.bf16.msra.mxu0 %v2107
    %2770 = vmatprep.subr.bf16.mxu0 %v2116
    %2771 = vmatpush1.bf16.msra.mxu0 %v2115
    %2772 = vmatprep.mubr.bf16.mxu0 %v784
    %2773 = vmatmul.mubr.bf16.gmra.mrb[0].mxu0 %v783
    %v2774 = vpop.f32.mrb[0].mxu0
    %v2775 = vadd.f32 %v2702, %v2774
    %v2776 = vpop.f32.mrb[0].mxu0
    %v2777 = vadd.f32 %v2704, %v2776
    %v2778 = vpop.f32.mrb[0].mxu0
    %v2779 = vadd.f32 %v2706, %v2778
    %v2780 = vpop.f32.mrb[0].mxu0
    %v2781 = vadd.f32 %v2708, %v2780
    %2782 = vmatprep.mubr.bf16.mxu0 %v788
    %2783 = vmatmul.mubr.bf16.gmra.mrb[0].mxu0 %v787
    %v2784 = vpop.f32.mrb[0].mxu0
    %v2785 = vadd.f32 %v2712, %v2784
    %v2786 = vpop.f32.mrb[0].mxu0
    %v2787 = vadd.f32 %v2714, %v2786
    %v2788 = vpop.f32.mrb[0].mxu0
    %v2789 = vadd.f32 %v2716, %v2788
    %v2790 = vpop.f32.mrb[0].mxu0
    %v2791 = vadd.f32 %v2718, %v2790
    %2792 = vmatprep.mubr.bf16.mxu0 %v792
    %2793 = vmatmul.mubr.bf16.gmra.mrb[0].mxu0 %v791
    %v2794 = vpop.f32.mrb[0].mxu0
    %v2795 = vadd.f32 %v2722, %v2794
    %v2796 = vpop.f32.mrb[0].mxu0
    %v2797 = vadd.f32 %v2724, %v2796
    %v2798 = vpop.f32.mrb[0].mxu0
    %v2799 = vadd.f32 %v2726, %v2798
    %v2800 = vpop.f32.mrb[0].mxu0
    %v2801 = vadd.f32 %v2728, %v2800
    %2802 = vmatprep.mubr.bf16.mxu0 %v796
    %2803 = vmatmul.mubr.bf16.gmra.mrb[0].mxu0 %v795
    %v2804 = vpop.f32.mrb[0].mxu0
    %v2805 = vadd.f32 %v2732, %v2804
    %v2806 = vpop.f32.mrb[0].mxu0
    %v2807 = vadd.f32 %v2734, %v2806
    %v2808 = vpop.f32.mrb[0].mxu0
    %v2809 = vadd.f32 %v2736, %v2808
    %v2810 = vpop.f32.mrb[0].mxu0
    %v2811 = vadd.f32 %v2738, %v2810
    %2812 = vdwg.mxu0
    %2813 = vmatprep.subr.bf16.mxu0 %v1870
    %2814 = vmatpush1.bf16.msra.mxu0 %v1869
    %2815 = vmatprep.subr.bf16.mxu0 %v1878
    %2816 = vmatpush1.bf16.msra.mxu0 %v1877
    %2817 = vmatprep.subr.bf16.mxu0 %v1886
    %2818 = vmatpush1.bf16.msra.mxu0 %v1885
    %2819 = vmatprep.subr.bf16.mxu0 %v1894
    %2820 = vmatpush1.bf16.msra.mxu0 %v1893
    %2821 = vmatprep.subr.bf16.mxu0 %v1902
    %2822 = vmatpush1.bf16.msra.mxu0 %v1901
    %2823 = vmatprep.subr.bf16.mxu0 %v1910
    %2824 = vmatpush1.bf16.msra.mxu0 %v1909
    %2825 = vmatprep.subr.bf16.mxu0 %v1918
    %2826 = vmatpush1.bf16.msra.mxu0 %v1917
    %2827 = vmatprep.subr.bf16.mxu0 %v1926
    %2828 = vmatpush1.bf16.msra.mxu0 %v1925
    %2829 = vmatprep.subr.bf16.mxu0 %v1934
    %2830 = vmatpush1.bf16.msra.mxu0 %v1933
    %2831 = vmatprep.subr.bf16.mxu0 %v1942
    %2832 = vmatpush1.bf16.msra.mxu0 %v1941
    %2833 = vmatprep.subr.bf16.mxu0 %v1950
    %2834 = vmatpush1.bf16.msra.mxu0 %v1949
    %2835 = vmatprep.subr.bf16.mxu0 %v1958
    %2836 = vmatpush1.bf16.msra.mxu0 %v1957
    %2837 = vmatprep.subr.bf16.mxu0 %v1966
    %2838 = vmatpush1.bf16.msra.mxu0 %v1965
    %2839 = vmatprep.subr.bf16.mxu0 %v1974
    %2840 = vmatpush1.bf16.msra.mxu0 %v1973
    %2841 = vmatprep.subr.bf16.mxu0 %v1982
    %2842 = vmatpush1.bf16.msra.mxu0 %v1981
    %2843 = vmatprep.subr.bf16.mxu0 %v1990
    %2844 = vmatpush1.bf16.msra.mxu0 %v1989
    %2845 = vmatprep.mubr.bf16.mxu0 %v782
    %2846 = vmatmul.mubr.bf16.gmra.mrb[0].mxu0 %v781
    %v2847 = vpop.f32.mrb[0].mxu0
    %v2848 = vadd.f32 %v1082, %v2847
    %v2849 = vpop.f32.mrb[0].mxu0
    %v2850 = vadd.f32 %v1086, %v2849
    %v2851 = vpop.f32.mrb[0].mxu0
    %v2852 = vadd.f32 %v1082, %v2851
    %v2853 = vpop.f32.mrb[0].mxu0
    %v2854 = vadd.f32 %v1086, %v2853
    %2855 = vmatprep.mubr.bf16.mxu0 %v786
    %2856 = vmatmul.mubr.bf16.gmra.mrb[0].mxu0 %v785
    %v2857 = vpop.f32.mrb[0].mxu0
    %v2858 = vadd.f32 %v1082, %v2857
    %v2859 = vpop.f32.mrb[0].mxu0
    %v2860 = vadd.f32 %v1086, %v2859
    %v2861 = vpop.f32.mrb[0].mxu0
    %v2862 = vadd.f32 %v1082, %v2861
    %v2863 = vpop.f32.mrb[0].mxu0
    %v2864 = vadd.f32 %v1086, %v2863
    %2865 = vmatprep.mubr.bf16.mxu0 %v790
    %2866 = vmatmul.mubr.bf16.gmra.mrb[0].mxu0 %v789
    %v2867 = vpop.f32.mrb[0].mxu0
    %v2868 = vadd.f32 %v1082, %v2867
    %v2869 = vpop.f32.mrb[0].mxu0
    %v2870 = vadd.f32 %v1086, %v2869
    %v2871 = vpop.f32.mrb[0].mxu0
    %v2872 = vadd.f32 %v1082, %v2871
    %v2873 = vpop.f32.mrb[0].mxu0
    %v2874 = vadd.f32 %v1086, %v2873
    %2875 = vmatprep.mubr.bf16.mxu0 %v794
    %2876 = vmatmul.mubr.bf16.gmra.mrb[0].mxu0 %v793
    %v2877 = vpop.f32.mrb[0].mxu0
    %v2878 = vadd.f32 %v1082, %v2877
    %v2879 = vpop.f32.mrb[0].mxu0
    %v2880 = vadd.f32 %v1086, %v2879
    %v2881 = vpop.f32.mrb[0].mxu0
    %v2882 = vadd.f32 %v1082, %v2881
    %v2883 = vpop.f32.mrb[0].mxu0
    %v2884 = vadd.f32 %v1086, %v2883
    %2885 = vdwg.mxu0
    %2886 = vmatprep.subr.bf16.mxu0 %v1998
    %2887 = vmatpush1.bf16.msra.mxu0 %v1997
    %2888 = vmatprep.subr.bf16.mxu0 %v2006
    %2889 = vmatpush1.bf16.msra.mxu0 %v2005
    %2890 = vmatprep.subr.bf16.mxu0 %v2014
    %2891 = vmatpush1.bf16.msra.mxu0 %v2013
    %2892 = vmatprep.subr.bf16.mxu0 %v2022
    %2893 = vmatpush1.bf16.msra.mxu0 %v2021
    %2894 = vmatprep.subr.bf16.mxu0 %v2030
    %2895 = vmatpush1.bf16.msra.mxu0 %v2029
    %2896 = vmatprep.subr.bf16.mxu0 %v2038
    %2897 = vmatpush1.bf16.msra.mxu0 %v2037
    %2898 = vmatprep.subr.bf16.mxu0 %v2046
    %2899 = vmatpush1.bf16.msra.mxu0 %v2045
    %2900 = vmatprep.subr.bf16.mxu0 %v2054
    %2901 = vmatpush1.bf16.msra.mxu0 %v2053
    %2902 = vmatprep.subr.bf16.mxu0 %v2062
    %2903 = vmatpush1.bf16.msra.mxu0 %v2061
    %2904 = vmatprep.subr.bf16.mxu0 %v2070
    %2905 = vmatpush1.bf16.msra.mxu0 %v2069
    %2906 = vmatprep.subr.bf16.mxu0 %v2078
    %2907 = vmatpush1.bf16.msra.mxu0 %v2077
    %2908 = vmatprep.subr.bf16.mxu0 %v2086
    %2909 = vmatpush1.bf16.msra.mxu0 %v2085
    %2910 = vmatprep.subr.bf16.mxu0 %v2094
    %2911 = vmatpush1.bf16.msra.mxu0 %v2093
    %2912 = vmatprep.subr.bf16.mxu0 %v2102
    %2913 = vmatpush1.bf16.msra.mxu0 %v2101
    %2914 = vmatprep.subr.bf16.mxu0 %v2110
    %2915 = vmatpush1.bf16.msra.mxu0 %v2109
    %2916 = vmatprep.subr.bf16.mxu0 %v2118
    %2917 = vmatpush1.bf16.msra.mxu0 %v2117
    %2918 = vmatprep.mubr.bf16.mxu0 %v784
    %2919 = vmatmul.mubr.bf16.gmra.mrb[0].mxu0 %v783
    %v2920 = vpop.f32.mrb[0].mxu0
    %v2921 = vadd.f32 %v2848, %v2920
    %v2922 = vpop.f32.mrb[0].mxu0
    %v2923 = vadd.f32 %v2850, %v2922
    %v2924 = vpop.f32.mrb[0].mxu0
    %v2925 = vadd.f32 %v2852, %v2924
    %v2926 = vpop.f32.mrb[0].mxu0
    %v2927 = vadd.f32 %v2854, %v2926
    %2928 = vmatprep.mubr.bf16.mxu0 %v788
    %2929 = vmatmul.mubr.bf16.gmra.mrb[0].mxu0 %v787
    %v2930 = vpop.f32.mrb[0].mxu0
    %v2931 = vadd.f32 %v2858, %v2930
    %v2932 = vpop.f32.mrb[0].mxu0
    %v2933 = vadd.f32 %v2860, %v2932
    %v2934 = vpop.f32.mrb[0].mxu0
    %v2935 = vadd.f32 %v2862, %v2934
    %v2936 = vpop.f32.mrb[0].mxu0
    %v2937 = vadd.f32 %v2864, %v2936
    %2938 = vmatprep.mubr.bf16.mxu0 %v792
    %2939 = vmatmul.mubr.bf16.gmra.mrb[0].mxu0 %v791
    %v2940 = vpop.f32.mrb[0].mxu0
    %v2941 = vadd.f32 %v2868, %v2940
    %v2942 = vpop.f32.mrb[0].mxu0
    %v2943 = vadd.f32 %v2870, %v2942
    %v2944 = vpop.f32.mrb[0].mxu0
    %v2945 = vadd.f32 %v2872, %v2944
    %v2946 = vpop.f32.mrb[0].mxu0
    %v2947 = vadd.f32 %v2874, %v2946
    %2948 = vmatprep.mubr.bf16.mxu0 %v796
    %2949 = vmatmul.mubr.bf16.gmra.mrb[0].mxu0 %v795
    %v2950 = vpop.f32.mrb[0].mxu0
    %v2951 = vadd.f32 %v2878, %v2950
    %v2952 = vpop.f32.mrb[0].mxu0
    %v2953 = vadd.f32 %v2880, %v2952
    %v2954 = vpop.f32.mrb[0].mxu0
    %v2955 = vadd.f32 %v2882, %v2954
    %v2956 = vpop.f32.mrb[0].mxu0
    %v2957 = vadd.f32 %v2884, %v2956
    %2958 = vdwg.mxu0
    %v2959 = vpack.c.bf16 %v2487, %v2483
    %v2960 = vpack.c.bf16 %v2489, %v2485
    %v2961 = vpack.c.bf16 %v2633, %v2629
    %v2962 = vpack.c.bf16 %v2635, %v2631
    %v2963 = vpack.c.bf16 %v2779, %v2775
    %v2964 = vpack.c.bf16 %v2781, %v2777
    %v2965 = vpack.c.bf16 %v2925, %v2921
    %v2966 = vpack.c.bf16 %v2927, %v2923
    %v2967 = vpack.c.bf16 %v2497, %v2493
    %v2968 = vpack.c.bf16 %v2499, %v2495
    %v2969 = vpack.c.bf16 %v2643, %v2639
    %v2970 = vpack.c.bf16 %v2645, %v2641
    %v2971 = vpack.c.bf16 %v2789, %v2785
    %v2972 = vpack.c.bf16 %v2791, %v2787
    %v2973 = vpack.c.bf16 %v2935, %v2931
    %v2974 = vpack.c.bf16 %v2937, %v2933
    %v2975 = vpack.c.bf16 %v2507, %v2503
    %v2976 = vpack.c.bf16 %v2509, %v2505
    %v2977 = vpack.c.bf16 %v2653, %v2649
    %v2978 = vpack.c.bf16 %v2655, %v2651
    %v2979 = vpack.c.bf16 %v2799, %v2795
    %v2980 = vpack.c.bf16 %v2801, %v2797
    %v2981 = vpack.c.bf16 %v2945, %v2941
    %v2982 = vpack.c.bf16 %v2947, %v2943
    %v2983 = vpack.c.bf16 %v2517, %v2513
    %v2984 = vpack.c.bf16 %v2519, %v2515
    %v2985 = vpack.c.bf16 %v2663, %v2659
    %v2986 = vpack.c.bf16 %v2665, %v2661
    %v2987 = vpack.c.bf16 %v2809, %v2805
    %v2988 = vpack.c.bf16 %v2811, %v2807
    %v2989 = vpack.c.bf16 %v2955, %v2951
    %v2990 = vpack.c.bf16 %v2957, %v2953
    %v2991 = vtanh.bf16.pop %v2959
    %v2992 = vtanh.bf16.pop %v2960
    %v2993 = vtanh.bf16.pop %v2961
    %v2994 = vtanh.bf16.pop %v2962
    %v2995 = vtanh.bf16.pop %v2963
    %v2996 = vtanh.bf16.pop %v2964
    %v2997 = vtanh.bf16.pop %v2965
    %v2998 = vtanh.bf16.pop %v2966
    %v2999 = vtanh.bf16.pop %v2967
    %v3000 = vtanh.bf16.pop %v2968
    %v3001 = vtanh.bf16.pop %v2969
    %v3002 = vtanh.bf16.pop %v2970
    %v3003 = vtanh.bf16.pop %v2971
    %v3004 = vtanh.bf16.pop %v2972
    %v3005 = vtanh.bf16.pop %v2973
    %v3006 = vtanh.bf16.pop %v2974
    %v3007 = vtanh.bf16.pop %v2975
    %v3008 = vtanh.bf16.pop %v2976
    %v3009 = vtanh.bf16.pop %v2977
    %v3010 = vtanh.bf16.pop %v2978
    %v3011 = vtanh.bf16.pop %v2979
    %v3012 = vtanh.bf16.pop %v2980
    %v3013 = vtanh.bf16.pop %v2981
    %v3014 = vtanh.bf16.pop %v2982
    %v3015 = vtanh.bf16.pop %v2983
    %v3016 = vtanh.bf16.pop %v2984
    %v3017 = vtanh.bf16.pop %v2985
    %v3018 = vtanh.bf16.pop %v2986
    %v3019 = vtanh.bf16.pop %v2987
    %v3020 = vtanh.bf16.pop %v2988
    %v3021 = vtanh.bf16.pop %v2989
    %v3022 = vtanh.bf16.pop %v2990
    %v3023 = vld [vmem:[#allocation7] sm:$0xff]
    %v3024 = vld [vmem:[#allocation7 + $0x8] sm:$0xff]
    %v3025 = vld [vmem:[#allocation7 + $0x10] sm:$0xff]
    %v3026 = vld [vmem:[#allocation7 + $0x18] sm:$0xff]
    %v3027 = vld [vmem:[#allocation7 + $0x20] sm:$0xff]
    %v3028 = vld [vmem:[#allocation7 + $0x28] sm:$0xff]
    %v3029 = vld [vmem:[#allocation7 + $0x30] sm:$0xff]
    %v3030 = vld [vmem:[#allocation7 + $0x38] sm:$0xff]
    %v3031 = vld [vmem:[#allocation7 + $0x40] sm:$0xff]
    %v3032 = vld [vmem:[#allocation7 + $0x48] sm:$0xff]
    %v3033 = vld [vmem:[#allocation7 + $0x50] sm:$0xff]
    %v3034 = vld [vmem:[#allocation7 + $0x58] sm:$0xff]
    %v3035 = vld [vmem:[#allocation7 + $0x60] sm:$0xff]
    %v3036 = vld [vmem:[#allocation7 + $0x68] sm:$0xff]
    %v3037 = vld [vmem:[#allocation7 + $0x70] sm:$0xff]
    %v3038 = vld [vmem:[#allocation7 + $0x78] sm:$0xff]
    %v3039 = vld [vmem:[#allocation7 + $0x80] sm:$0xff]
    %v3040 = vld [vmem:[#allocation7 + $0x88] sm:$0xff]
    %v3041 = vld [vmem:[#allocation7 + $0x90] sm:$0xff]
    %v3042 = vld [vmem:[#allocation7 + $0x98] sm:$0xff]
    %v3043 = vld [vmem:[#allocation7 + $0xa0] sm:$0xff]
    %v3044 = vld [vmem:[#allocation7 + $0xa8] sm:$0xff]
    %v3045 = vld [vmem:[#allocation7 + $0xb0] sm:$0xff]
    %v3046 = vld [vmem:[#allocation7 + $0xb8] sm:$0xff]
    %v3047 = vld [vmem:[#allocation7 + $0xc0] sm:$0xff]
    %v3048 = vld [vmem:[#allocation7 + $0xc8] sm:$0xff]
    %v3049 = vld [vmem:[#allocation7 + $0xd0] sm:$0xff]
    %v3050 = vld [vmem:[#allocation7 + $0xd8] sm:$0xff]
    %v3051 = vld [vmem:[#allocation7 + $0xe0] sm:$0xff]
    %v3052 = vld [vmem:[#allocation7 + $0xe8] sm:$0xff]
    %v3053 = vld [vmem:[#allocation7 + $0xf0] sm:$0xff]
    %v3054 = vld [vmem:[#allocation7 + $0xf8] sm:$0xff]
    %v3055 = vld [vmem:[#allocation7 + $0x100] sm:$0xff]
    %v3056 = vld [vmem:[#allocation7 + $0x108] sm:$0xff]
    %v3057 = vld [vmem:[#allocation7 + $0x110] sm:$0xff]
    %v3058 = vld [vmem:[#allocation7 + $0x118] sm:$0xff]
    %v3059 = vld [vmem:[#allocation7 + $0x120] sm:$0xff]
    %v3060 = vld [vmem:[#allocation7 + $0x128] sm:$0xff]
    %v3061 = vld [vmem:[#allocation7 + $0x130] sm:$0xff]
    %v3062 = vld [vmem:[#allocation7 + $0x138] sm:$0xff]
    %v3063 = vld [vmem:[#allocation7 + $0x140] sm:$0xff]
    %v3064 = vld [vmem:[#allocation7 + $0x148] sm:$0xff]
    %v3065 = vld [vmem:[#allocation7 + $0x150] sm:$0xff]
    %v3066 = vld [vmem:[#allocation7 + $0x158] sm:$0xff]
    %v3067 = vld [vmem:[#allocation7 + $0x160] sm:$0xff]
    %v3068 = vld [vmem:[#allocation7 + $0x168] sm:$0xff]
    %v3069 = vld [vmem:[#allocation7 + $0x170] sm:$0xff]
    %v3070 = vld [vmem:[#allocation7 + $0x178] sm:$0xff]
    %v3071 = vld [vmem:[#allocation7 + $0x180] sm:$0xff]
    %v3072 = vld [vmem:[#allocation7 + $0x188] sm:$0xff]
    %v3073 = vld [vmem:[#allocation7 + $0x190] sm:$0xff]
    %v3074 = vld [vmem:[#allocation7 + $0x198] sm:$0xff]
    %v3075 = vld [vmem:[#allocation7 + $0x1a0] sm:$0xff]
    %v3076 = vld [vmem:[#allocation7 + $0x1a8] sm:$0xff]
    %v3077 = vld [vmem:[#allocation7 + $0x1b0] sm:$0xff]
    %v3078 = vld [vmem:[#allocation7 + $0x1b8] sm:$0xff]
    %v3079 = vld [vmem:[#allocation7 + $0x1c0] sm:$0xff]
    %v3080 = vld [vmem:[#allocation7 + $0x1c8] sm:$0xff]
    %v3081 = vld [vmem:[#allocation7 + $0x1d0] sm:$0xff]
    %v3082 = vld [vmem:[#allocation7 + $0x1d8] sm:$0xff]
    %v3083 = vld [vmem:[#allocation7 + $0x1e0] sm:$0xff]
    %v3084 = vld [vmem:[#allocation7 + $0x1e8] sm:$0xff]
    %v3085 = vld [vmem:[#allocation7 + $0x1f0] sm:$0xff]
    %v3086 = vld [vmem:[#allocation7 + $0x1f8] sm:$0xff]
    %v3087 = vld [vmem:[#allocation7 + $0x200] sm:$0xff]
    %v3088 = vld [vmem:[#allocation7 + $0x208] sm:$0xff]
    %v3089 = vld [vmem:[#allocation7 + $0x210] sm:$0xff]
    %v3090 = vld [vmem:[#allocation7 + $0x218] sm:$0xff]
    %v3091 = vld [vmem:[#allocation7 + $0x220] sm:$0xff]
    %v3092 = vld [vmem:[#allocation7 + $0x228] sm:$0xff]
    %v3093 = vld [vmem:[#allocation7 + $0x230] sm:$0xff]
    %v3094 = vld [vmem:[#allocation7 + $0x238] sm:$0xff]
    %v3095 = vld [vmem:[#allocation7 + $0x240] sm:$0xff]
    %v3096 = vld [vmem:[#allocation7 + $0x248] sm:$0xff]
    %v3097 = vld [vmem:[#allocation7 + $0x250] sm:$0xff]
    %v3098 = vld [vmem:[#allocation7 + $0x258] sm:$0xff]
    %v3099 = vld [vmem:[#allocation7 + $0x260] sm:$0xff]
    %v3100 = vld [vmem:[#allocation7 + $0x268] sm:$0xff]
    %v3101 = vld [vmem:[#allocation7 + $0x270] sm:$0xff]
    %v3102 = vld [vmem:[#allocation7 + $0x278] sm:$0xff]
    %v3103 = vld [vmem:[#allocation7 + $0x280] sm:$0xff]
    %v3104 = vld [vmem:[#allocation7 + $0x288] sm:$0xff]
    %v3105 = vld [vmem:[#allocation7 + $0x290] sm:$0xff]
    %v3106 = vld [vmem:[#allocation7 + $0x298] sm:$0xff]
    %v3107 = vld [vmem:[#allocation7 + $0x2a0] sm:$0xff]
    %v3108 = vld [vmem:[#allocation7 + $0x2a8] sm:$0xff]
    %v3109 = vld [vmem:[#allocation7 + $0x2b0] sm:$0xff]
    %v3110 = vld [vmem:[#allocation7 + $0x2b8] sm:$0xff]
    %v3111 = vld [vmem:[#allocation7 + $0x2c0] sm:$0xff]
    %v3112 = vld [vmem:[#allocation7 + $0x2c8] sm:$0xff]
    %v3113 = vld [vmem:[#allocation7 + $0x2d0] sm:$0xff]
    %v3114 = vld [vmem:[#allocation7 + $0x2d8] sm:$0xff]
    %v3115 = vld [vmem:[#allocation7 + $0x2e0] sm:$0xff]
    %v3116 = vld [vmem:[#allocation7 + $0x2e8] sm:$0xff]
    %v3117 = vld [vmem:[#allocation7 + $0x2f0] sm:$0xff]
    %v3118 = vld [vmem:[#allocation7 + $0x2f8] sm:$0xff]
    %v3119 = vld [vmem:[#allocation7 + $0x300] sm:$0xff]
    %v3120 = vld [vmem:[#allocation7 + $0x308] sm:$0xff]
    %v3121 = vld [vmem:[#allocation7 + $0x310] sm:$0xff]
    %v3122 = vld [vmem:[#allocation7 + $0x318] sm:$0xff]
    %v3123 = vld [vmem:[#allocation7 + $0x320] sm:$0xff]
    %v3124 = vld [vmem:[#allocation7 + $0x328] sm:$0xff]
    %v3125 = vld [vmem:[#allocation7 + $0x330] sm:$0xff]
    %v3126 = vld [vmem:[#allocation7 + $0x338] sm:$0xff]
    %v3127 = vld [vmem:[#allocation7 + $0x340] sm:$0xff]
    %v3128 = vld [vmem:[#allocation7 + $0x348] sm:$0xff]
    %v3129 = vld [vmem:[#allocation7 + $0x350] sm:$0xff]
    %v3130 = vld [vmem:[#allocation7 + $0x358] sm:$0xff]
    %v3131 = vld [vmem:[#allocation7 + $0x360] sm:$0xff]
    %v3132 = vld [vmem:[#allocation7 + $0x368] sm:$0xff]
    %v3133 = vld [vmem:[#allocation7 + $0x370] sm:$0xff]
    %v3134 = vld [vmem:[#allocation7 + $0x378] sm:$0xff]
    %v3135 = vld [vmem:[#allocation7 + $0x380] sm:$0xff]
    %v3136 = vld [vmem:[#allocation7 + $0x388] sm:$0xff]
    %v3137 = vld [vmem:[#allocation7 + $0x390] sm:$0xff]
    %v3138 = vld [vmem:[#allocation7 + $0x398] sm:$0xff]
    %v3139 = vld [vmem:[#allocation7 + $0x3a0] sm:$0xff]
    %v3140 = vld [vmem:[#allocation7 + $0x3a8] sm:$0xff]
    %v3141 = vld [vmem:[#allocation7 + $0x3b0] sm:$0xff]
    %v3142 = vld [vmem:[#allocation7 + $0x3b8] sm:$0xff]
    %v3143 = vld [vmem:[#allocation7 + $0x3c0] sm:$0xff]
    %v3144 = vld [vmem:[#allocation7 + $0x3c8] sm:$0xff]
    %v3145 = vld [vmem:[#allocation7 + $0x3d0] sm:$0xff]
    %v3146 = vld [vmem:[#allocation7 + $0x3d8] sm:$0xff]
    %v3147 = vld [vmem:[#allocation7 + $0x3e0] sm:$0xff]
    %v3148 = vld [vmem:[#allocation7 + $0x3e8] sm:$0xff]
    %v3149 = vld [vmem:[#allocation7 + $0x3f0] sm:$0xff]
    %v3150 = vld [vmem:[#allocation7 + $0x3f8] sm:$0xff]
    %v3151 = vld [vmem:[%s8] sm:$0x3]
    %v3153 = vlaneseq
    %v3154 = vshrl.u32 %v3153, 7
    %v3155 = vsub.s32 0, %v3154
    %v3156 = vrot.slane %v3151, %v3155
    %v3157 = vlaneseq
    %v3158 = vshrl.u32 %v3157, 7
    %v3159 = vsub.s32 1, %v3158
    %v3160 = vrot.slane %v3151, %v3159
    %v3291 = vunpack.c.l.b16 %v3023
    %v3292 = vunpack.c.h.b16 %v3023
    %v3293 = vunpack.c.l.b16 %v3024
    %v3294 = vunpack.c.h.b16 %v3024
    %v3295 = vunpack.c.l.b16 %v3025
    %v3296 = vunpack.c.h.b16 %v3025
    %v3297 = vunpack.c.l.b16 %v3026
    %v3298 = vunpack.c.h.b16 %v3026
    %v3299 = vunpack.c.l.b16 %v3027
    %v3300 = vunpack.c.h.b16 %v3027
    %v3301 = vunpack.c.l.b16 %v3028
    %v3302 = vunpack.c.h.b16 %v3028
    %v3303 = vunpack.c.l.b16 %v3029
    %v3304 = vunpack.c.h.b16 %v3029
    %v3305 = vunpack.c.l.b16 %v3030
    %v3306 = vunpack.c.h.b16 %v3030
    %v3307 = vunpack.c.l.b16 %v3031
    %v3308 = vunpack.c.h.b16 %v3031
    %v3309 = vunpack.c.l.b16 %v3032
    %v3310 = vunpack.c.h.b16 %v3032
    %v3311 = vunpack.c.l.b16 %v3033
    %v3312 = vunpack.c.h.b16 %v3033
    %v3313 = vunpack.c.l.b16 %v3034
    %v3314 = vunpack.c.h.b16 %v3034
    %v3315 = vunpack.c.l.b16 %v3035
    %v3316 = vunpack.c.h.b16 %v3035
    %v3317 = vunpack.c.l.b16 %v3036
    %v3318 = vunpack.c.h.b16 %v3036
    %v3319 = vunpack.c.l.b16 %v3037
    %v3320 = vunpack.c.h.b16 %v3037
    %v3321 = vunpack.c.l.b16 %v3038
    %v3322 = vunpack.c.h.b16 %v3038
    %v3323 = vunpack.c.l.b16 %v3039
    %v3324 = vunpack.c.h.b16 %v3039
    %v3325 = vunpack.c.l.b16 %v3040
    %v3326 = vunpack.c.h.b16 %v3040
    %v3327 = vunpack.c.l.b16 %v3041
    %v3328 = vunpack.c.h.b16 %v3041
    %v3329 = vunpack.c.l.b16 %v3042
    %v3330 = vunpack.c.h.b16 %v3042
    %v3331 = vunpack.c.l.b16 %v3043
    %v3332 = vunpack.c.h.b16 %v3043
    %v3333 = vunpack.c.l.b16 %v3044
    %v3334 = vunpack.c.h.b16 %v3044
    %v3335 = vunpack.c.l.b16 %v3045
    %v3336 = vunpack.c.h.b16 %v3045
    %v3337 = vunpack.c.l.b16 %v3046
    %v3338 = vunpack.c.h.b16 %v3046
    %v3339 = vunpack.c.l.b16 %v3047
    %v3340 = vunpack.c.h.b16 %v3047
    %v3341 = vunpack.c.l.b16 %v3048
    %v3342 = vunpack.c.h.b16 %v3048
    %v3343 = vunpack.c.l.b16 %v3049
    %v3344 = vunpack.c.h.b16 %v3049
    %v3345 = vunpack.c.l.b16 %v3050
    %v3346 = vunpack.c.h.b16 %v3050
    %v3347 = vunpack.c.l.b16 %v3051
    %v3348 = vunpack.c.h.b16 %v3051
    %v3349 = vunpack.c.l.b16 %v3052
    %v3350 = vunpack.c.h.b16 %v3052
    %v3351 = vunpack.c.l.b16 %v3053
    %v3352 = vunpack.c.h.b16 %v3053
    %v3353 = vunpack.c.l.b16 %v3054
    %v3354 = vunpack.c.h.b16 %v3054
    %v3355 = vunpack.c.l.b16 %v3055
    %v3356 = vunpack.c.h.b16 %v3055
    %v3357 = vunpack.c.l.b16 %v3056
    %v3358 = vunpack.c.h.b16 %v3056
    %v3359 = vunpack.c.l.b16 %v3057
    %v3360 = vunpack.c.h.b16 %v3057
    %v3361 = vunpack.c.l.b16 %v3058
    %v3362 = vunpack.c.h.b16 %v3058
    %v3363 = vunpack.c.l.b16 %v3059
    %v3364 = vunpack.c.h.b16 %v3059
    %v3365 = vunpack.c.l.b16 %v3060
    %v3366 = vunpack.c.h.b16 %v3060
    %v3367 = vunpack.c.l.b16 %v3061
    %v3368 = vunpack.c.h.b16 %v3061
    %v3369 = vunpack.c.l.b16 %v3062
    %v3370 = vunpack.c.h.b16 %v3062
    %v3371 = vunpack.c.l.b16 %v3063
    %v3372 = vunpack.c.h.b16 %v3063
    %v3373 = vunpack.c.l.b16 %v3064
    %v3374 = vunpack.c.h.b16 %v3064
    %v3375 = vunpack.c.l.b16 %v3065
    %v3376 = vunpack.c.h.b16 %v3065
    %v3377 = vunpack.c.l.b16 %v3066
    %v3378 = vunpack.c.h.b16 %v3066
    %v3379 = vunpack.c.l.b16 %v3067
    %v3380 = vunpack.c.h.b16 %v3067
    %v3381 = vunpack.c.l.b16 %v3068
    %v3382 = vunpack.c.h.b16 %v3068
    %v3383 = vunpack.c.l.b16 %v3069
    %v3384 = vunpack.c.h.b16 %v3069
    %v3385 = vunpack.c.l.b16 %v3070
    %v3386 = vunpack.c.h.b16 %v3070
    %v3387 = vunpack.c.l.b16 %v3071
    %v3388 = vunpack.c.h.b16 %v3071
    %v3389 = vunpack.c.l.b16 %v3072
    %v3390 = vunpack.c.h.b16 %v3072
    %v3391 = vunpack.c.l.b16 %v3073
    %v3392 = vunpack.c.h.b16 %v3073
    %v3393 = vunpack.c.l.b16 %v3074
    %v3394 = vunpack.c.h.b16 %v3074
    %v3395 = vunpack.c.l.b16 %v3075
    %v3396 = vunpack.c.h.b16 %v3075
    %v3397 = vunpack.c.l.b16 %v3076
    %v3398 = vunpack.c.h.b16 %v3076
    %v3399 = vunpack.c.l.b16 %v3077
    %v3400 = vunpack.c.h.b16 %v3077
    %v3401 = vunpack.c.l.b16 %v3078
    %v3402 = vunpack.c.h.b16 %v3078
    %v3403 = vunpack.c.l.b16 %v3079
    %v3404 = vunpack.c.h.b16 %v3079
    %v3405 = vunpack.c.l.b16 %v3080
    %v3406 = vunpack.c.h.b16 %v3080
    %v3407 = vunpack.c.l.b16 %v3081
    %v3408 = vunpack.c.h.b16 %v3081
    %v3409 = vunpack.c.l.b16 %v3082
    %v3410 = vunpack.c.h.b16 %v3082
    %v3411 = vunpack.c.l.b16 %v3083
    %v3412 = vunpack.c.h.b16 %v3083
    %v3413 = vunpack.c.l.b16 %v3084
    %v3414 = vunpack.c.h.b16 %v3084
    %v3415 = vunpack.c.l.b16 %v3085
    %v3416 = vunpack.c.h.b16 %v3085
    %v3417 = vunpack.c.l.b16 %v3086
    %v3418 = vunpack.c.h.b16 %v3086
    %v3419 = vunpack.c.l.b16 %v3087
    %v3420 = vunpack.c.h.b16 %v3087
    %v3421 = vunpack.c.l.b16 %v3088
    %v3422 = vunpack.c.h.b16 %v3088
    %v3423 = vunpack.c.l.b16 %v3089
    %v3424 = vunpack.c.h.b16 %v3089
    %v3425 = vunpack.c.l.b16 %v3090
    %v3426 = vunpack.c.h.b16 %v3090
    %v3427 = vunpack.c.l.b16 %v3091
    %v3428 = vunpack.c.h.b16 %v3091
    %v3429 = vunpack.c.l.b16 %v3092
    %v3430 = vunpack.c.h.b16 %v3092
    %v3431 = vunpack.c.l.b16 %v3093
    %v3432 = vunpack.c.h.b16 %v3093
    %v3433 = vunpack.c.l.b16 %v3094
    %v3434 = vunpack.c.h.b16 %v3094
    %v3435 = vunpack.c.l.b16 %v3095
    %v3436 = vunpack.c.h.b16 %v3095
    %v3437 = vunpack.c.l.b16 %v3096
    %v3438 = vunpack.c.h.b16 %v3096
    %v3439 = vunpack.c.l.b16 %v3097
    %v3440 = vunpack.c.h.b16 %v3097
    %v3441 = vunpack.c.l.b16 %v3098
    %v3442 = vunpack.c.h.b16 %v3098
    %v3443 = vunpack.c.l.b16 %v3099
    %v3444 = vunpack.c.h.b16 %v3099
    %v3445 = vunpack.c.l.b16 %v3100
    %v3446 = vunpack.c.h.b16 %v3100
    %v3447 = vunpack.c.l.b16 %v3101
    %v3448 = vunpack.c.h.b16 %v3101
    %v3449 = vunpack.c.l.b16 %v3102
    %v3450 = vunpack.c.h.b16 %v3102
    %v3451 = vunpack.c.l.b16 %v3103
    %v3452 = vunpack.c.h.b16 %v3103
    %v3453 = vunpack.c.l.b16 %v3104
    %v3454 = vunpack.c.h.b16 %v3104
    %v3455 = vunpack.c.l.b16 %v3105
    %v3456 = vunpack.c.h.b16 %v3105
    %v3457 = vunpack.c.l.b16 %v3106
    %v3458 = vunpack.c.h.b16 %v3106
    %v3459 = vunpack.c.l.b16 %v3107
    %v3460 = vunpack.c.h.b16 %v3107
    %v3461 = vunpack.c.l.b16 %v3108
    %v3462 = vunpack.c.h.b16 %v3108
    %v3463 = vunpack.c.l.b16 %v3109
    %v3464 = vunpack.c.h.b16 %v3109
    %v3465 = vunpack.c.l.b16 %v3110
    %v3466 = vunpack.c.h.b16 %v3110
    %v3467 = vunpack.c.l.b16 %v3111
    %v3468 = vunpack.c.h.b16 %v3111
    %v3469 = vunpack.c.l.b16 %v3112
    %v3470 = vunpack.c.h.b16 %v3112
    %v3471 = vunpack.c.l.b16 %v3113
    %v3472 = vunpack.c.h.b16 %v3113
    %v3473 = vunpack.c.l.b16 %v3114
    %v3474 = vunpack.c.h.b16 %v3114
    %v3475 = vunpack.c.l.b16 %v3115
    %v3476 = vunpack.c.h.b16 %v3115
    %v3477 = vunpack.c.l.b16 %v3116
    %v3478 = vunpack.c.h.b16 %v3116
    %v3479 = vunpack.c.l.b16 %v3117
    %v3480 = vunpack.c.h.b16 %v3117
    %v3481 = vunpack.c.l.b16 %v3118
    %v3482 = vunpack.c.h.b16 %v3118
    %v3483 = vunpack.c.l.b16 %v3119
    %v3484 = vunpack.c.h.b16 %v3119
    %v3485 = vunpack.c.l.b16 %v3120
    %v3486 = vunpack.c.h.b16 %v3120
    %v3487 = vunpack.c.l.b16 %v3121
    %v3488 = vunpack.c.h.b16 %v3121
    %v3489 = vunpack.c.l.b16 %v3122
    %v3490 = vunpack.c.h.b16 %v3122
    %v3491 = vunpack.c.l.b16 %v3123
    %v3492 = vunpack.c.h.b16 %v3123
    %v3493 = vunpack.c.l.b16 %v3124
    %v3494 = vunpack.c.h.b16 %v3124
    %v3495 = vunpack.c.l.b16 %v3125
    %v3496 = vunpack.c.h.b16 %v3125
    %v3497 = vunpack.c.l.b16 %v3126
    %v3498 = vunpack.c.h.b16 %v3126
    %v3499 = vunpack.c.l.b16 %v3127
    %v3500 = vunpack.c.h.b16 %v3127
    %v3501 = vunpack.c.l.b16 %v3128
    %v3502 = vunpack.c.h.b16 %v3128
    %v3503 = vunpack.c.l.b16 %v3129
    %v3504 = vunpack.c.h.b16 %v3129
    %v3505 = vunpack.c.l.b16 %v3130
    %v3506 = vunpack.c.h.b16 %v3130
    %v3507 = vunpack.c.l.b16 %v3131
    %v3508 = vunpack.c.h.b16 %v3131
    %v3509 = vunpack.c.l.b16 %v3132
    %v3510 = vunpack.c.h.b16 %v3132
    %v3511 = vunpack.c.l.b16 %v3133
    %v3512 = vunpack.c.h.b16 %v3133
    %v3513 = vunpack.c.l.b16 %v3134
    %v3514 = vunpack.c.h.b16 %v3134
    %v3515 = vunpack.c.l.b16 %v3135
    %v3516 = vunpack.c.h.b16 %v3135
    %v3517 = vunpack.c.l.b16 %v3136
    %v3518 = vunpack.c.h.b16 %v3136
    %v3519 = vunpack.c.l.b16 %v3137
    %v3520 = vunpack.c.h.b16 %v3137
    %v3521 = vunpack.c.l.b16 %v3138
    %v3522 = vunpack.c.h.b16 %v3138
    %v3523 = vunpack.c.l.b16 %v3139
    %v3524 = vunpack.c.h.b16 %v3139
    %v3525 = vunpack.c.l.b16 %v3140
    %v3526 = vunpack.c.h.b16 %v3140
    %v3527 = vunpack.c.l.b16 %v3141
    %v3528 = vunpack.c.h.b16 %v3141
    %v3529 = vunpack.c.l.b16 %v3142
    %v3530 = vunpack.c.h.b16 %v3142
    %v3531 = vunpack.c.l.b16 %v3143
    %v3532 = vunpack.c.h.b16 %v3143
    %v3533 = vunpack.c.l.b16 %v3144
    %v3534 = vunpack.c.h.b16 %v3144
    %v3535 = vunpack.c.l.b16 %v3145
    %v3536 = vunpack.c.h.b16 %v3145
    %v3537 = vunpack.c.l.b16 %v3146
    %v3538 = vunpack.c.h.b16 %v3146
    %v3539 = vunpack.c.l.b16 %v3147
    %v3540 = vunpack.c.h.b16 %v3147
    %v3541 = vunpack.c.l.b16 %v3148
    %v3542 = vunpack.c.h.b16 %v3148
    %v3543 = vunpack.c.l.b16 %v3149
    %v3544 = vunpack.c.h.b16 %v3149
    %v3545 = vunpack.c.l.b16 %v3150
    %v3546 = vunpack.c.h.b16 %v3150
    %v3547 = vpack.c.b16 %v3293, %v3291
    %v3548 = vpack.c.b16 %v3294, %v3292
    %v3549 = vpack.c.b16 %v3297, %v3295
    %v3550 = vpack.c.b16 %v3298, %v3296
    %v3551 = vpack.c.b16 %v3301, %v3299
    %v3552 = vpack.c.b16 %v3302, %v3300
    %v3553 = vpack.c.b16 %v3305, %v3303
    %v3554 = vpack.c.b16 %v3306, %v3304
    %v3555 = vpack.c.b16 %v3309, %v3307
    %v3556 = vpack.c.b16 %v3310, %v3308
    %v3557 = vpack.c.b16 %v3313, %v3311
    %v3558 = vpack.c.b16 %v3314, %v3312
    %v3559 = vpack.c.b16 %v3317, %v3315
    %v3560 = vpack.c.b16 %v3318, %v3316
    %v3561 = vpack.c.b16 %v3321, %v3319
    %v3562 = vpack.c.b16 %v3322, %v3320
    %v3563 = vpack.c.b16 %v3325, %v3323
    %v3564 = vpack.c.b16 %v3326, %v3324
    %v3565 = vpack.c.b16 %v3329, %v3327
    %v3566 = vpack.c.b16 %v3330, %v3328
    %v3567 = vpack.c.b16 %v3333, %v3331
    %v3568 = vpack.c.b16 %v3334, %v3332
    %v3569 = vpack.c.b16 %v3337, %v3335
    %v3570 = vpack.c.b16 %v3338, %v3336
    %v3571 = vpack.c.b16 %v3341, %v3339
    %v3572 = vpack.c.b16 %v3342, %v3340
    %v3573 = vpack.c.b16 %v3345, %v3343
    %v3574 = vpack.c.b16 %v3346, %v3344
    %v3575 = vpack.c.b16 %v3349, %v3347
    %v3576 = vpack.c.b16 %v3350, %v3348
    %v3577 = vpack.c.b16 %v3353, %v3351
    %v3578 = vpack.c.b16 %v3354, %v3352
    %v3579 = vpack.c.b16 %v3357, %v3355
    %v3580 = vpack.c.b16 %v3358, %v3356
    %v3581 = vpack.c.b16 %v3361, %v3359
    %v3582 = vpack.c.b16 %v3362, %v3360
    %v3583 = vpack.c.b16 %v3365, %v3363
    %v3584 = vpack.c.b16 %v3366, %v3364
    %v3585 = vpack.c.b16 %v3369, %v3367
    %v3586 = vpack.c.b16 %v3370, %v3368
    %v3587 = vpack.c.b16 %v3373, %v3371
    %v3588 = vpack.c.b16 %v3374, %v3372
    %v3589 = vpack.c.b16 %v3377, %v3375
    %v3590 = vpack.c.b16 %v3378, %v3376
    %v3591 = vpack.c.b16 %v3381, %v3379
    %v3592 = vpack.c.b16 %v3382, %v3380
    %v3593 = vpack.c.b16 %v3385, %v3383
    %v3594 = vpack.c.b16 %v3386, %v3384
    %v3595 = vpack.c.b16 %v3389, %v3387
    %v3596 = vpack.c.b16 %v3390, %v3388
    %v3597 = vpack.c.b16 %v3393, %v3391
    %v3598 = vpack.c.b16 %v3394, %v3392
    %v3599 = vpack.c.b16 %v3397, %v3395
    %v3600 = vpack.c.b16 %v3398, %v3396
    %v3601 = vpack.c.b16 %v3401, %v3399
    %v3602 = vpack.c.b16 %v3402, %v3400
    %v3603 = vpack.c.b16 %v3405, %v3403
    %v3604 = vpack.c.b16 %v3406, %v3404
    %v3605 = vpack.c.b16 %v3409, %v3407
    %v3606 = vpack.c.b16 %v3410, %v3408
    %v3607 = vpack.c.b16 %v3413, %v3411
    %v3608 = vpack.c.b16 %v3414, %v3412
    %v3609 = vpack.c.b16 %v3417, %v3415
    %v3610 = vpack.c.b16 %v3418, %v3416
    %v3611 = vpack.c.b16 %v3421, %v3419
    %v3612 = vpack.c.b16 %v3422, %v3420
    %v3613 = vpack.c.b16 %v3425, %v3423
    %v3614 = vpack.c.b16 %v3426, %v3424
    %v3615 = vpack.c.b16 %v3429, %v3427
    %v3616 = vpack.c.b16 %v3430, %v3428
    %v3617 = vpack.c.b16 %v3433, %v3431
    %v3618 = vpack.c.b16 %v3434, %v3432
    %v3619 = vpack.c.b16 %v3437, %v3435
    %v3620 = vpack.c.b16 %v3438, %v3436
    %v3621 = vpack.c.b16 %v3441, %v3439
    %v3622 = vpack.c.b16 %v3442, %v3440
    %v3623 = vpack.c.b16 %v3445, %v3443
    %v3624 = vpack.c.b16 %v3446, %v3444
    %v3625 = vpack.c.b16 %v3449, %v3447
    %v3626 = vpack.c.b16 %v3450, %v3448
    %v3627 = vpack.c.b16 %v3453, %v3451
    %v3628 = vpack.c.b16 %v3454, %v3452
    %v3629 = vpack.c.b16 %v3457, %v3455
    %v3630 = vpack.c.b16 %v3458, %v3456
    %v3631 = vpack.c.b16 %v3461, %v3459
    %v3632 = vpack.c.b16 %v3462, %v3460
    %v3633 = vpack.c.b16 %v3465, %v3463
    %v3634 = vpack.c.b16 %v3466, %v3464
    %v3635 = vpack.c.b16 %v3469, %v3467
    %v3636 = vpack.c.b16 %v3470, %v3468
    %v3637 = vpack.c.b16 %v3473, %v3471
    %v3638 = vpack.c.b16 %v3474, %v3472
    %v3639 = vpack.c.b16 %v3477, %v3475
    %v3640 = vpack.c.b16 %v3478, %v3476
    %v3641 = vpack.c.b16 %v3481, %v3479
    %v3642 = vpack.c.b16 %v3482, %v3480
    %v3643 = vpack.c.b16 %v3485, %v3483
    %v3644 = vpack.c.b16 %v3486, %v3484
    %v3645 = vpack.c.b16 %v3489, %v3487
    %v3646 = vpack.c.b16 %v3490, %v3488
    %v3647 = vpack.c.b16 %v3493, %v3491
    %v3648 = vpack.c.b16 %v3494, %v3492
    %v3649 = vpack.c.b16 %v3497, %v3495
    %v3650 = vpack.c.b16 %v3498, %v3496
    %v3651 = vpack.c.b16 %v3501, %v3499
    %v3652 = vpack.c.b16 %v3502, %v3500
    %v3653 = vpack.c.b16 %v3505, %v3503
    %v3654 = vpack.c.b16 %v3506, %v3504
    %v3655 = vpack.c.b16 %v3509, %v3507
    %v3656 = vpack.c.b16 %v3510, %v3508
    %v3657 = vpack.c.b16 %v3513, %v3511
    %v3658 = vpack.c.b16 %v3514, %v3512
    %v3659 = vpack.c.b16 %v3517, %v3515
    %v3660 = vpack.c.b16 %v3518, %v3516
    %v3661 = vpack.c.b16 %v3521, %v3519
    %v3662 = vpack.c.b16 %v3522, %v3520
    %v3663 = vpack.c.b16 %v3525, %v3523
    %v3664 = vpack.c.b16 %v3526, %v3524
    %v3665 = vpack.c.b16 %v3529, %v3527
    %v3666 = vpack.c.b16 %v3530, %v3528
    %v3667 = vpack.c.b16 %v3533, %v3531
    %v3668 = vpack.c.b16 %v3534, %v3532
    %v3669 = vpack.c.b16 %v3537, %v3535
    %v3670 = vpack.c.b16 %v3538, %v3536
    %v3671 = vpack.c.b16 %v3541, %v3539
    %v3672 = vpack.c.b16 %v3542, %v3540
    %v3673 = vpack.c.b16 %v3545, %v3543
    %v3674 = vpack.c.b16 %v3546, %v3544
    %3803 = vmatprep.subr.bf16.mxu0 %v3548
    %3804 = vmatpush1.bf16.msra.mxu0 %v3547
    %3805 = vmatprep.subr.bf16.mxu0 %v3550
    %3806 = vmatpush1.bf16.msra.mxu0 %v3549
    %3807 = vmatprep.subr.bf16.mxu0 %v3552
    %3808 = vmatpush1.bf16.msra.mxu0 %v3551
    %3809 = vmatprep.subr.bf16.mxu0 %v3554
    %3810 = vmatpush1.bf16.msra.mxu0 %v3553
    %3811 = vmatprep.subr.bf16.mxu0 %v3556
    %3812 = vmatpush1.bf16.msra.mxu0 %v3555
    %3813 = vmatprep.subr.bf16.mxu0 %v3558
    %3814 = vmatpush1.bf16.msra.mxu0 %v3557
    %3815 = vmatprep.subr.bf16.mxu0 %v3560
    %3816 = vmatpush1.bf16.msra.mxu0 %v3559
    %3817 = vmatprep.subr.bf16.mxu0 %v3562
    %3818 = vmatpush1.bf16.msra.mxu0 %v3561
    %3819 = vmatprep.subr.bf16.mxu0 %v3564
    %3820 = vmatpush1.bf16.msra.mxu0 %v3563
    %3821 = vmatprep.subr.bf16.mxu0 %v3566
    %3822 = vmatpush1.bf16.msra.mxu0 %v3565
    %3823 = vmatprep.subr.bf16.mxu0 %v3568
    %3824 = vmatpush1.bf16.msra.mxu0 %v3567
    %3825 = vmatprep.subr.bf16.mxu0 %v3570
    %3826 = vmatpush1.bf16.msra.mxu0 %v3569
    %3827 = vmatprep.subr.bf16.mxu0 %v3572
    %3828 = vmatpush1.bf16.msra.mxu0 %v3571
    %3829 = vmatprep.subr.bf16.mxu0 %v3574
    %3830 = vmatpush1.bf16.msra.mxu0 %v3573
    %3831 = vmatprep.subr.bf16.mxu0 %v3576
    %3832 = vmatpush1.bf16.msra.mxu0 %v3575
    %3833 = vmatprep.subr.bf16.mxu0 %v3578
    %3834 = vmatpush1.bf16.msra.mxu0 %v3577
    %3835 = vmatprep.mubr.bf16.mxu0 %v2992
    %3836 = vmatmul.mubr.bf16.gmra.mrb[0].mxu0 %v2991
    %v3837 = vpop.f32.mrb[0].mxu0
    %v3838 = vadd.f32 %v3156, %v3837
    %v3839 = vpop.f32.mrb[0].mxu0
    %v3840 = vadd.f32 %v3160, %v3839
    %v3841 = vpop.f32.mrb[0].mxu0
    %v3842 = vadd.f32 %v3156, %v3841
    %v3843 = vpop.f32.mrb[0].mxu0
    %v3844 = vadd.f32 %v3160, %v3843
    %3845 = vmatprep.mubr.bf16.mxu0 %v3000
    %3846 = vmatmul.mubr.bf16.gmra.mrb[0].mxu0 %v2999
    %v3847 = vpop.f32.mrb[0].mxu0
    %v3848 = vadd.f32 %v3156, %v3847
    %v3849 = vpop.f32.mrb[0].mxu0
    %v3850 = vadd.f32 %v3160, %v3849
    %v3851 = vpop.f32.mrb[0].mxu0
    %v3852 = vadd.f32 %v3156, %v3851
    %v3853 = vpop.f32.mrb[0].mxu0
    %v3854 = vadd.f32 %v3160, %v3853
    %3855 = vmatprep.mubr.bf16.mxu0 %v3008
    %3856 = vmatmul.mubr.bf16.gmra.mrb[0].mxu0 %v3007
    %v3857 = vpop.f32.mrb[0].mxu0
    %v3858 = vadd.f32 %v3156, %v3857
    %v3859 = vpop.f32.mrb[0].mxu0
    %v3860 = vadd.f32 %v3160, %v3859
    %v3861 = vpop.f32.mrb[0].mxu0
    %v3862 = vadd.f32 %v3156, %v3861
    %v3863 = vpop.f32.mrb[0].mxu0
    %v3864 = vadd.f32 %v3160, %v3863
    %3865 = vmatprep.mubr.bf16.mxu0 %v3016
    %3866 = vmatmul.mubr.bf16.gmra.mrb[0].mxu0 %v3015
    %v3867 = vpop.f32.mrb[0].mxu0
    %v3868 = vadd.f32 %v3156, %v3867
    %v3869 = vpop.f32.mrb[0].mxu0
    %v3870 = vadd.f32 %v3160, %v3869
    %v3871 = vpop.f32.mrb[0].mxu0
    %v3872 = vadd.f32 %v3156, %v3871
    %v3873 = vpop.f32.mrb[0].mxu0
    %v3874 = vadd.f32 %v3160, %v3873
    %3875 = vdwg.mxu0
    %3876 = vmatprep.subr.bf16.mxu0 %v3580
    %3877 = vmatpush1.bf16.msra.mxu0 %v3579
    %3878 = vmatprep.subr.bf16.mxu0 %v3582
    %3879 = vmatpush1.bf16.msra.mxu0 %v3581
    %3880 = vmatprep.subr.bf16.mxu0 %v3584
    %3881 = vmatpush1.bf16.msra.mxu0 %v3583
    %3882 = vmatprep.subr.bf16.mxu0 %v3586
    %3883 = vmatpush1.bf16.msra.mxu0 %v3585
    %3884 = vmatprep.subr.bf16.mxu0 %v3588
    %3885 = vmatpush1.bf16.msra.mxu0 %v3587
    %3886 = vmatprep.subr.bf16.mxu0 %v3590
    %3887 = vmatpush1.bf16.msra.mxu0 %v3589
    %3888 = vmatprep.subr.bf16.mxu0 %v3592
    %3889 = vmatpush1.bf16.msra.mxu0 %v3591
    %3890 = vmatprep.subr.bf16.mxu0 %v3594
    %3891 = vmatpush1.bf16.msra.mxu0 %v3593
    %3892 = vmatprep.subr.bf16.mxu0 %v3596
    %3893 = vmatpush1.bf16.msra.mxu0 %v3595
    %3894 = vmatprep.subr.bf16.mxu0 %v3598
    %3895 = vmatpush1.bf16.msra.mxu0 %v3597
    %3896 = vmatprep.subr.bf16.mxu0 %v3600
    %3897 = vmatpush1.bf16.msra.mxu0 %v3599
    %3898 = vmatprep.subr.bf16.mxu0 %v3602
    %3899 = vmatpush1.bf16.msra.mxu0 %v3601
    %3900 = vmatprep.subr.bf16.mxu0 %v3604
    %3901 = vmatpush1.bf16.msra.mxu0 %v3603
    %3902 = vmatprep.subr.bf16.mxu0 %v3606
    %3903 = vmatpush1.bf16.msra.mxu0 %v3605
    %3904 = vmatprep.subr.bf16.mxu0 %v3608
    %3905 = vmatpush1.bf16.msra.mxu0 %v3607
    %3906 = vmatprep.subr.bf16.mxu0 %v3610
    %3907 = vmatpush1.bf16.msra.mxu0 %v3609
    %3908 = vmatprep.mubr.bf16.mxu0 %v2994
    %3909 = vmatmul.mubr.bf16.gmra.mrb[0].mxu0 %v2993
    %v3910 = vpop.f32.mrb[0].mxu0
    %v3911 = vadd.f32 %v3838, %v3910
    %v3912 = vpop.f32.mrb[0].mxu0
    %v3913 = vadd.f32 %v3840, %v3912
    %v3914 = vpop.f32.mrb[0].mxu0
    %v3915 = vadd.f32 %v3842, %v3914
    %v3916 = vpop.f32.mrb[0].mxu0
    %v3917 = vadd.f32 %v3844, %v3916
    %3918 = vmatprep.mubr.bf16.mxu0 %v3002
    %3919 = vmatmul.mubr.bf16.gmra.mrb[0].mxu0 %v3001
    %v3920 = vpop.f32.mrb[0].mxu0
    %v3921 = vadd.f32 %v3848, %v3920
    %v3922 = vpop.f32.mrb[0].mxu0
    %v3923 = vadd.f32 %v3850, %v3922
    %v3924 = vpop.f32.mrb[0].mxu0
    %v3925 = vadd.f32 %v3852, %v3924
    %v3926 = vpop.f32.mrb[0].mxu0
    %v3927 = vadd.f32 %v3854, %v3926
    %3928 = vmatprep.mubr.bf16.mxu0 %v3010
    %3929 = vmatmul.mubr.bf16.gmra.mrb[0].mxu0 %v3009
    %v3930 = vpop.f32.mrb[0].mxu0
    %v3931 = vadd.f32 %v3858, %v3930
    %v3932 = vpop.f32.mrb[0].mxu0
    %v3933 = vadd.f32 %v3860, %v3932
    %v3934 = vpop.f32.mrb[0].mxu0
    %v3935 = vadd.f32 %v3862, %v3934
    %v3936 = vpop.f32.mrb[0].mxu0
    %v3937 = vadd.f32 %v3864, %v3936
    %3938 = vmatprep.mubr.bf16.mxu0 %v3018
    %3939 = vmatmul.mubr.bf16.gmra.mrb[0].mxu0 %v3017
    %v3940 = vpop.f32.mrb[0].mxu0
    %v3941 = vadd.f32 %v3868, %v3940
    %v3942 = vpop.f32.mrb[0].mxu0
    %v3943 = vadd.f32 %v3870, %v3942
    %v3944 = vpop.f32.mrb[0].mxu0
    %v3945 = vadd.f32 %v3872, %v3944
    %v3946 = vpop.f32.mrb[0].mxu0
    %v3947 = vadd.f32 %v3874, %v3946
    %3948 = vdwg.mxu0
    %3949 = vmatprep.subr.bf16.mxu0 %v3612
    %3950 = vmatpush1.bf16.msra.mxu0 %v3611
    %3951 = vmatprep.subr.bf16.mxu0 %v3614
    %3952 = vmatpush1.bf16.msra.mxu0 %v3613
    %3953 = vmatprep.subr.bf16.mxu0 %v3616
    %3954 = vmatpush1.bf16.msra.mxu0 %v3615
    %3955 = vmatprep.subr.bf16.mxu0 %v3618
    %3956 = vmatpush1.bf16.msra.mxu0 %v3617
    %3957 = vmatprep.subr.bf16.mxu0 %v3620
    %3958 = vmatpush1.bf16.msra.mxu0 %v3619
    %3959 = vmatprep.subr.bf16.mxu0 %v3622
    %3960 = vmatpush1.bf16.msra.mxu0 %v3621
    %3961 = vmatprep.subr.bf16.mxu0 %v3624
    %3962 = vmatpush1.bf16.msra.mxu0 %v3623
    %3963 = vmatprep.subr.bf16.mxu0 %v3626
    %3964 = vmatpush1.bf16.msra.mxu0 %v3625
    %3965 = vmatprep.subr.bf16.mxu0 %v3628
    %3966 = vmatpush1.bf16.msra.mxu0 %v3627
    %3967 = vmatprep.subr.bf16.mxu0 %v3630
    %3968 = vmatpush1.bf16.msra.mxu0 %v3629
    %3969 = vmatprep.subr.bf16.mxu0 %v3632
    %3970 = vmatpush1.bf16.msra.mxu0 %v3631
    %3971 = vmatprep.subr.bf16.mxu0 %v3634
    %3972 = vmatpush1.bf16.msra.mxu0 %v3633
    %3973 = vmatprep.subr.bf16.mxu0 %v3636
    %3974 = vmatpush1.bf16.msra.mxu0 %v3635
    %3975 = vmatprep.subr.bf16.mxu0 %v3638
    %3976 = vmatpush1.bf16.msra.mxu0 %v3637
    %3977 = vmatprep.subr.bf16.mxu0 %v3640
    %3978 = vmatpush1.bf16.msra.mxu0 %v3639
    %3979 = vmatprep.subr.bf16.mxu0 %v3642
    %3980 = vmatpush1.bf16.msra.mxu0 %v3641
    %3981 = vmatprep.mubr.bf16.mxu0 %v2996
    %3982 = vmatmul.mubr.bf16.gmra.mrb[0].mxu0 %v2995
    %v3983 = vpop.f32.mrb[0].mxu0
    %v3984 = vadd.f32 %v3911, %v3983
    %v3985 = vpop.f32.mrb[0].mxu0
    %v3986 = vadd.f32 %v3913, %v3985
    %v3987 = vpop.f32.mrb[0].mxu0
    %v3988 = vadd.f32 %v3915, %v3987
    %v3989 = vpop.f32.mrb[0].mxu0
    %v3990 = vadd.f32 %v3917, %v3989
    %3991 = vmatprep.mubr.bf16.mxu0 %v3004
    %3992 = vmatmul.mubr.bf16.gmra.mrb[0].mxu0 %v3003
    %v3993 = vpop.f32.mrb[0].mxu0
    %v3994 = vadd.f32 %v3921, %v3993
    %v3995 = vpop.f32.mrb[0].mxu0
    %v3996 = vadd.f32 %v3923, %v3995
    %v3997 = vpop.f32.mrb[0].mxu0
    %v3998 = vadd.f32 %v3925, %v3997
    %v3999 = vpop.f32.mrb[0].mxu0
    %v4000 = vadd.f32 %v3927, %v3999
    %4001 = vmatprep.mubr.bf16.mxu0 %v3012
    %4002 = vmatmul.mubr.bf16.gmra.mrb[0].mxu0 %v3011
    %v4003 = vpop.f32.mrb[0].mxu0
    %v4004 = vadd.f32 %v3931, %v4003
    %v4005 = vpop.f32.mrb[0].mxu0
    %v4006 = vadd.f32 %v3933, %v4005
    %v4007 = vpop.f32.mrb[0].mxu0
    %v4008 = vadd.f32 %v3935, %v4007
    %v4009 = vpop.f32.mrb[0].mxu0
    %v4010 = vadd.f32 %v3937, %v4009
    %4011 = vmatprep.mubr.bf16.mxu0 %v3020
    %4012 = vmatmul.mubr.bf16.gmra.mrb[0].mxu0 %v3019
    %v4013 = vpop.f32.mrb[0].mxu0
    %v4014 = vadd.f32 %v3941, %v4013
    %v4015 = vpop.f32.mrb[0].mxu0
    %v4016 = vadd.f32 %v3943, %v4015
    %v4017 = vpop.f32.mrb[0].mxu0
    %v4018 = vadd.f32 %v3945, %v4017
    %v4019 = vpop.f32.mrb[0].mxu0
    %v4020 = vadd.f32 %v3947, %v4019
    %4021 = vdwg.mxu0
    %4022 = vmatprep.subr.bf16.mxu0 %v3644
    %4023 = vmatpush1.bf16.msra.mxu0 %v3643
    %4024 = vmatprep.subr.bf16.mxu0 %v3646
    %4025 = vmatpush1.bf16.msra.mxu0 %v3645
    %4026 = vmatprep.subr.bf16.mxu0 %v3648
    %4027 = vmatpush1.bf16.msra.mxu0 %v3647
    %4028 = vmatprep.subr.bf16.mxu0 %v3650
    %4029 = vmatpush1.bf16.msra.mxu0 %v3649
    %4030 = vmatprep.subr.bf16.mxu0 %v3652
    %4031 = vmatpush1.bf16.msra.mxu0 %v3651
    %4032 = vmatprep.subr.bf16.mxu0 %v3654
    %4033 = vmatpush1.bf16.msra.mxu0 %v3653
    %4034 = vmatprep.subr.bf16.mxu0 %v3656
    %4035 = vmatpush1.bf16.msra.mxu0 %v3655
    %4036 = vmatprep.subr.bf16.mxu0 %v3658
    %4037 = vmatpush1.bf16.msra.mxu0 %v3657
    %4038 = vmatprep.subr.bf16.mxu0 %v3660
    %4039 = vmatpush1.bf16.msra.mxu0 %v3659
    %4040 = vmatprep.subr.bf16.mxu0 %v3662
    %4041 = vmatpush1.bf16.msra.mxu0 %v3661
    %4042 = vmatprep.subr.bf16.mxu0 %v3664
    %4043 = vmatpush1.bf16.msra.mxu0 %v3663
    %4044 = vmatprep.subr.bf16.mxu0 %v3666
    %4045 = vmatpush1.bf16.msra.mxu0 %v3665
    %4046 = vmatprep.subr.bf16.mxu0 %v3668
    %4047 = vmatpush1.bf16.msra.mxu0 %v3667
    %4048 = vmatprep.subr.bf16.mxu0 %v3670
    %4049 = vmatpush1.bf16.msra.mxu0 %v3669
    %4050 = vmatprep.subr.bf16.mxu0 %v3672
    %4051 = vmatpush1.bf16.msra.mxu0 %v3671
    %4052 = vmatprep.subr.bf16.mxu0 %v3674
    %4053 = vmatpush1.bf16.msra.mxu0 %v3673
    %4054 = vmatprep.mubr.bf16.mxu0 %v2998
    %4055 = vmatmul.mubr.bf16.gmra.mrb[0].mxu0 %v2997
    %v4056 = vpop.f32.mrb[0].mxu0
    %v4057 = vadd.f32 %v3984, %v4056
    %v4058 = vpop.f32.mrb[0].mxu0
    %v4059 = vadd.f32 %v3986, %v4058
    %v4060 = vpop.f32.mrb[0].mxu0
    %v4061 = vadd.f32 %v3988, %v4060
    %v4062 = vpop.f32.mrb[0].mxu0
    %v4063 = vadd.f32 %v3990, %v4062
    %4064 = vmatprep.mubr.bf16.mxu0 %v3006
    %4065 = vmatmul.mubr.bf16.gmra.mrb[0].mxu0 %v3005
    %v4066 = vpop.f32.mrb[0].mxu0
    %v4067 = vadd.f32 %v3994, %v4066
    %v4068 = vpop.f32.mrb[0].mxu0
    %v4069 = vadd.f32 %v3996, %v4068
    %v4070 = vpop.f32.mrb[0].mxu0
    %v4071 = vadd.f32 %v3998, %v4070
    %v4072 = vpop.f32.mrb[0].mxu0
    %v4073 = vadd.f32 %v4000, %v4072
    %4074 = vmatprep.mubr.bf16.mxu0 %v3014
    %4075 = vmatmul.mubr.bf16.gmra.mrb[0].mxu0 %v3013
    %v4076 = vpop.f32.mrb[0].mxu0
    %v4077 = vadd.f32 %v4004, %v4076
    %v4078 = vpop.f32.mrb[0].mxu0
    %v4079 = vadd.f32 %v4006, %v4078
    %v4080 = vpop.f32.mrb[0].mxu0
    %v4081 = vadd.f32 %v4008, %v4080
    %v4082 = vpop.f32.mrb[0].mxu0
    %v4083 = vadd.f32 %v4010, %v4082
    %4084 = vmatprep.mubr.bf16.mxu0 %v3022
    %4085 = vmatmul.mubr.bf16.gmra.mrb[0].mxu0 %v3021
    %v4086 = vpop.f32.mrb[0].mxu0
    %v4087 = vadd.f32 %v4014, %v4086
    %v4088 = vpop.f32.mrb[0].mxu0
    %v4089 = vadd.f32 %v4016, %v4088
    %v4090 = vpop.f32.mrb[0].mxu0
    %v4091 = vadd.f32 %v4018, %v4090
    %v4092 = vpop.f32.mrb[0].mxu0
    %v4093 = vadd.f32 %v4020, %v4092
    %4094 = vdwg.mxu0
    %v4095 = vpack.c.bf16 %v4061, %v4057
    %v4096 = vpack.c.bf16 %v4063, %v4059
    %v4097 = vpack.c.bf16 %v4071, %v4067
    %v4098 = vpack.c.bf16 %v4073, %v4069
    %v4099 = vpack.c.bf16 %v4081, %v4077
    %v4100 = vpack.c.bf16 %v4083, %v4079
    %v4101 = vpack.c.bf16 %v4091, %v4087
    %v4102 = vpack.c.bf16 %v4093, %v4089
    %v4103 = vtanh.bf16.pop %v4095
    %v4104 = vtanh.bf16.pop %v4096
    %v4105 = vtanh.bf16.pop %v4097
    %v4106 = vtanh.bf16.pop %v4098
    %v4107 = vtanh.bf16.pop %v4099
    %v4108 = vtanh.bf16.pop %v4100
    %v4109 = vtanh.bf16.pop %v4101
    %v4110 = vtanh.bf16.pop %v4102
    %v4111 = vunpack.c.l.bf16 %v4103
    %v4112 = vunpack.c.l.bf16 %v4104
    %v4113 = vunpack.c.h.bf16 %v4103
    %v4114 = vunpack.c.h.bf16 %v4104
    %v4115 = vunpack.c.l.bf16 %v4105
    %v4116 = vunpack.c.l.bf16 %v4106
    %v4117 = vunpack.c.h.bf16 %v4105
    %v4118 = vunpack.c.h.bf16 %v4106
    %v4119 = vunpack.c.l.bf16 %v4107
    %v4120 = vunpack.c.l.bf16 %v4108
    %v4121 = vunpack.c.h.bf16 %v4107
    %v4122 = vunpack.c.h.bf16 %v4108
    %v4123 = vunpack.c.l.bf16 %v4109
    %v4124 = vunpack.c.l.bf16 %v4110
    %v4125 = vunpack.c.h.bf16 %v4109
    %v4126 = vunpack.c.h.bf16 %v4110
    %4127 = vst [vmem:[#allocation8] sm:$0xff] %v4111
    %4128 = vst [vmem:[#allocation8 + $0x8] sm:$0xff] %v4112
    %4129 = vst [vmem:[#allocation8 + $0x10] sm:$0xff] %v4113
    %4130 = vst [vmem:[#allocation8 + $0x18] sm:$0xff] %v4114
    %4131 = vst [vmem:[#allocation8 + $0x20] sm:$0xff] %v4115
    %4132 = vst [vmem:[#allocation8 + $0x28] sm:$0xff] %v4116
    %4133 = vst [vmem:[#allocation8 + $0x30] sm:$0xff] %v4117
    %4134 = vst [vmem:[#allocation8 + $0x38] sm:$0xff] %v4118
    %4135 = vst [vmem:[#allocation8 + $0x40] sm:$0xff] %v4119
    %4136 = vst [vmem:[#allocation8 + $0x48] sm:$0xff] %v4120
    %4137 = vst [vmem:[#allocation8 + $0x50] sm:$0xff] %v4121
    %4138 = vst [vmem:[#allocation8 + $0x58] sm:$0xff] %v4122
    %4139 = vst [vmem:[#allocation8 + $0x60] sm:$0xff] %v4123
    %4140 = vst [vmem:[#allocation8 + $0x68] sm:$0xff] %v4124
    %4141 = vst [vmem:[#allocation8 + $0x70] sm:$0xff] %v4125
    %4142 = vst [vmem:[#allocation8 + $0x78] sm:$0xff] %v4126
    // Predicated region
    $region50: #{tpu_custom_call.1} parent=1 // pred_check
      _
    $region51: #{tpu_custom_call.1} parent=1 // pred_check_branch
      %4144 = sbr.rel (0) target = $region53
    $region52: #{tpu_custom_call.1} parent=1 // pred_region
      %s4146 = ssub.s32 2048, 2048
      %4147 = vsyncadd [#allocation4], %s4146
      %s4148 = sshll.u32 [#allocation8], 4
      %s4149 = int_to_ptr.vmem [resolvable:$true] %s4148
      %4154 = dma.vmem_to_hbm [thread:$0]  %s4149, 2048, %s9, [#allocation4], 256, 256, 16
    $region53: #{tpu_custom_call.1} parent=1 // pred_fallthru
      _
    // Predicated region
    $region54: #{tpu_custom_call.1} parent=1 // pred_check
      _
    $region55: #{tpu_custom_call.1} parent=1 // pred_check_branch
      %4156 = sbr.rel (0) target = $region57
    $region56: #{tpu_custom_call.1} parent=1 // pred_region
      %4157 = dma.done [#allocation4], 2048
    $region57: #{tpu_custom_call.1} parent=1 // pred_fallthru
      _
    %4158 = vsyncpa [#allocation3], 1
    %4159 = vsyncpa [#allocation6], 1
    %4160 = vsyncpa [#allocation4], 1

</llo_original>
